<compile_context>
chip_gen: v7x
topology: tpu7x:2x2x1
jax: 0.10.0
libtpu: 0.0.40
codegen_flags: <defaults>
</compile_context>

<pallas_src>
import math
from functools import partial

import jax
import jax.numpy as jnp
from jax import lax
from jax.experimental import pallas as pl
from jax.experimental.pallas import tpu as pltpu


# --------------------------- fused Pallas kernel ---------------------------

def _fused_group_attn_kernel(x_ref, grow_ref, gcol_ref, wqkv_ref, bqkv_ref,
                             wproj_ref, bproj_ref, o_ref, *,
                             num_heads, scale, compute_dtype):
    """Single-step kernel over the whole flattened (B*N, C) token slab.

    x_ref     : (BN, C)  f32   tokens (batch folded into the sublane axis)
    grow_ref  : (BN, 1)  int32 per-token group id (batch-offset), row layout
    gcol_ref  : (1, BN)  int32 same ids, column layout
    wqkv_ref  : (C, 3C)  compute_dtype
    bqkv_ref  : (1, 3C)  f32
    wproj_ref : (C, C)   compute_dtype
    bproj_ref : (1, C)   f32
    o_ref     : (BN, C)  f32
    """
    BN, C = x_ref.shape
    H = num_heads
    d = C // H

    # ---- fused qkv projection: one lane-dense MXU matmul (f32 accumulate) ---
    x = x_ref[...].astype(compute_dtype)                               # (BN, C)
    qkv = jnp.dot(x, wqkv_ref[...],
                  preferred_element_type=jnp.float32) + bqkv_ref[...]  # (BN,3C)
    # TODO(synk): split into three (C, C) matmuls if the bundle dump shows
    # lane extract/realign pressure from these 96-lane slices (micro-opt).
    q = qkv[:, :C] * scale                  # scale folded into q (f32 VPU)
    k = qkv[:, C:2 * C]
    v = qkv[:, 2 * C:]

    # ---- grouped attention as masked attention over the flat token axis ----
    # Tokens attend iff they share a (batch-offset) group id; this encodes the
    # random-permutation grouping AND keeps batches separate.
    bias = jnp.where(grow_ref[...] == gcol_ref[...],
                     jnp.float32(0.0), jnp.float32(-1e30))             # (BN,BN)

    wproj = wproj_ref[...]                                             # (C, C)

    acc = jnp.zeros((BN, C), jnp.float32)
    for h in range(H):                                  # static unroll, H small
        qh = q[:, h * d:(h + 1) * d].astype(compute_dtype)            # (BN, d)
        kh = k[:, h * d:(h + 1) * d].astype(compute_dtype)            # (BN, d)
        vh = v[:, h * d:(h + 1) * d].astype(compute_dtype)            # (BN, d)
        # scores: q @ k^T without materializing the transpose (MXU, f32 acc)
        s = lax.dot_general(qh, kh, (((1,), (1,)), ((), ())),
                            preferred_element_type=jnp.float32)       # (BN,BN)
        s = s + bias                                    # f32 VPU
        m = jnp.max(s, axis=-1, keepdims=True)          # f32
        p = jnp.exp(s - m)                              # f32 EUP; masked -> 0.0
        l = jnp.sum(p, axis=-1, keepdims=True)          # f32
        r = pl.reciprocal(l, approx=True)               # EUP vrcp (free slot)
        r = r * (2.0 - l * r)                           # Newton step -> ~f32 exact
        oh = jnp.dot(p.astype(compute_dtype), vh,
                     preferred_element_type=jnp.float32)              # (BN, d)
        oh = oh * r                                     # normalize after PV
        # fold this head straight into the output projection (no concat):
        acc = acc + jnp.dot(oh.astype(compute_dtype),
                            wproj[h * d:(h + 1) * d, :],
                            preferred_element_type=jnp.float32)       # (BN, C)

    o_ref[...] = (acc + bproj_ref[...]).astype(o_ref.dtype)


def fused_group_attention(x, group_ids, params, *, num_heads,
                          compute_dtype=jnp.bfloat16):
    """x: (B, N, C) in ORIGINAL token order; group_ids: (B*N,) int32 group id
    per flattened token (already batch-offset).  Returns (B, N, C) f32."""
    B, N, C = x.shape
    BN = B * N
    d = C // num_heads
    scale = d ** (-0.5)

    # metadata-only reshape: batch folded into the sublane/token axis
    x2 = x.reshape(BN, C).astype(jnp.float32)
    g_row = group_ids.reshape(BN, 1).astype(jnp.int32)
    g_col = group_ids.reshape(1, BN).astype(jnp.int32)

    wqkv = params["w_qkv"].astype(compute_dtype)                   # (C, 3C)
    bqkv = params["b_qkv"].reshape(1, 3 * C).astype(jnp.float32)
    wproj = params["w_proj"].astype(compute_dtype)                 # (C, C)
    bproj = params["b_proj"].reshape(1, C).astype(jnp.float32)

    kernel = partial(_fused_group_attn_kernel, num_heads=num_heads,
                     scale=float(scale), compute_dtype=compute_dtype)

    # Advisory cost estimate: lets XLA treat this custom call as tiny and
    # overlap the surrounding (group-id) ops instead of serializing around it.
    flops = 2 * BN * C * 3 * C + num_heads * (4 * BN * BN * d) + 2 * BN * C * C
    transcendentals = num_heads * (BN * BN + BN)
    itemsize = jnp.dtype(compute_dtype).itemsize
    bytes_accessed = (x2.size * 4 + g_row.size * 4 + g_col.size * 4
                      + wqkv.size * itemsize + bqkv.size * 4
                      + wproj.size * itemsize + bproj.size * 4
                      + BN * C * 4)

    out = pl.pallas_call(
        kernel,
        out_shape=jax.ShapeDtypeStruct((BN, C), jnp.float32),
        grid=(1,),                                     # collapsed single step
        in_specs=[
            pl.BlockSpec((BN, C), lambda i: (0, 0)),       # x slab
            pl.BlockSpec((BN, 1), lambda i: (0, 0)),       # group ids (rows)
            pl.BlockSpec((1, BN), lambda i: (0, 0)),       # group ids (cols)
            pl.BlockSpec((C, 3 * C), lambda i: (0, 0)),    # w_qkv (resident)
            pl.BlockSpec((1, 3 * C), lambda i: (0, 0)),    # b_qkv
            pl.BlockSpec((C, C), lambda i: (0, 0)),        # w_proj
            pl.BlockSpec((1, C), lambda i: (0, 0)),        # b_proj
        ],
        out_specs=pl.BlockSpec((BN, C), lambda i: (0, 0)),
        compiler_params=pltpu.CompilerParams(
            dimension_semantics=("arbitrary",)),
        cost_estimate=pl.CostEstimate(flops=int(flops),
                                      transcendentals=int(transcendentals),
                                      bytes_accessed=int(bytes_accessed)),
    )(x2, g_row, g_col, wqkv, bqkv, wproj, bproj)
    # TODO(synk): on v7x, benchmark this collapsed single-step kernel against a
    # grid=(2,) "parallel" per-TensorCore split; on v5e/v6e (1 TC) collapsed is
    # strictly better.
    return out.reshape(B, N, C)


# ------------------------------ module glue -------------------------------

def init_params(key, dim, qkv_bias=False):
    """Deterministic init matching nn.Linear shapes (stored transposed: (in, out))."""
    k1, k2, k3 = jax.random.split(key, 3)
    bound = 1.0 / math.sqrt(dim)
    w_qkv = jax.random.uniform(k1, (dim, 3 * dim), jnp.float32, -bound, bound)
    b_qkv = (jax.random.uniform(k2, (3 * dim,), jnp.float32, -bound, bound)
             if qkv_bias else jnp.zeros((3 * dim,), jnp.float32))
    w_proj = jax.random.uniform(k3, (dim, dim), jnp.float32, -bound, bound)
    b_proj = jax.random.uniform(jax.random.fold_in(k3, 1), (dim,),
                                jnp.float32, -bound, bound)
    return dict(w_qkv=w_qkv, b_qkv=b_qkv, w_proj=w_proj, b_proj=b_proj)


def group_attention_forward(x, params, *, num_groups, num_heads, perm_key,
                            compute_dtype=jnp.bfloat16):
    B, N, C = x.shape
    G = num_groups
    assert N % G == 0 and C % num_heads == 0
    n = N // G

    # TODO(synk): torch.randperm is host RNG; reproduced with jax.random here.
    # Instead of gathering activations (x[:, idx] ... out[:, inverse]) around
    # the kernel, the permutation is folded into the attention mask: original
    # tokens i, j attend iff they land in the same group of the permuted
    # sequence, i.e. inverse[i]//n == inverse[j]//n.  Attention is
    # order-invariant within a group and proj is per-token, so the result is
    # already in original token order and equals the reference exactly.  Only
    # this tiny int32 group-id vector crosses into the kernel.
    if G != 1:
        idx = jax.random.permutation(perm_key, N)
        g = jnp.argsort(idx) // n                       # (N,) group id per token
    else:
        g = jnp.zeros((N,), jnp.int32)
    # Distinct ids per batch so the flattened (B*N, B*N) mask never mixes batches.
    g_full = (g[None, :].astype(jnp.int32)
              + G * jnp.arange(B, dtype=jnp.int32)[:, None]).reshape(B * N)

    # Dropout probs are 0.0 -> identity (omitted).
    return fused_group_attention(x, g_full, params, num_heads=num_heads,
                                 compute_dtype=compute_dtype)


def reference_forward(x, params, *, num_groups, num_heads, perm_key):
    """Pure-JAX reference mirroring the PyTorch forward (same RNG for permutation)."""
    B, N, C = x.shape
    G, H = num_groups, num_heads
    n, d = N // G, C // H
    scale = d ** (-0.5)
    if G != 1:
        idx = jax.random.permutation(perm_key, N)
        inverse = jnp.argsort(idx)
        x = x[:, idx, :]
    qkv = x @ params["w_qkv"] + params["b_qkv"]
    qkv = qkv.reshape(B, G, n, 3, H, d).transpose(3, 0, 1, 4, 2, 5)
    q, k, v = qkv[0], qkv[1], qkv[2]
    attn = jnp.einsum("bghqd,bghkd->bghqk", q, k) * scale
    attn = jax.nn.softmax(attn, axis=-1)
    o = jnp.einsum("bghqk,bghkd->bghqd", attn, v)
    o = o.transpose(0, 1, 3, 2, 4).reshape(B, N, C)
    if G != 1:
        o = o[:, inverse, :]
    return o @ params["w_proj"] + params["b_proj"]


# --------------------------------- main ------------------------------------

if __name__ == "__main__":
    # Module defaults: num_groups=9, num_heads=8 -> need N % 9 == 0, C % 8 == 0.
    B, N, C = 2, 36, 32
    NUM_GROUPS, NUM_HEADS = 9, 8

    root = jax.random.PRNGKey(0)
    k_x, k_params, k_perm = jax.random.split(root, 3)

    x = jax.random.normal(k_x, (B, N, C), jnp.float32)
    params = init_params(k_params, C, qkv_bias=False)

    ref = reference_forward(x, params, num_groups=NUM_GROUPS,
                            num_heads=NUM_HEADS, perm_key=k_perm)

    # Strict f32 mode: proves the fused / mask-folded formulation is
    # algorithmically identical to the PyTorch forward.
    out_f32 = group_attention_forward(x, params, num_groups=NUM_GROUPS,
                                      num_heads=NUM_HEADS, perm_key=k_perm,
                                      compute_dtype=jnp.float32)
    out_f32 = jax.block_until_ready(out_f32)
    assert out_f32.shape == (B, N, C)
    assert jnp.allclose(out_f32, ref, atol=1e-4, rtol=1e-4), "f32 mismatch vs reference"

    # Production mode: bf16 MXU operands (native on v5e/v6e/v7x MXU), softmax
    # and accumulations kept in f32; tolerance = bf16 operand-rounding envelope.
    out_bf16 = group_attention_forward(x, params, num_groups=NUM_GROUPS,
                                       num_heads=NUM_HEADS, perm_key=k_perm,
                                       compute_dtype=jnp.bfloat16)
    out_bf16 = jax.block_until_ready(out_bf16)
    assert out_bf16.shape == (B, N, C)
    assert jnp.allclose(out_bf16, ref, atol=6e-2, rtol=6e-2), "bf16 mismatch vs reference"

    print("KERNEL_OK")
</pallas_src>

<mosaic_0001>
module attributes {stable_mosaic.version = 11 : i64} {
  func.func @_fused_group_attn_kernel(%arg0: i32, %arg1: memref<72x32xf32, #tpu.memory_space<vmem>>, %arg2: memref<72x1xi32, #tpu.memory_space<vmem>>, %arg3: memref<1x72xi32, #tpu.memory_space<vmem>>, %arg4: memref<32x96xf32, #tpu.memory_space<vmem>>, %arg5: memref<1x96xf32, #tpu.memory_space<vmem>>, %arg6: memref<32x32xf32, #tpu.memory_space<vmem>>, %arg7: memref<1x32xf32, #tpu.memory_space<vmem>>, %arg8: memref<72x32xf32, #tpu.memory_space<vmem>>) attributes {dimension_semantics = [#tpu.dimension_semantics<arbitrary>], iteration_bounds = array<i64: 1>, scalar_prefetch = 0 : i64, scratch_operands = 0 : i64, tpu.core_type = #tpu.core_type<tc>, window_params = [{pipeline_mode = #tpu.pipeline_mode<synchronous>, transform_indices = @transform_0, window_bounds = array<i64: 72, 32>}, {pipeline_mode = #tpu.pipeline_mode<synchronous>, transform_indices = @transform_1, window_bounds = array<i64: 72, 1>}, {pipeline_mode = #tpu.pipeline_mode<synchronous>, transform_indices = @transform_2, window_bounds = array<i64: 1, 72>}, {pipeline_mode = #tpu.pipeline_mode<synchronous>, transform_indices = @transform_3, window_bounds = array<i64: 32, 96>}, {pipeline_mode = #tpu.pipeline_mode<synchronous>, transform_indices = @transform_4, window_bounds = array<i64: 1, 96>}, {pipeline_mode = #tpu.pipeline_mode<synchronous>, transform_indices = @transform_5, window_bounds = array<i64: 32, 32>}, {pipeline_mode = #tpu.pipeline_mode<synchronous>, transform_indices = @transform_6, window_bounds = array<i64: 1, 32>}, {pipeline_mode = #tpu.pipeline_mode<synchronous>, transform_indices = @transform_7, window_bounds = array<i64: 72, 32>}]} {
    %c0 = arith.constant 0 : index
    %c0_0 = arith.constant 0 : index
    %0 = vector.load %arg1[%c0, %c0_0] : memref<72x32xf32, #tpu.memory_space<vmem>>, vector<72x32xf32>
    %c0_1 = arith.constant 0 : index
    %c0_2 = arith.constant 0 : index
    %1 = vector.load %arg4[%c0_1, %c0_2] : memref<32x96xf32, #tpu.memory_space<vmem>>, vector<32x96xf32>
    %cst = arith.constant dense<0.000000e+00> : vector<72x96xf32>
    %2 = tpu.matmul %0, %1, %cst {dimension_numbers = #tpu.dot_dimension_numbers<[1], [0], [0], [1], [0, 0, 1, 1], [], []>} : vector<72x32xf32>, vector<32x96xf32>, vector<72x96xf32> -> vector<72x96xf32>
    %c0_3 = arith.constant 0 : index
    %c0_4 = arith.constant 0 : index
    %3 = vector.load %arg5[%c0_3, %c0_4] : memref<1x96xf32, #tpu.memory_space<vmem>>, vector<1x96xf32>
    %4 = vector.broadcast %3 : vector<1x96xf32> to vector<72x96xf32>
    %5 = arith.addf %2, %4 : vector<72x96xf32>
    %6 = vector.extract_strided_slice %5 {offsets = [0, 0], sizes = [72, 32], strides = [1, 1]} : vector<72x96xf32> to vector<72x32xf32>
    %cst_5 = arith.constant 5.000000e-01 : f32
    %7 = vector.broadcast %cst_5 : f32 to vector<72x32xf32>
    %8 = arith.mulf %6, %7 : vector<72x32xf32>
    %9 = vector.extract_strided_slice %5 {offsets = [0, 32], sizes = [72, 32], strides = [1, 1]} : vector<72x96xf32> to vector<72x32xf32>
    %10 = vector.extract_strided_slice %5 {offsets = [0, 64], sizes = [72, 32], strides = [1, 1]} : vector<72x96xf32> to vector<72x32xf32>
    %c0_6 = arith.constant 0 : index
    %c0_7 = arith.constant 0 : index
    %11 = vector.load %arg2[%c0_6, %c0_7] : memref<72x1xi32, #tpu.memory_space<vmem>>, vector<72x1xi32>
    %c0_8 = arith.constant 0 : index
    %c0_9 = arith.constant 0 : index
    %12 = vector.load %arg3[%c0_8, %c0_9] : memref<1x72xi32, #tpu.memory_space<vmem>>, vector<1x72xi32>
    %13 = vector.broadcast %11 : vector<72x1xi32> to vector<72x72xi32>
    %14 = vector.broadcast %12 : vector<1x72xi32> to vector<72x72xi32>
    %15 = arith.cmpi eq, %13, %14 : vector<72x72xi32>
    %cst_10 = arith.constant 0.000000e+00 : f32
    %cst_11 = arith.constant -1.000000e+30 : f32
    %16 = vector.broadcast %cst_10 : f32 to vector<72x72xf32>
    %17 = vector.broadcast %cst_11 : f32 to vector<72x72xf32>
    %18 = arith.select %15, %16, %17 : vector<72x72xi1>, vector<72x72xf32>
    %c0_12 = arith.constant 0 : index
    %c0_13 = arith.constant 0 : index
    %19 = vector.load %arg6[%c0_12, %c0_13] : memref<32x32xf32, #tpu.memory_space<vmem>>, vector<32x32xf32>
    %cst_14 = arith.constant 0.000000e+00 : f32
    %20 = vector.broadcast %cst_14 : f32 to vector<72x32xf32>
    %21 = vector.extract_strided_slice %8 {offsets = [0, 0], sizes = [72, 4], strides = [1, 1]} : vector<72x32xf32> to vector<72x4xf32>
    %22 = vector.extract_strided_slice %9 {offsets = [0, 0], sizes = [72, 4], strides = [1, 1]} : vector<72x32xf32> to vector<72x4xf32>
    %23 = vector.extract_strided_slice %10 {offsets = [0, 0], sizes = [72, 4], strides = [1, 1]} : vector<72x32xf32> to vector<72x4xf32>
    %cst_15 = arith.constant dense<0.000000e+00> : vector<72x72xf32>
    %24 = tpu.matmul %21, %22, %cst_15 {dimension_numbers = #tpu.dot_dimension_numbers<[1], [1], [0], [0], [0, 0, 1, 0], [], []>} : vector<72x4xf32>, vector<72x4xf32>, vector<72x72xf32> -> vector<72x72xf32>
    %25 = arith.addf %24, %18 : vector<72x72xf32>
    %cst_16 = arith.constant dense<0xFF800000> : vector<72xf32>
    %26 = vector.multi_reduction <maximumf>, %25, %cst_16 [1] : vector<72x72xf32> to vector<72xf32>
    %27 = vector.shape_cast %26 : vector<72xf32> to vector<72x1xf32>
    %28 = vector.broadcast %27 : vector<72x1xf32> to vector<72x72xf32>
    %29 = arith.subf %25, %28 : vector<72x72xf32>
    %30 = math.exp %29 : vector<72x72xf32>
    %cst_17 = arith.constant dense<0.000000e+00> : vector<72xf32>
    %31 = vector.multi_reduction <add>, %30, %cst_17 [1] : vector<72x72xf32> to vector<72xf32>
    %32 = vector.shape_cast %31 : vector<72xf32> to vector<72x1xf32>
    %33 = tpu.reciprocal %32 {approx = true} : vector<72x1xf32> -> vector<72x1xf32>
    %34 = arith.mulf %32, %33 : vector<72x1xf32>
    %cst_18 = arith.constant 2.000000e+00 : f32
    %35 = vector.broadcast %cst_18 : f32 to vector<72x1xf32>
    %36 = arith.subf %35, %34 : vector<72x1xf32>
    %37 = arith.mulf %33, %36 : vector<72x1xf32>
    %cst_19 = arith.constant dense<0.000000e+00> : vector<72x4xf32>
    %38 = tpu.matmul %30, %23, %cst_19 {dimension_numbers = #tpu.dot_dimension_numbers<[1], [0], [0], [1], [0, 0, 1, 1], [], []>} : vector<72x72xf32>, vector<72x4xf32>, vector<72x4xf32> -> vector<72x4xf32>
    %39 = vector.broadcast %37 : vector<72x1xf32> to vector<72x4xf32>
    %40 = arith.mulf %38, %39 : vector<72x4xf32>
    %41 = vector.extract_strided_slice %19 {offsets = [0, 0], sizes = [4, 32], strides = [1, 1]} : vector<32x32xf32> to vector<4x32xf32>
    %cst_20 = arith.constant dense<0.000000e+00> : vector<72x32xf32>
    %42 = tpu.matmul %40, %41, %cst_20 {dimension_numbers = #tpu.dot_dimension_numbers<[1], [0], [0], [1], [0, 0, 1, 1], [], []>} : vector<72x4xf32>, vector<4x32xf32>, vector<72x32xf32> -> vector<72x32xf32>
    %43 = arith.addf %20, %42 : vector<72x32xf32>
    %44 = vector.extract_strided_slice %8 {offsets = [0, 4], sizes = [72, 4], strides = [1, 1]} : vector<72x32xf32> to vector<72x4xf32>
    %45 = vector.extract_strided_slice %9 {offsets = [0, 4], sizes = [72, 4], strides = [1, 1]} : vector<72x32xf32> to vector<72x4xf32>
    %46 = vector.extract_strided_slice %10 {offsets = [0, 4], sizes = [72, 4], strides = [1, 1]} : vector<72x32xf32> to vector<72x4xf32>
    %cst_21 = arith.constant dense<0.000000e+00> : vector<72x72xf32>
    %47 = tpu.matmul %44, %45, %cst_21 {dimension_numbers = #tpu.dot_dimension_numbers<[1], [1], [0], [0], [0, 0, 1, 0], [], []>} : vector<72x4xf32>, vector<72x4xf32>, vector<72x72xf32> -> vector<72x72xf32>
    %48 = arith.addf %47, %18 : vector<72x72xf32>
    %cst_22 = arith.constant dense<0xFF800000> : vector<72xf32>
    %49 = vector.multi_reduction <maximumf>, %48, %cst_22 [1] : vector<72x72xf32> to vector<72xf32>
    %50 = vector.shape_cast %49 : vector<72xf32> to vector<72x1xf32>
    %51 = vector.broadcast %50 : vector<72x1xf32> to vector<72x72xf32>
    %52 = arith.subf %48, %51 : vector<72x72xf32>
    %53 = math.exp %52 : vector<72x72xf32>
    %cst_23 = arith.constant dense<0.000000e+00> : vector<72xf32>
    %54 = vector.multi_reduction <add>, %53, %cst_23 [1] : vector<72x72xf32> to vector<72xf32>
    %55 = vector.shape_cast %54 : vector<72xf32> to vector<72x1xf32>
    %56 = tpu.reciprocal %55 {approx = true} : vector<72x1xf32> -> vector<72x1xf32>
    %57 = arith.mulf %55, %56 : vector<72x1xf32>
    %cst_24 = arith.constant 2.000000e+00 : f32
    %58 = vector.broadcast %cst_24 : f32 to vector<72x1xf32>
    %59 = arith.subf %58, %57 : vector<72x1xf32>
    %60 = arith.mulf %56, %59 : vector<72x1xf32>
    %cst_25 = arith.constant dense<0.000000e+00> : vector<72x4xf32>
    %61 = tpu.matmul %53, %46, %cst_25 {dimension_numbers = #tpu.dot_dimension_numbers<[1], [0], [0], [1], [0, 0, 1, 1], [], []>} : vector<72x72xf32>, vector<72x4xf32>, vector<72x4xf32> -> vector<72x4xf32>
    %62 = vector.broadcast %60 : vector<72x1xf32> to vector<72x4xf32>
    %63 = arith.mulf %61, %62 : vector<72x4xf32>
    %64 = vector.extract_strided_slice %19 {offsets = [4, 0], sizes = [4, 32], strides = [1, 1]} : vector<32x32xf32> to vector<4x32xf32>
    %cst_26 = arith.constant dense<0.000000e+00> : vector<72x32xf32>
    %65 = tpu.matmul %63, %64, %cst_26 {dimension_numbers = #tpu.dot_dimension_numbers<[1], [0], [0], [1], [0, 0, 1, 1], [], []>} : vector<72x4xf32>, vector<4x32xf32>, vector<72x32xf32> -> vector<72x32xf32>
    %66 = arith.addf %43, %65 : vector<72x32xf32>
    %67 = vector.extract_strided_slice %8 {offsets = [0, 8], sizes = [72, 4], strides = [1, 1]} : vector<72x32xf32> to vector<72x4xf32>
    %68 = vector.extract_strided_slice %9 {offsets = [0, 8], sizes = [72, 4], strides = [1, 1]} : vector<72x32xf32> to vector<72x4xf32>
    %69 = vector.extract_strided_slice %10 {offsets = [0, 8], sizes = [72, 4], strides = [1, 1]} : vector<72x32xf32> to vector<72x4xf32>
    %cst_27 = arith.constant dense<0.000000e+00> : vector<72x72xf32>
    %70 = tpu.matmul %67, %68, %cst_27 {dimension_numbers = #tpu.dot_dimension_numbers<[1], [1], [0], [0], [0, 0, 1, 0], [], []>} : vector<72x4xf32>, vector<72x4xf32>, vector<72x72xf32> -> vector<72x72xf32>
    %71 = arith.addf %70, %18 : vector<72x72xf32>
    %cst_28 = arith.constant dense<0xFF800000> : vector<72xf32>
    %72 = vector.multi_reduction <maximumf>, %71, %cst_28 [1] : vector<72x72xf32> to vector<72xf32>
    %73 = vector.shape_cast %72 : vector<72xf32> to vector<72x1xf32>
    %74 = vector.broadcast %73 : vector<72x1xf32> to vector<72x72xf32>
    %75 = arith.subf %71, %74 : vector<72x72xf32>
    %76 = math.exp %75 : vector<72x72xf32>
    %cst_29 = arith.constant dense<0.000000e+00> : vector<72xf32>
    %77 = vector.multi_reduction <add>, %76, %cst_29 [1] : vector<72x72xf32> to vector<72xf32>
    %78 = vector.shape_cast %77 : vector<72xf32> to vector<72x1xf32>
    %79 = tpu.reciprocal %78 {approx = true} : vector<72x1xf32> -> vector<72x1xf32>
    %80 = arith.mulf %78, %79 : vector<72x1xf32>
    %cst_30 = arith.constant 2.000000e+00 : f32
    %81 = vector.broadcast %cst_30 : f32 to vector<72x1xf32>
    %82 = arith.subf %81, %80 : vector<72x1xf32>
    %83 = arith.mulf %79, %82 : vector<72x1xf32>
    %cst_31 = arith.constant dense<0.000000e+00> : vector<72x4xf32>
    %84 = tpu.matmul %76, %69, %cst_31 {dimension_numbers = #tpu.dot_dimension_numbers<[1], [0], [0], [1], [0, 0, 1, 1], [], []>} : vector<72x72xf32>, vector<72x4xf32>, vector<72x4xf32> -> vector<72x4xf32>
    %85 = vector.broadcast %83 : vector<72x1xf32> to vector<72x4xf32>
    %86 = arith.mulf %84, %85 : vector<72x4xf32>
    %87 = vector.extract_strided_slice %19 {offsets = [8, 0], sizes = [4, 32], strides = [1, 1]} : vector<32x32xf32> to vector<4x32xf32>
    %cst_32 = arith.constant dense<0.000000e+00> : vector<72x32xf32>
    %88 = tpu.matmul %86, %87, %cst_32 {dimension_numbers = #tpu.dot_dimension_numbers<[1], [0], [0], [1], [0, 0, 1, 1], [], []>} : vector<72x4xf32>, vector<4x32xf32>, vector<72x32xf32> -> vector<72x32xf32>
    %89 = arith.addf %66, %88 : vector<72x32xf32>
    %90 = vector.extract_strided_slice %8 {offsets = [0, 12], sizes = [72, 4], strides = [1, 1]} : vector<72x32xf32> to vector<72x4xf32>
    %91 = vector.extract_strided_slice %9 {offsets = [0, 12], sizes = [72, 4], strides = [1, 1]} : vector<72x32xf32> to vector<72x4xf32>
    %92 = vector.extract_strided_slice %10 {offsets = [0, 12], sizes = [72, 4], strides = [1, 1]} : vector<72x32xf32> to vector<72x4xf32>
    %cst_33 = arith.constant dense<0.000000e+00> : vector<72x72xf32>
    %93 = tpu.matmul %90, %91, %cst_33 {dimension_numbers = #tpu.dot_dimension_numbers<[1], [1], [0], [0], [0, 0, 1, 0], [], []>} : vector<72x4xf32>, vector<72x4xf32>, vector<72x72xf32> -> vector<72x72xf32>
    %94 = arith.addf %93, %18 : vector<72x72xf32>
    %cst_34 = arith.constant dense<0xFF800000> : vector<72xf32>
    %95 = vector.multi_reduction <maximumf>, %94, %cst_34 [1] : vector<72x72xf32> to vector<72xf32>
    %96 = vector.shape_cast %95 : vector<72xf32> to vector<72x1xf32>
    %97 = vector.broadcast %96 : vector<72x1xf32> to vector<72x72xf32>
    %98 = arith.subf %94, %97 : vector<72x72xf32>
    %99 = math.exp %98 : vector<72x72xf32>
    %cst_35 = arith.constant dense<0.000000e+00> : vector<72xf32>
    %100 = vector.multi_reduction <add>, %99, %cst_35 [1] : vector<72x72xf32> to vector<72xf32>
    %101 = vector.shape_cast %100 : vector<72xf32> to vector<72x1xf32>
    %102 = tpu.reciprocal %101 {approx = true} : vector<72x1xf32> -> vector<72x1xf32>
    %103 = arith.mulf %101, %102 : vector<72x1xf32>
    %cst_36 = arith.constant 2.000000e+00 : f32
    %104 = vector.broadcast %cst_36 : f32 to vector<72x1xf32>
    %105 = arith.subf %104, %103 : vector<72x1xf32>
    %106 = arith.mulf %102, %105 : vector<72x1xf32>
    %cst_37 = arith.constant dense<0.000000e+00> : vector<72x4xf32>
    %107 = tpu.matmul %99, %92, %cst_37 {dimension_numbers = #tpu.dot_dimension_numbers<[1], [0], [0], [1], [0, 0, 1, 1], [], []>} : vector<72x72xf32>, vector<72x4xf32>, vector<72x4xf32> -> vector<72x4xf32>
    %108 = vector.broadcast %106 : vector<72x1xf32> to vector<72x4xf32>
    %109 = arith.mulf %107, %108 : vector<72x4xf32>
    %110 = vector.extract_strided_slice %19 {offsets = [12, 0], sizes = [4, 32], strides = [1, 1]} : vector<32x32xf32> to vector<4x32xf32>
    %cst_38 = arith.constant dense<0.000000e+00> : vector<72x32xf32>
    %111 = tpu.matmul %109, %110, %cst_38 {dimension_numbers = #tpu.dot_dimension_numbers<[1], [0], [0], [1], [0, 0, 1, 1], [], []>} : vector<72x4xf32>, vector<4x32xf32>, vector<72x32xf32> -> vector<72x32xf32>
    %112 = arith.addf %89, %111 : vector<72x32xf32>
    %113 = vector.extract_strided_slice %8 {offsets = [0, 16], sizes = [72, 4], strides = [1, 1]} : vector<72x32xf32> to vector<72x4xf32>
    %114 = vector.extract_strided_slice %9 {offsets = [0, 16], sizes = [72, 4], strides = [1, 1]} : vector<72x32xf32> to vector<72x4xf32>
    %115 = vector.extract_strided_slice %10 {offsets = [0, 16], sizes = [72, 4], strides = [1, 1]} : vector<72x32xf32> to vector<72x4xf32>
    %cst_39 = arith.constant dense<0.000000e+00> : vector<72x72xf32>
    %116 = tpu.matmul %113, %114, %cst_39 {dimension_numbers = #tpu.dot_dimension_numbers<[1], [1], [0], [0], [0, 0, 1, 0], [], []>} : vector<72x4xf32>, vector<72x4xf32>, vector<72x72xf32> -> vector<72x72xf32>
    %117 = arith.addf %116, %18 : vector<72x72xf32>
    %cst_40 = arith.constant dense<0xFF800000> : vector<72xf32>
    %118 = vector.multi_reduction <maximumf>, %117, %cst_40 [1] : vector<72x72xf32> to vector<72xf32>
    %119 = vector.shape_cast %118 : vector<72xf32> to vector<72x1xf32>
    %120 = vector.broadcast %119 : vector<72x1xf32> to vector<72x72xf32>
    %121 = arith.subf %117, %120 : vector<72x72xf32>
    %122 = math.exp %121 : vector<72x72xf32>
    %cst_41 = arith.constant dense<0.000000e+00> : vector<72xf32>
    %123 = vector.multi_reduction <add>, %122, %cst_41 [1] : vector<72x72xf32> to vector<72xf32>
    %124 = vector.shape_cast %123 : vector<72xf32> to vector<72x1xf32>
    %125 = tpu.reciprocal %124 {approx = true} : vector<72x1xf32> -> vector<72x1xf32>
    %126 = arith.mulf %124, %125 : vector<72x1xf32>
    %cst_42 = arith.constant 2.000000e+00 : f32
    %127 = vector.broadcast %cst_42 : f32 to vector<72x1xf32>
    %128 = arith.subf %127, %126 : vector<72x1xf32>
    %129 = arith.mulf %125, %128 : vector<72x1xf32>
    %cst_43 = arith.constant dense<0.000000e+00> : vector<72x4xf32>
    %130 = tpu.matmul %122, %115, %cst_43 {dimension_numbers = #tpu.dot_dimension_numbers<[1], [0], [0], [1], [0, 0, 1, 1], [], []>} : vector<72x72xf32>, vector<72x4xf32>, vector<72x4xf32> -> vector<72x4xf32>
    %131 = vector.broadcast %129 : vector<72x1xf32> to vector<72x4xf32>
    %132 = arith.mulf %130, %131 : vector<72x4xf32>
    %133 = vector.extract_strided_slice %19 {offsets = [16, 0], sizes = [4, 32], strides = [1, 1]} : vector<32x32xf32> to vector<4x32xf32>
    %cst_44 = arith.constant dense<0.000000e+00> : vector<72x32xf32>
    %134 = tpu.matmul %132, %133, %cst_44 {dimension_numbers = #tpu.dot_dimension_numbers<[1], [0], [0], [1], [0, 0, 1, 1], [], []>} : vector<72x4xf32>, vector<4x32xf32>, vector<72x32xf32> -> vector<72x32xf32>
    %135 = arith.addf %112, %134 : vector<72x32xf32>
    %136 = vector.extract_strided_slice %8 {offsets = [0, 20], sizes = [72, 4], strides = [1, 1]} : vector<72x32xf32> to vector<72x4xf32>
    %137 = vector.extract_strided_slice %9 {offsets = [0, 20], sizes = [72, 4], strides = [1, 1]} : vector<72x32xf32> to vector<72x4xf32>
    %138 = vector.extract_strided_slice %10 {offsets = [0, 20], sizes = [72, 4], strides = [1, 1]} : vector<72x32xf32> to vector<72x4xf32>
    %cst_45 = arith.constant dense<0.000000e+00> : vector<72x72xf32>
    %139 = tpu.matmul %136, %137, %cst_45 {dimension_numbers = #tpu.dot_dimension_numbers<[1], [1], [0], [0], [0, 0, 1, 0], [], []>} : vector<72x4xf32>, vector<72x4xf32>, vector<72x72xf32> -> vector<72x72xf32>
    %140 = arith.addf %139, %18 : vector<72x72xf32>
    %cst_46 = arith.constant dense<0xFF800000> : vector<72xf32>
    %141 = vector.multi_reduction <maximumf>, %140, %cst_46 [1] : vector<72x72xf32> to vector<72xf32>
    %142 = vector.shape_cast %141 : vector<72xf32> to vector<72x1xf32>
    %143 = vector.broadcast %142 : vector<72x1xf32> to vector<72x72xf32>
    %144 = arith.subf %140, %143 : vector<72x72xf32>
    %145 = math.exp %144 : vector<72x72xf32>
    %cst_47 = arith.constant dense<0.000000e+00> : vector<72xf32>
    %146 = vector.multi_reduction <add>, %145, %cst_47 [1] : vector<72x72xf32> to vector<72xf32>
    %147 = vector.shape_cast %146 : vector<72xf32> to vector<72x1xf32>
    %148 = tpu.reciprocal %147 {approx = true} : vector<72x1xf32> -> vector<72x1xf32>
    %149 = arith.mulf %147, %148 : vector<72x1xf32>
    %cst_48 = arith.constant 2.000000e+00 : f32
    %150 = vector.broadcast %cst_48 : f32 to vector<72x1xf32>
    %151 = arith.subf %150, %149 : vector<72x1xf32>
    %152 = arith.mulf %148, %151 : vector<72x1xf32>
    %cst_49 = arith.constant dense<0.000000e+00> : vector<72x4xf32>
    %153 = tpu.matmul %145, %138, %cst_49 {dimension_numbers = #tpu.dot_dimension_numbers<[1], [0], [0], [1], [0, 0, 1, 1], [], []>} : vector<72x72xf32>, vector<72x4xf32>, vector<72x4xf32> -> vector<72x4xf32>
    %154 = vector.broadcast %152 : vector<72x1xf32> to vector<72x4xf32>
    %155 = arith.mulf %153, %154 : vector<72x4xf32>
    %156 = vector.extract_strided_slice %19 {offsets = [20, 0], sizes = [4, 32], strides = [1, 1]} : vector<32x32xf32> to vector<4x32xf32>
    %cst_50 = arith.constant dense<0.000000e+00> : vector<72x32xf32>
    %157 = tpu.matmul %155, %156, %cst_50 {dimension_numbers = #tpu.dot_dimension_numbers<[1], [0], [0], [1], [0, 0, 1, 1], [], []>} : vector<72x4xf32>, vector<4x32xf32>, vector<72x32xf32> -> vector<72x32xf32>
    %158 = arith.addf %135, %157 : vector<72x32xf32>
    %159 = vector.extract_strided_slice %8 {offsets = [0, 24], sizes = [72, 4], strides = [1, 1]} : vector<72x32xf32> to vector<72x4xf32>
    %160 = vector.extract_strided_slice %9 {offsets = [0, 24], sizes = [72, 4], strides = [1, 1]} : vector<72x32xf32> to vector<72x4xf32>
    %161 = vector.extract_strided_slice %10 {offsets = [0, 24], sizes = [72, 4], strides = [1, 1]} : vector<72x32xf32> to vector<72x4xf32>
    %cst_51 = arith.constant dense<0.000000e+00> : vector<72x72xf32>
    %162 = tpu.matmul %159, %160, %cst_51 {dimension_numbers = #tpu.dot_dimension_numbers<[1], [1], [0], [0], [0, 0, 1, 0], [], []>} : vector<72x4xf32>, vector<72x4xf32>, vector<72x72xf32> -> vector<72x72xf32>
    %163 = arith.addf %162, %18 : vector<72x72xf32>
    %cst_52 = arith.constant dense<0xFF800000> : vector<72xf32>
    %164 = vector.multi_reduction <maximumf>, %163, %cst_52 [1] : vector<72x72xf32> to vector<72xf32>
    %165 = vector.shape_cast %164 : vector<72xf32> to vector<72x1xf32>
    %166 = vector.broadcast %165 : vector<72x1xf32> to vector<72x72xf32>
    %167 = arith.subf %163, %166 : vector<72x72xf32>
    %168 = math.exp %167 : vector<72x72xf32>
    %cst_53 = arith.constant dense<0.000000e+00> : vector<72xf32>
    %169 = vector.multi_reduction <add>, %168, %cst_53 [1] : vector<72x72xf32> to vector<72xf32>
    %170 = vector.shape_cast %169 : vector<72xf32> to vector<72x1xf32>
    %171 = tpu.reciprocal %170 {approx = true} : vector<72x1xf32> -> vector<72x1xf32>
    %172 = arith.mulf %170, %171 : vector<72x1xf32>
    %cst_54 = arith.constant 2.000000e+00 : f32
    %173 = vector.broadcast %cst_54 : f32 to vector<72x1xf32>
    %174 = arith.subf %173, %172 : vector<72x1xf32>
    %175 = arith.mulf %171, %174 : vector<72x1xf32>
    %cst_55 = arith.constant dense<0.000000e+00> : vector<72x4xf32>
    %176 = tpu.matmul %168, %161, %cst_55 {dimension_numbers = #tpu.dot_dimension_numbers<[1], [0], [0], [1], [0, 0, 1, 1], [], []>} : vector<72x72xf32>, vector<72x4xf32>, vector<72x4xf32> -> vector<72x4xf32>
    %177 = vector.broadcast %175 : vector<72x1xf32> to vector<72x4xf32>
    %178 = arith.mulf %176, %177 : vector<72x4xf32>
    %179 = vector.extract_strided_slice %19 {offsets = [24, 0], sizes = [4, 32], strides = [1, 1]} : vector<32x32xf32> to vector<4x32xf32>
    %cst_56 = arith.constant dense<0.000000e+00> : vector<72x32xf32>
    %180 = tpu.matmul %178, %179, %cst_56 {dimension_numbers = #tpu.dot_dimension_numbers<[1], [0], [0], [1], [0, 0, 1, 1], [], []>} : vector<72x4xf32>, vector<4x32xf32>, vector<72x32xf32> -> vector<72x32xf32>
    %181 = arith.addf %158, %180 : vector<72x32xf32>
    %182 = vector.extract_strided_slice %8 {offsets = [0, 28], sizes = [72, 4], strides = [1, 1]} : vector<72x32xf32> to vector<72x4xf32>
    %183 = vector.extract_strided_slice %9 {offsets = [0, 28], sizes = [72, 4], strides = [1, 1]} : vector<72x32xf32> to vector<72x4xf32>
    %184 = vector.extract_strided_slice %10 {offsets = [0, 28], sizes = [72, 4], strides = [1, 1]} : vector<72x32xf32> to vector<72x4xf32>
    %cst_57 = arith.constant dense<0.000000e+00> : vector<72x72xf32>
    %185 = tpu.matmul %182, %183, %cst_57 {dimension_numbers = #tpu.dot_dimension_numbers<[1], [1], [0], [0], [0, 0, 1, 0], [], []>} : vector<72x4xf32>, vector<72x4xf32>, vector<72x72xf32> -> vector<72x72xf32>
    %186 = arith.addf %185, %18 : vector<72x72xf32>
    %cst_58 = arith.constant dense<0xFF800000> : vector<72xf32>
    %187 = vector.multi_reduction <maximumf>, %186, %cst_58 [1] : vector<72x72xf32> to vector<72xf32>
    %188 = vector.shape_cast %187 : vector<72xf32> to vector<72x1xf32>
    %189 = vector.broadcast %188 : vector<72x1xf32> to vector<72x72xf32>
    %190 = arith.subf %186, %189 : vector<72x72xf32>
    %191 = math.exp %190 : vector<72x72xf32>
    %cst_59 = arith.constant dense<0.000000e+00> : vector<72xf32>
    %192 = vector.multi_reduction <add>, %191, %cst_59 [1] : vector<72x72xf32> to vector<72xf32>
    %193 = vector.shape_cast %192 : vector<72xf32> to vector<72x1xf32>
    %194 = tpu.reciprocal %193 {approx = true} : vector<72x1xf32> -> vector<72x1xf32>
    %195 = arith.mulf %193, %194 : vector<72x1xf32>
    %cst_60 = arith.constant 2.000000e+00 : f32
    %196 = vector.broadcast %cst_60 : f32 to vector<72x1xf32>
    %197 = arith.subf %196, %195 : vector<72x1xf32>
    %198 = arith.mulf %194, %197 : vector<72x1xf32>
    %cst_61 = arith.constant dense<0.000000e+00> : vector<72x4xf32>
    %199 = tpu.matmul %191, %184, %cst_61 {dimension_numbers = #tpu.dot_dimension_numbers<[1], [0], [0], [1], [0, 0, 1, 1], [], []>} : vector<72x72xf32>, vector<72x4xf32>, vector<72x4xf32> -> vector<72x4xf32>
    %200 = vector.broadcast %198 : vector<72x1xf32> to vector<72x4xf32>
    %201 = arith.mulf %199, %200 : vector<72x4xf32>
    %202 = vector.extract_strided_slice %19 {offsets = [28, 0], sizes = [4, 32], strides = [1, 1]} : vector<32x32xf32> to vector<4x32xf32>
    %cst_62 = arith.constant dense<0.000000e+00> : vector<72x32xf32>
    %203 = tpu.matmul %201, %202, %cst_62 {dimension_numbers = #tpu.dot_dimension_numbers<[1], [0], [0], [1], [0, 0, 1, 1], [], []>} : vector<72x4xf32>, vector<4x32xf32>, vector<72x32xf32> -> vector<72x32xf32>
    %204 = arith.addf %181, %203 : vector<72x32xf32>
    %c0_63 = arith.constant 0 : index
    %c0_64 = arith.constant 0 : index
    %205 = vector.load %arg7[%c0_63, %c0_64] : memref<1x32xf32, #tpu.memory_space<vmem>>, vector<1x32xf32>
    %206 = vector.broadcast %205 : vector<1x32xf32> to vector<72x32xf32>
    %207 = arith.addf %204, %206 : vector<72x32xf32>
    %c0_65 = arith.constant 0 : index
    %c0_66 = arith.constant 0 : index
    %208 = vector.load %arg8[%c0_65, %c0_66] : memref<72x32xf32, #tpu.memory_space<vmem>>, vector<72x32xf32>
    tpu.vector_store %arg8[%c0_65, %c0_66], %207 {strides = array<i32>} : memref<72x32xf32, #tpu.memory_space<vmem>>, vector<72x32xf32>,
    return
  }
  func.func @transform_0(%arg0: i32) -> (i32, i32) {
    %c0_i32 = arith.constant 0 : i32
    %c0_i32_0 = arith.constant 0 : i32
    %c0_i32_1 = arith.constant 0 : i32
    return %c0_i32, %c0_i32_0 : i32, i32
  }
  func.func @transform_1(%arg0: i32) -> (i32, i32) {
    %c0_i32 = arith.constant 0 : i32
    %c0_i32_0 = arith.constant 0 : i32
    %c0_i32_1 = arith.constant 0 : i32
    return %c0_i32, %c0_i32_0 : i32, i32
  }
  func.func @transform_2(%arg0: i32) -> (i32, i32) {
    %c0_i32 = arith.constant 0 : i32
    %c0_i32_0 = arith.constant 0 : i32
    %c0_i32_1 = arith.constant 0 : i32
    return %c0_i32, %c0_i32_0 : i32, i32
  }
  func.func @transform_3(%arg0: i32) -> (i32, i32) {
    %c0_i32 = arith.constant 0 : i32
    %c0_i32_0 = arith.constant 0 : i32
    %c0_i32_1 = arith.constant 0 : i32
    return %c0_i32, %c0_i32_0 : i32, i32
  }
  func.func @transform_4(%arg0: i32) -> (i32, i32) {
    %c0_i32 = arith.constant 0 : i32
    %c0_i32_0 = arith.constant 0 : i32
    %c0_i32_1 = arith.constant 0 : i32
    return %c0_i32, %c0_i32_0 : i32, i32
  }
  func.func @transform_5(%arg0: i32) -> (i32, i32) {
    %c0_i32 = arith.constant 0 : i32
    %c0_i32_0 = arith.constant 0 : i32
    %c0_i32_1 = arith.constant 0 : i32
    return %c0_i32, %c0_i32_0 : i32, i32
  }
  func.func @transform_6(%arg0: i32) -> (i32, i32) {
    %c0_i32 = arith.constant 0 : i32
    %c0_i32_0 = arith.constant 0 : i32
    %c0_i32_1 = arith.constant 0 : i32
    return %c0_i32, %c0_i32_0 : i32, i32
  }
  func.func @transform_7(%arg0: i32) -> (i32, i32) {
    %c0_i32 = arith.constant 0 : i32
    %c0_i32_0 = arith.constant 0 : i32
    %c0_i32_1 = arith.constant 0 : i32
    return %c0_i32, %c0_i32_0 : i32, i32
  }
}

</mosaic_0001>

<llo_original>
// kernel: tpu_custom_call.1
$region0: #{tpu_custom_call.1}
  #allocation0 [shape = 'u32[]', space=smem, size = 0x4, offset = 0x4, fixed_abs, tag = 'smem constant byte address 0x4 - core index']
  #allocation1 [shape = 'u32[144,128]{1,0:T(1,128)}', space=vmem, size = 0x12000, scoped, tag = 'internal scratch']
  %s0 = inlined_call_operand.vmem [shape: f32[72,32], index: 0, kind: input, shape index: {}]
  %s1 = inlined_call_operand.vmem [shape: s32[72,1], index: 1, kind: input, shape index: {}]
  %s2 = inlined_call_operand.vmem [shape: s32[1,72], index: 2, kind: input, shape index: {}]
  %s3 = inlined_call_operand.vmem [shape: f32[32,96], index: 3, kind: input, shape index: {}]
  %s4 = inlined_call_operand.vmem [shape: f32[1,96], index: 4, kind: input, shape index: {}]
  %s5 = inlined_call_operand.vmem [shape: f32[32,32], index: 5, kind: input, shape index: {}]
  %s6 = inlined_call_operand.vmem [shape: f32[1,32], index: 6, kind: input, shape index: {}]
  %s7 = inlined_call_operand.vmem [shape: f32[72,32], index: 7, kind: output, shape index: {}]
  %s8 = sld [smem:[#allocation0]]
  $region38: #{tpu_custom_call.1} parent=0
    _
  %s10 = ssub.s32 1, %s8
  %s11 = scalar_select 0, %s10, %s8
  // Predicated region
  $region2: #{tpu_custom_call.1} parent=0 // pred_check
    _
  $region3: #{tpu_custom_call.1} parent=0 // pred_check_branch
    %13 = sbr.rel (0) target = $region5
  $region4: #{tpu_custom_call.1} parent=0 // pred_region
    _
  $region5: #{tpu_custom_call.1} parent=0 // pred_fallthru
    _
  // Predicated region
  $region6: #{tpu_custom_call.1} parent=0 // pred_check
    _
  $region7: #{tpu_custom_call.1} parent=0 // pred_check_branch
    %15 = sbr.rel (0) target = $region9
  $region8: #{tpu_custom_call.1} parent=0 // pred_region
    _
  $region9: #{tpu_custom_call.1} parent=0 // pred_fallthru
    _
  // Predicated region
  $region10: #{tpu_custom_call.1} parent=0 // pred_check
    _
  $region11: #{tpu_custom_call.1} parent=0 // pred_check_branch
    %17 = sbr.rel (0) target = $region13
  $region12: #{tpu_custom_call.1} parent=0 // pred_region
    _
  $region13: #{tpu_custom_call.1} parent=0 // pred_fallthru
    _
  // Predicated region
  $region14: #{tpu_custom_call.1} parent=0 // pred_check
    _
  $region15: #{tpu_custom_call.1} parent=0 // pred_check_branch
    %19 = sbr.rel (0) target = $region17
  $region16: #{tpu_custom_call.1} parent=0 // pred_region
    _
  $region17: #{tpu_custom_call.1} parent=0 // pred_fallthru
    _
  // Predicated region
  $region18: #{tpu_custom_call.1} parent=0 // pred_check
    _
  $region19: #{tpu_custom_call.1} parent=0 // pred_check_branch
    %21 = sbr.rel (0) target = $region21
  $region20: #{tpu_custom_call.1} parent=0 // pred_region
    _
  $region21: #{tpu_custom_call.1} parent=0 // pred_fallthru
    _
  // Predicated region
  $region22: #{tpu_custom_call.1} parent=0 // pred_check
    _
  $region23: #{tpu_custom_call.1} parent=0 // pred_check_branch
    %23 = sbr.rel (0) target = $region25
  $region24: #{tpu_custom_call.1} parent=0 // pred_region
    _
  $region25: #{tpu_custom_call.1} parent=0 // pred_fallthru
    _
  // Predicated region
  $region26: #{tpu_custom_call.1} parent=0 // pred_check
    _
  $region27: #{tpu_custom_call.1} parent=0 // pred_check_branch
    %25 = sbr.rel (0) target = $region29
  $region28: #{tpu_custom_call.1} parent=0 // pred_region
    _
  $region29: #{tpu_custom_call.1} parent=0 // pred_fallthru
    _
  %v26 = vld [vmem:[%s0] sm:$0xff]
  %v27 = vld [vmem:[%s0 + $0x8] sm:$0xff]
  %v28 = vld [vmem:[%s0 + $0x10] sm:$0xff]
  %v29 = vld [vmem:[%s0 + $0x18] sm:$0xff]
  %v30 = vld [vmem:[%s0 + $0x20] sm:$0xff]
  %v31 = vld [vmem:[%s0 + $0x28] sm:$0xff]
  %v32 = vld [vmem:[%s0 + $0x30] sm:$0xff]
  %v33 = vld [vmem:[%s0 + $0x38] sm:$0xff]
  %v34 = vld [vmem:[%s0 + $0x40] sm:$0xff]
  %v35 = vld [vmem:[%s3] sm:$0xff]
  %v36 = vld [vmem:[%s3 + $0x8] sm:$0xff]
  %v37 = vld [vmem:[%s3 + $0x10] sm:$0xff]
  %v38 = vld [vmem:[%s3 + $0x18] sm:$0xff]
  %v39 = vld [vmem:[%s4] sm:$0x1]
  %v41 = vlaneseq
  %v42 = vshrl.u32 %v41, 7
  %v43 = vsub.s32 0, %v42
  %v44 = vrot.slane %v39, %v43
  %vm46 = vcmask 261120
  %v48 = vsel %vm46, %v26, 0
  %v51 = vsel %vm46, %v27, 0
  %v54 = vsel %vm46, %v28, 0
  %v57 = vsel %vm46, %v29, 0
  %v60 = vsel %vm46, %v30, 0
  %v63 = vsel %vm46, %v31, 0
  %v66 = vsel %vm46, %v32, 0
  %v69 = vsel %vm46, %v33, 0
  %v72 = vsel %vm46, %v34, 0
  %74 = vmatprep.subr.mxu0 0.0
  %75 = vmatpush1.msra.mxu0 %v35
  %76 = vmatprep.subr.mxu0 0.0
  %77 = vmatpush1.msra.mxu0 %v36
  %78 = vmatprep.subr.mxu0 0.0
  %79 = vmatpush1.msra.mxu0 %v37
  %80 = vmatprep.subr.mxu0 0.0
  %81 = vmatpush1.msra.mxu0 %v38
  %82 = vmatprep.subr.mxu0 0.0
  %83 = vmatpush1.msra.mxu0 0.0
  %84 = vmatprep.subr.mxu0 0.0
  %85 = vmatpush1.msra.mxu0 0.0
  %86 = vmatprep.subr.mxu0 0.0
  %87 = vmatpush1.msra.mxu0 0.0
  %88 = vmatprep.subr.mxu0 0.0
  %89 = vmatpush1.msra.mxu0 0.0
  %90 = vmatprep.subr.mxu0 0.0
  %91 = vmatpush1.msra.mxu0 0.0
  %92 = vmatprep.subr.mxu0 0.0
  %93 = vmatpush1.msra.mxu0 0.0
  %94 = vmatprep.subr.mxu0 0.0
  %95 = vmatpush1.msra.mxu0 0.0
  %96 = vmatprep.subr.mxu0 0.0
  %97 = vmatpush1.msra.mxu0 0.0
  %98 = vmatprep.subr.mxu0 0.0
  %99 = vmatpush1.msra.mxu0 0.0
  %100 = vmatprep.subr.mxu0 0.0
  %101 = vmatpush1.msra.mxu0 0.0
  %102 = vmatprep.subr.mxu0 0.0
  %103 = vmatpush1.msra.mxu0 0.0
  %104 = vmatprep.subr.mxu0 0.0
  %105 = vmatpush1.msra.mxu0 0.0
  %106 = vmatprep.subr.mxu0 0.0
  %107 = vmatpush1.msra.mxu0 0.0
  %108 = vmatprep.subr.mxu0 0.0
  %109 = vmatpush1.msra.mxu0 0.0
  %110 = vmatprep.subr.mxu0 0.0
  %111 = vmatpush1.msra.mxu0 0.0
  %112 = vmatprep.subr.mxu0 0.0
  %113 = vmatpush1.msra.mxu0 0.0
  %114 = vmatprep.subr.mxu0 0.0
  %115 = vmatpush1.msra.mxu0 0.0
  %116 = vmatprep.subr.mxu0 0.0
  %117 = vmatpush1.msra.mxu0 0.0
  %118 = vmatprep.subr.mxu0 0.0
  %119 = vmatpush1.msra.mxu0 0.0
  %120 = vmatprep.subr.mxu0 0.0
  %121 = vmatpush1.msra.mxu0 0.0
  %122 = vmatprep.subr.mxu0 0.0
  %123 = vmatpush1.msra.mxu0 0.0
  %124 = vmatprep.subr.mxu0 0.0
  %125 = vmatpush1.msra.mxu0 0.0
  %126 = vmatprep.subr.mxu0 0.0
  %127 = vmatpush1.msra.mxu0 0.0
  %128 = vmatprep.subr.mxu0 0.0
  %129 = vmatpush1.msra.mxu0 0.0
  %130 = vmatprep.subr.mxu0 0.0
  %131 = vmatpush1.msra.mxu0 0.0
  %132 = vmatprep.subr.mxu0 0.0
  %133 = vmatpush1.msra.mxu0 0.0
  %134 = vmatprep.subr.mxu0 0.0
  %135 = vmatpush1.msra.mxu0 0.0
  %136 = vmatprep.subr.mxu0 0.0
  %137 = vmatpush1.msra.mxu0 0.0
  %138 = vmatprep.mubr.f32.mxu0 0.0
  %139 = vmatmul.mubr.f32.gmra.mrb[0].mxu0 %v48
  %v140 = vpop.f32.mrb[0].mxu0
  %v141 = vadd.f32 %v44, %v140
  %v142 = vpop.f32.mrb[0].mxu0
  %143 = vmatprep.mubr.f32.mxu0 0.0
  %144 = vmatmul.mubr.f32.gmra.mrb[0].mxu0 %v51
  %v145 = vpop.f32.mrb[0].mxu0
  %v146 = vadd.f32 %v44, %v145
  %v147 = vpop.f32.mrb[0].mxu0
  %148 = vmatprep.mubr.f32.mxu0 0.0
  %149 = vmatmul.mubr.f32.gmra.mrb[0].mxu0 %v54
  %v150 = vpop.f32.mrb[0].mxu0
  %v151 = vadd.f32 %v44, %v150
  %v152 = vpop.f32.mrb[0].mxu0
  %153 = vmatprep.mubr.f32.mxu0 0.0
  %154 = vmatmul.mubr.f32.gmra.mrb[0].mxu0 %v57
  %v155 = vpop.f32.mrb[0].mxu0
  %v156 = vadd.f32 %v44, %v155
  %v157 = vpop.f32.mrb[0].mxu0
  %158 = vmatprep.mubr.f32.mxu0 0.0
  %159 = vmatmul.mubr.f32.gmra.mrb[0].mxu0 %v60
  %v160 = vpop.f32.mrb[0].mxu0
  %v161 = vadd.f32 %v44, %v160
  %v162 = vpop.f32.mrb[0].mxu0
  %163 = vmatprep.mubr.f32.mxu0 0.0
  %164 = vmatmul.mubr.f32.gmra.mrb[0].mxu0 %v63
  %v165 = vpop.f32.mrb[0].mxu0
  %v166 = vadd.f32 %v44, %v165
  %v167 = vpop.f32.mrb[0].mxu0
  %168 = vmatprep.mubr.f32.mxu0 0.0
  %169 = vmatmul.mubr.f32.gmra.mrb[0].mxu0 %v66
  %v170 = vpop.f32.mrb[0].mxu0
  %v171 = vadd.f32 %v44, %v170
  %v172 = vpop.f32.mrb[0].mxu0
  %173 = vmatprep.mubr.f32.mxu0 0.0
  %174 = vmatmul.mubr.f32.gmra.mrb[0].mxu0 %v69
  %v175 = vpop.f32.mrb[0].mxu0
  %v176 = vadd.f32 %v44, %v175
  %v177 = vpop.f32.mrb[0].mxu0
  %178 = vmatprep.mubr.f32.mxu0 0.0
  %179 = vmatmul.mubr.f32.gmra.mrb[0].mxu0 %v72
  %v180 = vpop.f32.mrb[0].mxu0
  %v181 = vadd.f32 %v44, %v180
  %v182 = vpop.f32.mrb[0].mxu0
  %183 = vdwg.mxu0
  %v184 = vmul.f32 %v141, 0.5
  %v185 = vmul.f32 %v146, 0.5
  %v186 = vmul.f32 %v151, 0.5
  %v187 = vmul.f32 %v156, 0.5
  %v188 = vmul.f32 %v161, 0.5
  %v189 = vmul.f32 %v166, 0.5
  %v190 = vmul.f32 %v171, 0.5
  %v191 = vmul.f32 %v176, 0.5
  %v192 = vmul.f32 %v181, 0.5
  %v193 = vld [vmem:[%s1] sm:$0xff]
  %v194 = vld [vmem:[%s1 + $0x8] sm:$0xff]
  %v195 = vld [vmem:[%s1 + $0x10] sm:$0xff]
  %v196 = vld [vmem:[%s1 + $0x18] sm:$0xff]
  %v197 = vld [vmem:[%s1 + $0x20] sm:$0xff]
  %v198 = vld [vmem:[%s1 + $0x28] sm:$0xff]
  %v199 = vld [vmem:[%s1 + $0x30] sm:$0xff]
  %v200 = vld [vmem:[%s1 + $0x38] sm:$0xff]
  %v201 = vld [vmem:[%s1 + $0x40] sm:$0xff]
  %v202 = vld [vmem:[%s2] sm:$0x1]
  %203 = vset.pattern.permute.xlu0 0
  %204 = vperm.xlu0 %203, %v193
  %v205 = vpop.permute.xlu0 %204
  %206 = vset.pattern.permute.xlu0 0
  %207 = vperm.xlu0 %206, %v194
  %v208 = vpop.permute.xlu0 %207
  %209 = vset.pattern.permute.xlu0 0
  %210 = vperm.xlu0 %209, %v195
  %v211 = vpop.permute.xlu0 %210
  %212 = vset.pattern.permute.xlu0 0
  %213 = vperm.xlu0 %212, %v196
  %v214 = vpop.permute.xlu0 %213
  %215 = vset.pattern.permute.xlu0 0
  %216 = vperm.xlu0 %215, %v197
  %v217 = vpop.permute.xlu0 %216
  %218 = vset.pattern.permute.xlu0 0
  %219 = vperm.xlu0 %218, %v198
  %v220 = vpop.permute.xlu0 %219
  %221 = vset.pattern.permute.xlu0 0
  %222 = vperm.xlu0 %221, %v199
  %v223 = vpop.permute.xlu0 %222
  %224 = vset.pattern.permute.xlu0 0
  %225 = vperm.xlu0 %224, %v200
  %v226 = vpop.permute.xlu0 %225
  %227 = vset.pattern.permute.xlu0 0
  %228 = vperm.xlu0 %227, %v201
  %v229 = vpop.permute.xlu0 %228
  %v230 = vlaneseq
  %v231 = vshrl.u32 %v230, 7
  %v232 = vsub.s32 0, %v231
  %v233 = vrot.slane %v202, %v232
  %vm234 = vcmp.eq.s32.totalorder %v205, %v233
  %vm235 = vcmp.eq.s32.totalorder %v208, %v233
  %vm236 = vcmp.eq.s32.totalorder %v211, %v233
  %vm237 = vcmp.eq.s32.totalorder %v214, %v233
  %vm238 = vcmp.eq.s32.totalorder %v217, %v233
  %vm239 = vcmp.eq.s32.totalorder %v220, %v233
  %vm240 = vcmp.eq.s32.totalorder %v223, %v233
  %vm241 = vcmp.eq.s32.totalorder %v226, %v233
  %vm242 = vcmp.eq.s32.totalorder %v229, %v233
  %v243 = vsel %vm234, 0.0, -1e+30
  %v244 = vsel %vm235, 0.0, -1e+30
  %v245 = vsel %vm236, 0.0, -1e+30
  %v246 = vsel %vm237, 0.0, -1e+30
  %v247 = vsel %vm238, 0.0, -1e+30
  %v248 = vsel %vm239, 0.0, -1e+30
  %v249 = vsel %vm240, 0.0, -1e+30
  %v250 = vsel %vm241, 0.0, -1e+30
  %v251 = vsel %vm242, 0.0, -1e+30
  %v252 = vld [vmem:[%s5] sm:$0xff]
  %v253 = vld [vmem:[%s5 + $0x8] sm:$0xff]
  %v254 = vld [vmem:[%s5 + $0x10] sm:$0xff]
  %v255 = vld [vmem:[%s5 + $0x18] sm:$0xff]
  %265 = vrot.lane.b32.xlu0 %v141, 96
  %v266 = vpop.permute.xlu0 %265
  %267 = vrot.lane.b32.xlu0 %v146, 96
  %v268 = vpop.permute.xlu0 %267
  %269 = vrot.lane.b32.xlu0 %v151, 96
  %v270 = vpop.permute.xlu0 %269
  %271 = vrot.lane.b32.xlu0 %v156, 96
  %v272 = vpop.permute.xlu0 %271
  %273 = vrot.lane.b32.xlu0 %v161, 96
  %v274 = vpop.permute.xlu0 %273
  %275 = vrot.lane.b32.xlu0 %v166, 96
  %v276 = vpop.permute.xlu0 %275
  %277 = vrot.lane.b32.xlu0 %v171, 96
  %v278 = vpop.permute.xlu0 %277
  %279 = vrot.lane.b32.xlu0 %v176, 96
  %v280 = vpop.permute.xlu0 %279
  %281 = vrot.lane.b32.xlu0 %v181, 96
  %v282 = vpop.permute.xlu0 %281
  %vm283 = vcmask 31744
  %v285 = vsel %vm283, %v184, 0
  %v288 = vsel %vm283, %v185, 0
  %v291 = vsel %vm283, %v186, 0
  %v294 = vsel %vm283, %v187, 0
  %v297 = vsel %vm283, %v188, 0
  %v300 = vsel %vm283, %v189, 0
  %v303 = vsel %vm283, %v190, 0
  %v306 = vsel %vm283, %v191, 0
  %v309 = vsel %vm283, %v192, 0
  %v311 = vsel %vm283, %v266, 0
  %v313 = vsel %vm283, %v268, 0
  %v315 = vsel %vm283, %v270, 0
  %v317 = vsel %vm283, %v272, 0
  %v319 = vsel %vm283, %v274, 0
  %v321 = vsel %vm283, %v276, 0
  %v323 = vsel %vm283, %v278, 0
  %v325 = vsel %vm283, %v280, 0
  %v327 = vsel %vm283, %v282, 0
  %329 = vmatprep.subr.mxu0 0.0
  %330 = vmatpush1.xpose.msra.mxu0 %v311
  %331 = vmatprep.subr.mxu0 0.0
  %332 = vmatpush1.xpose.msra.mxu0 %v313
  %333 = vmatprep.subr.mxu0 0.0
  %334 = vmatpush1.xpose.msra.mxu0 %v315
  %335 = vmatprep.subr.mxu0 0.0
  %336 = vmatpush1.xpose.msra.mxu0 %v317
  %337 = vmatprep.subr.mxu0 0.0
  %338 = vmatpush1.xpose.msra.mxu0 %v319
  %339 = vmatprep.subr.mxu0 0.0
  %340 = vmatpush1.xpose.msra.mxu0 %v321
  %341 = vmatprep.subr.mxu0 0.0
  %342 = vmatpush1.xpose.msra.mxu0 %v323
  %343 = vmatprep.subr.mxu0 0.0
  %344 = vmatpush1.xpose.msra.mxu0 %v325
  %345 = vmatprep.subr.mxu0 0.0
  %346 = vmatpush1.xpose.msra.mxu0 %v327
  %347 = vmatprep.subr.mxu0 0.0
  %348 = vmatpush1.xpose.msra.mxu0 0.0
  %349 = vmatprep.subr.mxu0 0.0
  %350 = vmatpush1.xpose.msra.mxu0 0.0
  %351 = vmatprep.subr.mxu0 0.0
  %352 = vmatpush1.xpose.msra.mxu0 0.0
  %353 = vmatprep.subr.mxu0 0.0
  %354 = vmatpush1.xpose.msra.mxu0 0.0
  %355 = vmatprep.subr.mxu0 0.0
  %356 = vmatpush1.xpose.msra.mxu0 0.0
  %357 = vmatprep.subr.mxu0 0.0
  %358 = vmatpush1.xpose.msra.mxu0 0.0
  %359 = vmatprep.subr.mxu0 0.0
  %360 = vmatpush1.xpose.msra.mxu0 0.0
  %361 = vmatprep.subr.mxu0 0.0
  %362 = vmatpush1.xpose.msra.mxu0 0.0
  %363 = vmatprep.subr.mxu0 0.0
  %364 = vmatpush1.xpose.msra.mxu0 0.0
  %365 = vmatprep.subr.mxu0 0.0
  %366 = vmatpush1.xpose.msra.mxu0 0.0
  %367 = vmatprep.subr.mxu0 0.0
  %368 = vmatpush1.xpose.msra.mxu0 0.0
  %369 = vmatprep.subr.mxu0 0.0
  %370 = vmatpush1.xpose.msra.mxu0 0.0
  %371 = vmatprep.subr.mxu0 0.0
  %372 = vmatpush1.xpose.msra.mxu0 0.0
  %373 = vmatprep.subr.mxu0 0.0
  %374 = vmatpush1.xpose.msra.mxu0 0.0
  %375 = vmatprep.subr.mxu0 0.0
  %376 = vmatpush1.xpose.msra.mxu0 0.0
  %377 = vmatprep.subr.mxu0 0.0
  %378 = vmatpush1.xpose.msra.mxu0 0.0
  %379 = vmatprep.subr.mxu0 0.0
  %380 = vmatpush1.xpose.msra.mxu0 0.0
  %381 = vmatprep.subr.mxu0 0.0
  %382 = vmatpush1.xpose.msra.mxu0 0.0
  %383 = vmatprep.subr.mxu0 0.0
  %384 = vmatpush1.xpose.msra.mxu0 0.0
  %385 = vmatprep.subr.mxu0 0.0
  %386 = vmatpush1.xpose.msra.mxu0 0.0
  %387 = vmatprep.subr.mxu0 0.0
  %388 = vmatpush1.xpose.msra.mxu0 0.0
  %389 = vmatprep.subr.mxu0 0.0
  %390 = vmatpush1.xpose.msra.mxu0 0.0
  %391 = vmatprep.subr.mxu0 0.0
  %392 = vmatpush1.xpose.msra.mxu0 0.0
  %393 = vmatprep.mubr.f32.mxu0 0.0
  %394 = vmatmul.mubr.f32.gmra.mrb[0].mxu0 %v285
  %v395 = vpop.f32.mrb[0].mxu0
  %v396 = vadd.f32 %v243, %v395
  %v397 = vpop.f32.mrb[0].mxu0
  %398 = vmatprep.mubr.f32.mxu0 0.0
  %399 = vmatmul.mubr.f32.gmra.mrb[0].mxu0 %v288
  %v400 = vpop.f32.mrb[0].mxu0
  %v401 = vadd.f32 %v244, %v400
  %v402 = vpop.f32.mrb[0].mxu0
  %403 = vmatprep.mubr.f32.mxu0 0.0
  %404 = vmatmul.mubr.f32.gmra.mrb[0].mxu0 %v291
  %v405 = vpop.f32.mrb[0].mxu0
  %v406 = vadd.f32 %v245, %v405
  %v407 = vpop.f32.mrb[0].mxu0
  %408 = vmatprep.mubr.f32.mxu0 0.0
  %409 = vmatmul.mubr.f32.gmra.mrb[0].mxu0 %v294
  %v410 = vpop.f32.mrb[0].mxu0
  %v411 = vadd.f32 %v246, %v410
  %v412 = vpop.f32.mrb[0].mxu0
  %413 = vmatprep.mubr.f32.mxu0 0.0
  %414 = vmatmul.mubr.f32.gmra.mrb[0].mxu0 %v297
  %v415 = vpop.f32.mrb[0].mxu0
  %v416 = vadd.f32 %v247, %v415
  %v417 = vpop.f32.mrb[0].mxu0
  %418 = vmatprep.mubr.f32.mxu0 0.0
  %419 = vmatmul.mubr.f32.gmra.mrb[0].mxu0 %v300
  %v420 = vpop.f32.mrb[0].mxu0
  %v421 = vadd.f32 %v248, %v420
  %v422 = vpop.f32.mrb[0].mxu0
  %423 = vmatprep.mubr.f32.mxu0 0.0
  %424 = vmatmul.mubr.f32.gmra.mrb[0].mxu0 %v303
  %v425 = vpop.f32.mrb[0].mxu0
  %v426 = vadd.f32 %v249, %v425
  %v427 = vpop.f32.mrb[0].mxu0
  %428 = vmatprep.mubr.f32.mxu0 0.0
  %429 = vmatmul.mubr.f32.gmra.mrb[0].mxu0 %v306
  %v430 = vpop.f32.mrb[0].mxu0
  %v431 = vadd.f32 %v250, %v430
  %v432 = vpop.f32.mrb[0].mxu0
  %433 = vmatprep.mubr.f32.mxu0 0.0
  %434 = vmatmul.mubr.f32.gmra.mrb[0].mxu0 %v309
  %v435 = vpop.f32.mrb[0].mxu0
  %v436 = vadd.f32 %v251, %v435
  %v437 = vpop.f32.mrb[0].mxu0
  %438 = vdwg.mxu0
  %vm439 = vcmask 588800
  %v440 = vsel %vm439, %v396, -inf
  %441 = vmax.xlane.f32.xlu0 %v440
  %v442 = vpop.xlane.xlu0 %441
  %v443 = vsel %vm439, %v401, -inf
  %444 = vmax.xlane.f32.xlu0 %v443
  %v445 = vpop.xlane.xlu0 %444
  %v446 = vsel %vm439, %v406, -inf
  %447 = vmax.xlane.f32.xlu0 %v446
  %v448 = vpop.xlane.xlu0 %447
  %v449 = vsel %vm439, %v411, -inf
  %450 = vmax.xlane.f32.xlu0 %v449
  %v451 = vpop.xlane.xlu0 %450
  %v452 = vsel %vm439, %v416, -inf
  %453 = vmax.xlane.f32.xlu0 %v452
  %v454 = vpop.xlane.xlu0 %453
  %v455 = vsel %vm439, %v421, -inf
  %456 = vmax.xlane.f32.xlu0 %v455
  %v457 = vpop.xlane.xlu0 %456
  %v458 = vsel %vm439, %v426, -inf
  %459 = vmax.xlane.f32.xlu0 %v458
  %v460 = vpop.xlane.xlu0 %459
  %v461 = vsel %vm439, %v431, -inf
  %462 = vmax.xlane.f32.xlu0 %v461
  %v463 = vpop.xlane.xlu0 %462
  %v464 = vsel %vm439, %v436, -inf
  %465 = vmax.xlane.f32.xlu0 %v464
  %v466 = vpop.xlane.xlu0 %465
  %v467 = vsub.f32 %v396, %v442
  %v468 = vsub.f32 %v401, %v445
  %v469 = vsub.f32 %v406, %v448
  %v470 = vsub.f32 %v411, %v451
  %v471 = vsub.f32 %v416, %v454
  %v472 = vsub.f32 %v421, %v457
  %v473 = vsub.f32 %v426, %v460
  %v474 = vsub.f32 %v431, %v463
  %v475 = vsub.f32 %v436, %v466
  %v476 = vmul.f32 %v467, 1.442695
  %v477 = vpow.pop %v476
  %v478 = vmul.f32 %v468, 1.442695
  %v479 = vpow.pop %v478
  %v480 = vmul.f32 %v469, 1.442695
  %v481 = vpow.pop %v480
  %v482 = vmul.f32 %v470, 1.442695
  %v483 = vpow.pop %v482
  %v484 = vmul.f32 %v471, 1.442695
  %v485 = vpow.pop %v484
  %v486 = vmul.f32 %v472, 1.442695
  %v487 = vpow.pop %v486
  %v488 = vmul.f32 %v473, 1.442695
  %v489 = vpow.pop %v488
  %v490 = vmul.f32 %v474, 1.442695
  %v491 = vpow.pop %v490
  %v492 = vmul.f32 %v475, 1.442695
  %v493 = vpow.pop %v492
  %v494 = vsel %vm439, %v477, 0.0
  %495 = vadd.xlane.f32.xlu0 %v494
  %v496 = vpop.xlane.xlu0 %495
  %v497 = vsel %vm439, %v479, 0.0
  %498 = vadd.xlane.f32.xlu0 %v497
  %v499 = vpop.xlane.xlu0 %498
  %v500 = vsel %vm439, %v481, 0.0
  %501 = vadd.xlane.f32.xlu0 %v500
  %v502 = vpop.xlane.xlu0 %501
  %v503 = vsel %vm439, %v483, 0.0
  %504 = vadd.xlane.f32.xlu0 %v503
  %v505 = vpop.xlane.xlu0 %504
  %v506 = vsel %vm439, %v485, 0.0
  %507 = vadd.xlane.f32.xlu0 %v506
  %v508 = vpop.xlane.xlu0 %507
  %v509 = vsel %vm439, %v487, 0.0
  %510 = vadd.xlane.f32.xlu0 %v509
  %v511 = vpop.xlane.xlu0 %510
  %v512 = vsel %vm439, %v489, 0.0
  %513 = vadd.xlane.f32.xlu0 %v512
  %v514 = vpop.xlane.xlu0 %513
  %v515 = vsel %vm439, %v491, 0.0
  %516 = vadd.xlane.f32.xlu0 %v515
  %v517 = vpop.xlane.xlu0 %516
  %v518 = vsel %vm439, %v493, 0.0
  %519 = vadd.xlane.f32.xlu0 %v518
  %v520 = vpop.xlane.xlu0 %519
  %v521 = vrcp.pop %v496
  %v522 = vrcp.pop %v499
  %v523 = vrcp.pop %v502
  %v524 = vrcp.pop %v505
  %v525 = vrcp.pop %v508
  %v526 = vrcp.pop %v511
  %v527 = vrcp.pop %v514
  %v528 = vrcp.pop %v517
  %v529 = vrcp.pop %v520
  %v530 = vmul.f32 %v496, %v521
  %v531 = vmul.f32 %v499, %v522
  %v532 = vmul.f32 %v502, %v523
  %v533 = vmul.f32 %v505, %v524
  %v534 = vmul.f32 %v508, %v525
  %v535 = vmul.f32 %v511, %v526
  %v536 = vmul.f32 %v514, %v527
  %v537 = vmul.f32 %v517, %v528
  %v538 = vmul.f32 %v520, %v529
  %v539 = vsub.f32 2.0, %v530
  %v540 = vsub.f32 2.0, %v531
  %v541 = vsub.f32 2.0, %v532
  %v542 = vsub.f32 2.0, %v533
  %v543 = vsub.f32 2.0, %v534
  %v544 = vsub.f32 2.0, %v535
  %v545 = vsub.f32 2.0, %v536
  %v546 = vsub.f32 2.0, %v537
  %v547 = vsub.f32 2.0, %v538
  %v548 = vmul.f32 %v521, %v539
  %v549 = vmul.f32 %v522, %v540
  %v550 = vmul.f32 %v523, %v541
  %v551 = vmul.f32 %v524, %v542
  %v552 = vmul.f32 %v525, %v543
  %v553 = vmul.f32 %v526, %v544
  %v554 = vmul.f32 %v527, %v545
  %v555 = vmul.f32 %v528, %v546
  %v556 = vmul.f32 %v529, %v547
  %557 = vrot.lane.b32.xlu0 %v141, 64
  %v558 = vpop.permute.xlu0 %557
  %559 = vrot.lane.b32.xlu0 %v146, 64
  %v560 = vpop.permute.xlu0 %559
  %561 = vrot.lane.b32.xlu0 %v151, 64
  %v562 = vpop.permute.xlu0 %561
  %563 = vrot.lane.b32.xlu0 %v156, 64
  %v564 = vpop.permute.xlu0 %563
  %565 = vrot.lane.b32.xlu0 %v161, 64
  %v566 = vpop.permute.xlu0 %565
  %567 = vrot.lane.b32.xlu0 %v166, 64
  %v568 = vpop.permute.xlu0 %567
  %569 = vrot.lane.b32.xlu0 %v171, 64
  %v570 = vpop.permute.xlu0 %569
  %571 = vrot.lane.b32.xlu0 %v176, 64
  %v572 = vpop.permute.xlu0 %571
  %573 = vrot.lane.b32.xlu0 %v181, 64
  %v574 = vpop.permute.xlu0 %573
  %v585 = vsel %vm439, %v477, 0
  %v588 = vsel %vm439, %v479, 0
  %v591 = vsel %vm439, %v481, 0
  %v594 = vsel %vm439, %v483, 0
  %v597 = vsel %vm439, %v485, 0
  %v600 = vsel %vm439, %v487, 0
  %v603 = vsel %vm439, %v489, 0
  %v606 = vsel %vm439, %v491, 0
  %v609 = vsel %vm439, %v493, 0
  %611 = vmatprep.subr.mxu0 0.0
  %612 = vmatpush1.msra.mxu0 %v558
  %613 = vmatprep.subr.mxu0 0.0
  %614 = vmatpush1.msra.mxu0 %v560
  %615 = vmatprep.subr.mxu0 0.0
  %616 = vmatpush1.msra.mxu0 %v562
  %617 = vmatprep.subr.mxu0 0.0
  %618 = vmatpush1.msra.mxu0 %v564
  %619 = vmatprep.subr.mxu0 0.0
  %620 = vmatpush1.msra.mxu0 %v566
  %621 = vmatprep.subr.mxu0 0.0
  %622 = vmatpush1.msra.mxu0 %v568
  %623 = vmatprep.subr.mxu0 0.0
  %624 = vmatpush1.msra.mxu0 %v570
  %625 = vmatprep.subr.mxu0 0.0
  %626 = vmatpush1.msra.mxu0 %v572
  %627 = vmatprep.subr.mxu0 0.0
  %628 = vmatpush1.msra.mxu0 %v574
  %629 = vmatprep.subr.mxu0 0.0
  %630 = vmatpush1.msra.mxu0 0.0
  %631 = vmatprep.subr.mxu0 0.0
  %632 = vmatpush1.msra.mxu0 0.0
  %633 = vmatprep.subr.mxu0 0.0
  %634 = vmatpush1.msra.mxu0 0.0
  %635 = vmatprep.subr.mxu0 0.0
  %636 = vmatpush1.msra.mxu0 0.0
  %637 = vmatprep.subr.mxu0 0.0
  %638 = vmatpush1.msra.mxu0 0.0
  %639 = vmatprep.subr.mxu0 0.0
  %640 = vmatpush1.msra.mxu0 0.0
  %641 = vmatprep.subr.mxu0 0.0
  %642 = vmatpush1.msra.mxu0 0.0
  %643 = vmatprep.subr.mxu0 0.0
  %644 = vmatpush1.msra.mxu0 0.0
  %645 = vmatprep.subr.mxu0 0.0
  %646 = vmatpush1.msra.mxu0 0.0
  %647 = vmatprep.subr.mxu0 0.0
  %648 = vmatpush1.msra.mxu0 0.0
  %649 = vmatprep.subr.mxu0 0.0
  %650 = vmatpush1.msra.mxu0 0.0
  %651 = vmatprep.subr.mxu0 0.0
  %652 = vmatpush1.msra.mxu0 0.0
  %653 = vmatprep.subr.mxu0 0.0
  %654 = vmatpush1.msra.mxu0 0.0
  %655 = vmatprep.subr.mxu0 0.0
  %656 = vmatpush1.msra.mxu0 0.0
  %657 = vmatprep.subr.mxu0 0.0
  %658 = vmatpush1.msra.mxu0 0.0
  %659 = vmatprep.subr.mxu0 0.0
  %660 = vmatpush1.msra.mxu0 0.0
  %661 = vmatprep.subr.mxu0 0.0
  %662 = vmatpush1.msra.mxu0 0.0
  %663 = vmatprep.subr.mxu0 0.0
  %664 = vmatpush1.msra.mxu0 0.0
  %665 = vmatprep.subr.mxu0 0.0
  %666 = vmatpush1.msra.mxu0 0.0
  %667 = vmatprep.subr.mxu0 0.0
  %668 = vmatpush1.msra.mxu0 0.0
  %669 = vmatprep.subr.mxu0 0.0
  %670 = vmatpush1.msra.mxu0 0.0
  %671 = vmatprep.subr.mxu0 0.0
  %672 = vmatpush1.msra.mxu0 0.0
  %673 = vmatprep.subr.mxu0 0.0
  %674 = vmatpush1.msra.mxu0 0.0
  %675 = vmatprep.mubr.f32.mxu0 0.0
  %676 = vmatmul.mubr.f32.gmra.mrb[0].mxu0 %v585
  %v677 = vpop.f32.mrb[0].mxu0
  %v678 = vadd.f32 0.0, %v677
  %v679 = vpop.f32.mrb[0].mxu0
  %680 = vmatprep.mubr.f32.mxu0 0.0
  %681 = vmatmul.mubr.f32.gmra.mrb[0].mxu0 %v588
  %v682 = vpop.f32.mrb[0].mxu0
  %v683 = vadd.f32 0.0, %v682
  %v684 = vpop.f32.mrb[0].mxu0
  %685 = vmatprep.mubr.f32.mxu0 0.0
  %686 = vmatmul.mubr.f32.gmra.mrb[0].mxu0 %v591
  %v687 = vpop.f32.mrb[0].mxu0
  %v688 = vadd.f32 0.0, %v687
  %v689 = vpop.f32.mrb[0].mxu0
  %690 = vmatprep.mubr.f32.mxu0 0.0
  %691 = vmatmul.mubr.f32.gmra.mrb[0].mxu0 %v594
  %v692 = vpop.f32.mrb[0].mxu0
  %v693 = vadd.f32 0.0, %v692
  %v694 = vpop.f32.mrb[0].mxu0
  %695 = vmatprep.mubr.f32.mxu0 0.0
  %696 = vmatmul.mubr.f32.gmra.mrb[0].mxu0 %v597
  %v697 = vpop.f32.mrb[0].mxu0
  %v698 = vadd.f32 0.0, %v697
  %v699 = vpop.f32.mrb[0].mxu0
  %700 = vmatprep.mubr.f32.mxu0 0.0
  %701 = vmatmul.mubr.f32.gmra.mrb[0].mxu0 %v600
  %v702 = vpop.f32.mrb[0].mxu0
  %v703 = vadd.f32 0.0, %v702
  %v704 = vpop.f32.mrb[0].mxu0
  %705 = vmatprep.mubr.f32.mxu0 0.0
  %706 = vmatmul.mubr.f32.gmra.mrb[0].mxu0 %v603
  %v707 = vpop.f32.mrb[0].mxu0
  %v708 = vadd.f32 0.0, %v707
  %v709 = vpop.f32.mrb[0].mxu0
  %710 = vmatprep.mubr.f32.mxu0 0.0
  %711 = vmatmul.mubr.f32.gmra.mrb[0].mxu0 %v606
  %v712 = vpop.f32.mrb[0].mxu0
  %v713 = vadd.f32 0.0, %v712
  %v714 = vpop.f32.mrb[0].mxu0
  %715 = vmatprep.mubr.f32.mxu0 0.0
  %716 = vmatmul.mubr.f32.gmra.mrb[0].mxu0 %v609
  %v717 = vpop.f32.mrb[0].mxu0
  %v718 = vadd.f32 0.0, %v717
  %v719 = vpop.f32.mrb[0].mxu0
  %720 = vdwg.mxu0
  %v721 = vmul.f32 %v678, %v548
  %v722 = vmul.f32 %v683, %v549
  %v723 = vmul.f32 %v688, %v550
  %v724 = vmul.f32 %v693, %v551
  %v725 = vmul.f32 %v698, %v552
  %v726 = vmul.f32 %v703, %v553
  %v727 = vmul.f32 %v708, %v554
  %v728 = vmul.f32 %v713, %v555
  %v729 = vmul.f32 %v718, %v556
  %730 = vrot.lane.b32.xlu0 %v184, 124
  %v731 = vpop.permute.xlu0 %730
  %732 = vrot.lane.b32.xlu0 %v185, 124
  %v733 = vpop.permute.xlu0 %732
  %734 = vrot.lane.b32.xlu0 %v186, 124
  %v735 = vpop.permute.xlu0 %734
  %736 = vrot.lane.b32.xlu0 %v187, 124
  %v737 = vpop.permute.xlu0 %736
  %738 = vrot.lane.b32.xlu0 %v188, 124
  %v739 = vpop.permute.xlu0 %738
  %740 = vrot.lane.b32.xlu0 %v189, 124
  %v741 = vpop.permute.xlu0 %740
  %742 = vrot.lane.b32.xlu0 %v190, 124
  %v743 = vpop.permute.xlu0 %742
  %744 = vrot.lane.b32.xlu0 %v191, 124
  %v745 = vpop.permute.xlu0 %744
  %746 = vrot.lane.b32.xlu0 %v192, 124
  %v747 = vpop.permute.xlu0 %746
  %748 = vrot.lane.b32.xlu0 %v141, 92
  %v749 = vpop.permute.xlu0 %748
  %750 = vrot.lane.b32.xlu0 %v146, 92
  %v751 = vpop.permute.xlu0 %750
  %752 = vrot.lane.b32.xlu0 %v151, 92
  %v753 = vpop.permute.xlu0 %752
  %754 = vrot.lane.b32.xlu0 %v156, 92
  %v755 = vpop.permute.xlu0 %754
  %756 = vrot.lane.b32.xlu0 %v161, 92
  %v757 = vpop.permute.xlu0 %756
  %758 = vrot.lane.b32.xlu0 %v166, 92
  %v759 = vpop.permute.xlu0 %758
  %760 = vrot.lane.b32.xlu0 %v171, 92
  %v761 = vpop.permute.xlu0 %760
  %762 = vrot.lane.b32.xlu0 %v176, 92
  %v763 = vpop.permute.xlu0 %762
  %764 = vrot.lane.b32.xlu0 %v181, 92
  %v765 = vpop.permute.xlu0 %764
  %v766 = vsel %vm283, %v731, 0
  %v768 = vsel %vm283, %v733, 0
  %v770 = vsel %vm283, %v735, 0
  %v772 = vsel %vm283, %v737, 0
  %v774 = vsel %vm283, %v739, 0
  %v776 = vsel %vm283, %v741, 0
  %v778 = vsel %vm283, %v743, 0
  %v780 = vsel %vm283, %v745, 0
  %v782 = vsel %vm283, %v747, 0
  %v784 = vsel %vm283, %v749, 0
  %v786 = vsel %vm283, %v751, 0
  %v788 = vsel %vm283, %v753, 0
  %v790 = vsel %vm283, %v755, 0
  %v792 = vsel %vm283, %v757, 0
  %v794 = vsel %vm283, %v759, 0
  %v796 = vsel %vm283, %v761, 0
  %v798 = vsel %vm283, %v763, 0
  %v800 = vsel %vm283, %v765, 0
  %802 = vmatprep.subr.mxu0 0.0
  %803 = vmatpush1.xpose.msra.mxu0 %v784
  %804 = vmatprep.subr.mxu0 0.0
  %805 = vmatpush1.xpose.msra.mxu0 %v786
  %806 = vmatprep.subr.mxu0 0.0
  %807 = vmatpush1.xpose.msra.mxu0 %v788
  %808 = vmatprep.subr.mxu0 0.0
  %809 = vmatpush1.xpose.msra.mxu0 %v790
  %810 = vmatprep.subr.mxu0 0.0
  %811 = vmatpush1.xpose.msra.mxu0 %v792
  %812 = vmatprep.subr.mxu0 0.0
  %813 = vmatpush1.xpose.msra.mxu0 %v794
  %814 = vmatprep.subr.mxu0 0.0
  %815 = vmatpush1.xpose.msra.mxu0 %v796
  %816 = vmatprep.subr.mxu0 0.0
  %817 = vmatpush1.xpose.msra.mxu0 %v798
  %818 = vmatprep.subr.mxu0 0.0
  %819 = vmatpush1.xpose.msra.mxu0 %v800
  %820 = vmatprep.subr.mxu0 0.0
  %821 = vmatpush1.xpose.msra.mxu0 0.0
  %822 = vmatprep.subr.mxu0 0.0
  %823 = vmatpush1.xpose.msra.mxu0 0.0
  %824 = vmatprep.subr.mxu0 0.0
  %825 = vmatpush1.xpose.msra.mxu0 0.0
  %826 = vmatprep.subr.mxu0 0.0
  %827 = vmatpush1.xpose.msra.mxu0 0.0
  %828 = vmatprep.subr.mxu0 0.0
  %829 = vmatpush1.xpose.msra.mxu0 0.0
  %830 = vmatprep.subr.mxu0 0.0
  %831 = vmatpush1.xpose.msra.mxu0 0.0
  %832 = vmatprep.subr.mxu0 0.0
  %833 = vmatpush1.xpose.msra.mxu0 0.0
  %834 = vmatprep.subr.mxu0 0.0
  %835 = vmatpush1.xpose.msra.mxu0 0.0
  %836 = vmatprep.subr.mxu0 0.0
  %837 = vmatpush1.xpose.msra.mxu0 0.0
  %838 = vmatprep.subr.mxu0 0.0
  %839 = vmatpush1.xpose.msra.mxu0 0.0
  %840 = vmatprep.subr.mxu0 0.0
  %841 = vmatpush1.xpose.msra.mxu0 0.0
  %842 = vmatprep.subr.mxu0 0.0
  %843 = vmatpush1.xpose.msra.mxu0 0.0
  %844 = vmatprep.subr.mxu0 0.0
  %845 = vmatpush1.xpose.msra.mxu0 0.0
  %846 = vmatprep.subr.mxu0 0.0
  %847 = vmatpush1.xpose.msra.mxu0 0.0
  %848 = vmatprep.subr.mxu0 0.0
  %849 = vmatpush1.xpose.msra.mxu0 0.0
  %850 = vmatprep.subr.mxu0 0.0
  %851 = vmatpush1.xpose.msra.mxu0 0.0
  %852 = vmatprep.subr.mxu0 0.0
  %853 = vmatpush1.xpose.msra.mxu0 0.0
  %854 = vmatprep.subr.mxu0 0.0
  %855 = vmatpush1.xpose.msra.mxu0 0.0
  %856 = vmatprep.subr.mxu0 0.0
  %857 = vmatpush1.xpose.msra.mxu0 0.0
  %858 = vmatprep.subr.mxu0 0.0
  %859 = vmatpush1.xpose.msra.mxu0 0.0
  %860 = vmatprep.subr.mxu0 0.0
  %861 = vmatpush1.xpose.msra.mxu0 0.0
  %862 = vmatprep.subr.mxu0 0.0
  %863 = vmatpush1.xpose.msra.mxu0 0.0
  %864 = vmatprep.subr.mxu0 0.0
  %865 = vmatpush1.xpose.msra.mxu0 0.0
  %866 = vmatprep.mubr.f32.mxu0 0.0
  %867 = vmatmul.mubr.f32.gmra.mrb[0].mxu0 %v766
  %v868 = vpop.f32.mrb[0].mxu0
  %v869 = vadd.f32 %v243, %v868
  %v870 = vpop.f32.mrb[0].mxu0
  %871 = vmatprep.mubr.f32.mxu0 0.0
  %872 = vmatmul.mubr.f32.gmra.mrb[0].mxu0 %v768
  %v873 = vpop.f32.mrb[0].mxu0
  %v874 = vadd.f32 %v244, %v873
  %v875 = vpop.f32.mrb[0].mxu0
  %876 = vmatprep.mubr.f32.mxu0 0.0
  %877 = vmatmul.mubr.f32.gmra.mrb[0].mxu0 %v770
  %v878 = vpop.f32.mrb[0].mxu0
  %v879 = vadd.f32 %v245, %v878
  %v880 = vpop.f32.mrb[0].mxu0
  %881 = vmatprep.mubr.f32.mxu0 0.0
  %882 = vmatmul.mubr.f32.gmra.mrb[0].mxu0 %v772
  %v883 = vpop.f32.mrb[0].mxu0
  %v884 = vadd.f32 %v246, %v883
  %v885 = vpop.f32.mrb[0].mxu0
  %886 = vmatprep.mubr.f32.mxu0 0.0
  %887 = vmatmul.mubr.f32.gmra.mrb[0].mxu0 %v774
  %v888 = vpop.f32.mrb[0].mxu0
  %v889 = vadd.f32 %v247, %v888
  %v890 = vpop.f32.mrb[0].mxu0
  %891 = vmatprep.mubr.f32.mxu0 0.0
  %892 = vmatmul.mubr.f32.gmra.mrb[0].mxu0 %v776
  %v893 = vpop.f32.mrb[0].mxu0
  %v894 = vadd.f32 %v248, %v893
  %v895 = vpop.f32.mrb[0].mxu0
  %896 = vmatprep.mubr.f32.mxu0 0.0
  %897 = vmatmul.mubr.f32.gmra.mrb[0].mxu0 %v778
  %v898 = vpop.f32.mrb[0].mxu0
  %v899 = vadd.f32 %v249, %v898
  %v900 = vpop.f32.mrb[0].mxu0
  %901 = vmatprep.mubr.f32.mxu0 0.0
  %902 = vmatmul.mubr.f32.gmra.mrb[0].mxu0 %v780
  %v903 = vpop.f32.mrb[0].mxu0
  %v904 = vadd.f32 %v250, %v903
  %v905 = vpop.f32.mrb[0].mxu0
  %906 = vmatprep.mubr.f32.mxu0 0.0
  %907 = vmatmul.mubr.f32.gmra.mrb[0].mxu0 %v782
  %v908 = vpop.f32.mrb[0].mxu0
  %v909 = vadd.f32 %v251, %v908
  %v910 = vpop.f32.mrb[0].mxu0
  %911 = vdwg.mxu0
  %v912 = vsel %vm439, %v869, -inf
  %913 = vmax.xlane.f32.xlu0 %v912
  %v914 = vpop.xlane.xlu0 %913
  %v915 = vsel %vm439, %v874, -inf
  %916 = vmax.xlane.f32.xlu0 %v915
  %v917 = vpop.xlane.xlu0 %916
  %v918 = vsel %vm439, %v879, -inf
  %919 = vmax.xlane.f32.xlu0 %v918
  %v920 = vpop.xlane.xlu0 %919
  %v921 = vsel %vm439, %v884, -inf
  %922 = vmax.xlane.f32.xlu0 %v921
  %v923 = vpop.xlane.xlu0 %922
  %v924 = vsel %vm439, %v889, -inf
  %925 = vmax.xlane.f32.xlu0 %v924
  %v926 = vpop.xlane.xlu0 %925
  %v927 = vsel %vm439, %v894, -inf
  %928 = vmax.xlane.f32.xlu0 %v927
  %v929 = vpop.xlane.xlu0 %928
  %v930 = vsel %vm439, %v899, -inf
  %931 = vmax.xlane.f32.xlu0 %v930
  %v932 = vpop.xlane.xlu0 %931
  %v933 = vsel %vm439, %v904, -inf
  %934 = vmax.xlane.f32.xlu0 %v933
  %v935 = vpop.xlane.xlu0 %934
  %v936 = vsel %vm439, %v909, -inf
  %937 = vmax.xlane.f32.xlu0 %v936
  %v938 = vpop.xlane.xlu0 %937
  %v939 = vsub.f32 %v869, %v914
  %v940 = vsub.f32 %v874, %v917
  %v941 = vsub.f32 %v879, %v920
  %v942 = vsub.f32 %v884, %v923
  %v943 = vsub.f32 %v889, %v926
  %v944 = vsub.f32 %v894, %v929
  %v945 = vsub.f32 %v899, %v932
  %v946 = vsub.f32 %v904, %v935
  %v947 = vsub.f32 %v909, %v938
  %v948 = vmul.f32 %v939, 1.442695
  %v949 = vpow.pop %v948
  %v950 = vmul.f32 %v940, 1.442695
  %v951 = vpow.pop %v950
  %v952 = vmul.f32 %v941, 1.442695
  %v953 = vpow.pop %v952
  %v954 = vmul.f32 %v942, 1.442695
  %v955 = vpow.pop %v954
  %v956 = vmul.f32 %v943, 1.442695
  %v957 = vpow.pop %v956
  %v958 = vmul.f32 %v944, 1.442695
  %v959 = vpow.pop %v958
  %v960 = vmul.f32 %v945, 1.442695
  %v961 = vpow.pop %v960
  %v962 = vmul.f32 %v946, 1.442695
  %v963 = vpow.pop %v962
  %v964 = vmul.f32 %v947, 1.442695
  %v965 = vpow.pop %v964
  %v966 = vsel %vm439, %v949, 0.0
  %967 = vadd.xlane.f32.xlu0 %v966
  %v968 = vpop.xlane.xlu0 %967
  %v969 = vsel %vm439, %v951, 0.0
  %970 = vadd.xlane.f32.xlu0 %v969
  %v971 = vpop.xlane.xlu0 %970
  %v972 = vsel %vm439, %v953, 0.0
  %973 = vadd.xlane.f32.xlu0 %v972
  %v974 = vpop.xlane.xlu0 %973
  %v975 = vsel %vm439, %v955, 0.0
  %976 = vadd.xlane.f32.xlu0 %v975
  %v977 = vpop.xlane.xlu0 %976
  %v978 = vsel %vm439, %v957, 0.0
  %979 = vadd.xlane.f32.xlu0 %v978
  %v980 = vpop.xlane.xlu0 %979
  %v981 = vsel %vm439, %v959, 0.0
  %982 = vadd.xlane.f32.xlu0 %v981
  %v983 = vpop.xlane.xlu0 %982
  %v984 = vsel %vm439, %v961, 0.0
  %985 = vadd.xlane.f32.xlu0 %v984
  %v986 = vpop.xlane.xlu0 %985
  %v987 = vsel %vm439, %v963, 0.0
  %988 = vadd.xlane.f32.xlu0 %v987
  %v989 = vpop.xlane.xlu0 %988
  %v990 = vsel %vm439, %v965, 0.0
  %991 = vadd.xlane.f32.xlu0 %v990
  %v992 = vpop.xlane.xlu0 %991
  %v993 = vrcp.pop %v968
  %v994 = vrcp.pop %v971
  %v995 = vrcp.pop %v974
  %v996 = vrcp.pop %v977
  %v997 = vrcp.pop %v980
  %v998 = vrcp.pop %v983
  %v999 = vrcp.pop %v986
  %v1000 = vrcp.pop %v989
  %v1001 = vrcp.pop %v992
  %v1002 = vmul.f32 %v968, %v993
  %v1003 = vmul.f32 %v971, %v994
  %v1004 = vmul.f32 %v974, %v995
  %v1005 = vmul.f32 %v977, %v996
  %v1006 = vmul.f32 %v980, %v997
  %v1007 = vmul.f32 %v983, %v998
  %v1008 = vmul.f32 %v986, %v999
  %v1009 = vmul.f32 %v989, %v1000
  %v1010 = vmul.f32 %v992, %v1001
  %v1011 = vsub.f32 2.0, %v1002
  %v1012 = vsub.f32 2.0, %v1003
  %v1013 = vsub.f32 2.0, %v1004
  %v1014 = vsub.f32 2.0, %v1005
  %v1015 = vsub.f32 2.0, %v1006
  %v1016 = vsub.f32 2.0, %v1007
  %v1017 = vsub.f32 2.0, %v1008
  %v1018 = vsub.f32 2.0, %v1009
  %v1019 = vsub.f32 2.0, %v1010
  %v1020 = vmul.f32 %v993, %v1011
  %v1021 = vmul.f32 %v994, %v1012
  %v1022 = vmul.f32 %v995, %v1013
  %v1023 = vmul.f32 %v996, %v1014
  %v1024 = vmul.f32 %v997, %v1015
  %v1025 = vmul.f32 %v998, %v1016
  %v1026 = vmul.f32 %v999, %v1017
  %v1027 = vmul.f32 %v1000, %v1018
  %v1028 = vmul.f32 %v1001, %v1019
  %1029 = vrot.lane.b32.xlu0 %v141, 60
  %v1030 = vpop.permute.xlu0 %1029
  %1031 = vrot.lane.b32.xlu0 %v146, 60
  %v1032 = vpop.permute.xlu0 %1031
  %1033 = vrot.lane.b32.xlu0 %v151, 60
  %v1034 = vpop.permute.xlu0 %1033
  %1035 = vrot.lane.b32.xlu0 %v156, 60
  %v1036 = vpop.permute.xlu0 %1035
  %1037 = vrot.lane.b32.xlu0 %v161, 60
  %v1038 = vpop.permute.xlu0 %1037
  %1039 = vrot.lane.b32.xlu0 %v166, 60
  %v1040 = vpop.permute.xlu0 %1039
  %1041 = vrot.lane.b32.xlu0 %v171, 60
  %v1042 = vpop.permute.xlu0 %1041
  %1043 = vrot.lane.b32.xlu0 %v176, 60
  %v1044 = vpop.permute.xlu0 %1043
  %1045 = vrot.lane.b32.xlu0 %v181, 60
  %v1046 = vpop.permute.xlu0 %1045
  %v1057 = vsel %vm439, %v949, 0
  %v1060 = vsel %vm439, %v951, 0
  %v1063 = vsel %vm439, %v953, 0
  %v1066 = vsel %vm439, %v955, 0
  %v1069 = vsel %vm439, %v957, 0
  %v1072 = vsel %vm439, %v959, 0
  %v1075 = vsel %vm439, %v961, 0
  %v1078 = vsel %vm439, %v963, 0
  %v1081 = vsel %vm439, %v965, 0
  %1083 = vmatprep.subr.mxu0 0.0
  %1084 = vmatpush1.msra.mxu0 %v1030
  %1085 = vmatprep.subr.mxu0 0.0
  %1086 = vmatpush1.msra.mxu0 %v1032
  %1087 = vmatprep.subr.mxu0 0.0
  %1088 = vmatpush1.msra.mxu0 %v1034
  %1089 = vmatprep.subr.mxu0 0.0
  %1090 = vmatpush1.msra.mxu0 %v1036
  %1091 = vmatprep.subr.mxu0 0.0
  %1092 = vmatpush1.msra.mxu0 %v1038
  %1093 = vmatprep.subr.mxu0 0.0
  %1094 = vmatpush1.msra.mxu0 %v1040
  %1095 = vmatprep.subr.mxu0 0.0
  %1096 = vmatpush1.msra.mxu0 %v1042
  %1097 = vmatprep.subr.mxu0 0.0
  %1098 = vmatpush1.msra.mxu0 %v1044
  %1099 = vmatprep.subr.mxu0 0.0
  %1100 = vmatpush1.msra.mxu0 %v1046
  %1101 = vmatprep.subr.mxu0 0.0
  %1102 = vmatpush1.msra.mxu0 0.0
  %1103 = vmatprep.subr.mxu0 0.0
  %1104 = vmatpush1.msra.mxu0 0.0
  %1105 = vmatprep.subr.mxu0 0.0
  %1106 = vmatpush1.msra.mxu0 0.0
  %1107 = vmatprep.subr.mxu0 0.0
  %1108 = vmatpush1.msra.mxu0 0.0
  %1109 = vmatprep.subr.mxu0 0.0
  %1110 = vmatpush1.msra.mxu0 0.0
  %1111 = vmatprep.subr.mxu0 0.0
  %1112 = vmatpush1.msra.mxu0 0.0
  %1113 = vmatprep.subr.mxu0 0.0
  %1114 = vmatpush1.msra.mxu0 0.0
  %1115 = vmatprep.subr.mxu0 0.0
  %1116 = vmatpush1.msra.mxu0 0.0
  %1117 = vmatprep.subr.mxu0 0.0
  %1118 = vmatpush1.msra.mxu0 0.0
  %1119 = vmatprep.subr.mxu0 0.0
  %1120 = vmatpush1.msra.mxu0 0.0
  %1121 = vmatprep.subr.mxu0 0.0
  %1122 = vmatpush1.msra.mxu0 0.0
  %1123 = vmatprep.subr.mxu0 0.0
  %1124 = vmatpush1.msra.mxu0 0.0
  %1125 = vmatprep.subr.mxu0 0.0
  %1126 = vmatpush1.msra.mxu0 0.0
  %1127 = vmatprep.subr.mxu0 0.0
  %1128 = vmatpush1.msra.mxu0 0.0
  %1129 = vmatprep.subr.mxu0 0.0
  %1130 = vmatpush1.msra.mxu0 0.0
  %1131 = vmatprep.subr.mxu0 0.0
  %1132 = vmatpush1.msra.mxu0 0.0
  %1133 = vmatprep.subr.mxu0 0.0
  %1134 = vmatpush1.msra.mxu0 0.0
  %1135 = vmatprep.subr.mxu0 0.0
  %1136 = vmatpush1.msra.mxu0 0.0
  %1137 = vmatprep.subr.mxu0 0.0
  %1138 = vmatpush1.msra.mxu0 0.0
  %1139 = vmatprep.subr.mxu0 0.0
  %1140 = vmatpush1.msra.mxu0 0.0
  %1141 = vmatprep.subr.mxu0 0.0
  %1142 = vmatpush1.msra.mxu0 0.0
  %1143 = vmatprep.subr.mxu0 0.0
  %1144 = vmatpush1.msra.mxu0 0.0
  %1145 = vmatprep.subr.mxu0 0.0
  %1146 = vmatpush1.msra.mxu0 0.0
  %1147 = vmatprep.mubr.f32.mxu0 0.0
  %1148 = vmatmul.mubr.f32.gmra.mrb[0].mxu0 %v1057
  %v1149 = vpop.f32.mrb[0].mxu0
  %v1150 = vadd.f32 0.0, %v1149
  %v1151 = vpop.f32.mrb[0].mxu0
  %1152 = vmatprep.mubr.f32.mxu0 0.0
  %1153 = vmatmul.mubr.f32.gmra.mrb[0].mxu0 %v1060
  %v1154 = vpop.f32.mrb[0].mxu0
  %v1155 = vadd.f32 0.0, %v1154
  %v1156 = vpop.f32.mrb[0].mxu0
  %1157 = vmatprep.mubr.f32.mxu0 0.0
  %1158 = vmatmul.mubr.f32.gmra.mrb[0].mxu0 %v1063
  %v1159 = vpop.f32.mrb[0].mxu0
  %v1160 = vadd.f32 0.0, %v1159
  %v1161 = vpop.f32.mrb[0].mxu0
  %1162 = vmatprep.mubr.f32.mxu0 0.0
  %1163 = vmatmul.mubr.f32.gmra.mrb[0].mxu0 %v1066
  %v1164 = vpop.f32.mrb[0].mxu0
  %v1165 = vadd.f32 0.0, %v1164
  %v1166 = vpop.f32.mrb[0].mxu0
  %1167 = vmatprep.mubr.f32.mxu0 0.0
  %1168 = vmatmul.mubr.f32.gmra.mrb[0].mxu0 %v1069
  %v1169 = vpop.f32.mrb[0].mxu0
  %v1170 = vadd.f32 0.0, %v1169
  %v1171 = vpop.f32.mrb[0].mxu0
  %1172 = vmatprep.mubr.f32.mxu0 0.0
  %1173 = vmatmul.mubr.f32.gmra.mrb[0].mxu0 %v1072
  %v1174 = vpop.f32.mrb[0].mxu0
  %v1175 = vadd.f32 0.0, %v1174
  %v1176 = vpop.f32.mrb[0].mxu0
  %1177 = vmatprep.mubr.f32.mxu0 0.0
  %1178 = vmatmul.mubr.f32.gmra.mrb[0].mxu0 %v1075
  %v1179 = vpop.f32.mrb[0].mxu0
  %v1180 = vadd.f32 0.0, %v1179
  %v1181 = vpop.f32.mrb[0].mxu0
  %1182 = vmatprep.mubr.f32.mxu0 0.0
  %1183 = vmatmul.mubr.f32.gmra.mrb[0].mxu0 %v1078
  %v1184 = vpop.f32.mrb[0].mxu0
  %v1185 = vadd.f32 0.0, %v1184
  %v1186 = vpop.f32.mrb[0].mxu0
  %1187 = vmatprep.mubr.f32.mxu0 0.0
  %1188 = vmatmul.mubr.f32.gmra.mrb[0].mxu0 %v1081
  %v1189 = vpop.f32.mrb[0].mxu0
  %v1190 = vadd.f32 0.0, %v1189
  %v1191 = vpop.f32.mrb[0].mxu0
  %1192 = vdwg.mxu0
  %v1193 = vmul.f32 %v1150, %v1020
  %v1194 = vmul.f32 %v1155, %v1021
  %v1195 = vmul.f32 %v1160, %v1022
  %v1196 = vmul.f32 %v1165, %v1023
  %v1197 = vmul.f32 %v1170, %v1024
  %v1198 = vmul.f32 %v1175, %v1025
  %v1199 = vmul.f32 %v1180, %v1026
  %v1200 = vmul.f32 %v1185, %v1027
  %v1201 = vmul.f32 %v1190, %v1028
  %v1203 = vrot.slane %v252, 4
  %v1205 = vsel %vm283, %v1193, 0
  %v1208 = vsel %vm283, %v1194, 0
  %v1211 = vsel %vm283, %v1195, 0
  %v1214 = vsel %vm283, %v1196, 0
  %v1217 = vsel %vm283, %v1197, 0
  %v1220 = vsel %vm283, %v1198, 0
  %v1223 = vsel %vm283, %v1199, 0
  %v1226 = vsel %vm283, %v1200, 0
  %v1229 = vsel %vm283, %v1201, 0
  %vm1231 = vcmask 1043456
  %v1232 = vsel %vm1231, %v1203, 0
  %1234 = vmatprep.subr.mxu0 0.0
  %1235 = vmatpush1.msra.mxu0 %v1232
  %1236 = vmatprep.subr.mxu0 0.0
  %1237 = vmatpush1.msra.mxu0 0.0
  %1238 = vmatprep.subr.mxu0 0.0
  %1239 = vmatpush1.msra.mxu0 0.0
  %1240 = vmatprep.subr.mxu0 0.0
  %1241 = vmatpush1.msra.mxu0 0.0
  %1242 = vmatprep.subr.mxu0 0.0
  %1243 = vmatpush1.msra.mxu0 0.0
  %1244 = vmatprep.subr.mxu0 0.0
  %1245 = vmatpush1.msra.mxu0 0.0
  %1246 = vmatprep.subr.mxu0 0.0
  %1247 = vmatpush1.msra.mxu0 0.0
  %1248 = vmatprep.subr.mxu0 0.0
  %1249 = vmatpush1.msra.mxu0 0.0
  %1250 = vmatprep.subr.mxu0 0.0
  %1251 = vmatpush1.msra.mxu0 0.0
  %1252 = vmatprep.subr.mxu0 0.0
  %1253 = vmatpush1.msra.mxu0 0.0
  %1254 = vmatprep.subr.mxu0 0.0
  %1255 = vmatpush1.msra.mxu0 0.0
  %1256 = vmatprep.subr.mxu0 0.0
  %1257 = vmatpush1.msra.mxu0 0.0
  %1258 = vmatprep.subr.mxu0 0.0
  %1259 = vmatpush1.msra.mxu0 0.0
  %1260 = vmatprep.subr.mxu0 0.0
  %1261 = vmatpush1.msra.mxu0 0.0
  %1262 = vmatprep.subr.mxu0 0.0
  %1263 = vmatpush1.msra.mxu0 0.0
  %1264 = vmatprep.subr.mxu0 0.0
  %1265 = vmatpush1.msra.mxu0 0.0
  %1266 = vmatprep.subr.mxu0 0.0
  %1267 = vmatpush1.msra.mxu0 0.0
  %1268 = vmatprep.subr.mxu0 0.0
  %1269 = vmatpush1.msra.mxu0 0.0
  %1270 = vmatprep.subr.mxu0 0.0
  %1271 = vmatpush1.msra.mxu0 0.0
  %1272 = vmatprep.subr.mxu0 0.0
  %1273 = vmatpush1.msra.mxu0 0.0
  %1274 = vmatprep.subr.mxu0 0.0
  %1275 = vmatpush1.msra.mxu0 0.0
  %1276 = vmatprep.subr.mxu0 0.0
  %1277 = vmatpush1.msra.mxu0 0.0
  %1278 = vmatprep.subr.mxu0 0.0
  %1279 = vmatpush1.msra.mxu0 0.0
  %1280 = vmatprep.subr.mxu0 0.0
  %1281 = vmatpush1.msra.mxu0 0.0
  %1282 = vmatprep.subr.mxu0 0.0
  %1283 = vmatpush1.msra.mxu0 0.0
  %1284 = vmatprep.subr.mxu0 0.0
  %1285 = vmatpush1.msra.mxu0 0.0
  %1286 = vmatprep.subr.mxu0 0.0
  %1287 = vmatpush1.msra.mxu0 0.0
  %1288 = vmatprep.subr.mxu0 0.0
  %1289 = vmatpush1.msra.mxu0 0.0
  %1290 = vmatprep.subr.mxu0 0.0
  %1291 = vmatpush1.msra.mxu0 0.0
  %1292 = vmatprep.subr.mxu0 0.0
  %1293 = vmatpush1.msra.mxu0 0.0
  %1294 = vmatprep.subr.mxu0 0.0
  %1295 = vmatpush1.msra.mxu0 0.0
  %1296 = vmatprep.subr.mxu0 0.0
  %1297 = vmatpush1.msra.mxu0 0.0
  %1298 = vmatprep.mubr.f32.mxu0 0.0
  %1299 = vmatmul.mubr.f32.gmra.mrb[0].mxu0 %v1205
  %v1300 = vpop.f32.mrb[0].mxu0
  %v1301 = vadd.f32 0.0, %v1300
  %v1302 = vpop.f32.mrb[0].mxu0
  %1303 = vmatprep.mubr.f32.mxu0 0.0
  %1304 = vmatmul.mubr.f32.gmra.mrb[0].mxu0 %v1208
  %v1305 = vpop.f32.mrb[0].mxu0
  %v1306 = vadd.f32 0.0, %v1305
  %v1307 = vpop.f32.mrb[0].mxu0
  %1308 = vmatprep.mubr.f32.mxu0 0.0
  %1309 = vmatmul.mubr.f32.gmra.mrb[0].mxu0 %v1211
  %v1310 = vpop.f32.mrb[0].mxu0
  %v1311 = vadd.f32 0.0, %v1310
  %v1312 = vpop.f32.mrb[0].mxu0
  %1313 = vmatprep.mubr.f32.mxu0 0.0
  %1314 = vmatmul.mubr.f32.gmra.mrb[0].mxu0 %v1214
  %v1315 = vpop.f32.mrb[0].mxu0
  %v1316 = vadd.f32 0.0, %v1315
  %v1317 = vpop.f32.mrb[0].mxu0
  %1318 = vmatprep.mubr.f32.mxu0 0.0
  %1319 = vmatmul.mubr.f32.gmra.mrb[0].mxu0 %v1217
  %v1320 = vpop.f32.mrb[0].mxu0
  %v1321 = vadd.f32 0.0, %v1320
  %v1322 = vpop.f32.mrb[0].mxu0
  %1323 = vmatprep.mubr.f32.mxu0 0.0
  %1324 = vmatmul.mubr.f32.gmra.mrb[0].mxu0 %v1220
  %v1325 = vpop.f32.mrb[0].mxu0
  %v1326 = vadd.f32 0.0, %v1325
  %v1327 = vpop.f32.mrb[0].mxu0
  %1328 = vmatprep.mubr.f32.mxu0 0.0
  %1329 = vmatmul.mubr.f32.gmra.mrb[0].mxu0 %v1223
  %v1330 = vpop.f32.mrb[0].mxu0
  %v1331 = vadd.f32 0.0, %v1330
  %v1332 = vpop.f32.mrb[0].mxu0
  %1333 = vmatprep.mubr.f32.mxu0 0.0
  %1334 = vmatmul.mubr.f32.gmra.mrb[0].mxu0 %v1226
  %v1335 = vpop.f32.mrb[0].mxu0
  %v1336 = vadd.f32 0.0, %v1335
  %v1337 = vpop.f32.mrb[0].mxu0
  %1338 = vmatprep.mubr.f32.mxu0 0.0
  %1339 = vmatmul.mubr.f32.gmra.mrb[0].mxu0 %v1229
  %v1340 = vpop.f32.mrb[0].mxu0
  %v1341 = vadd.f32 0.0, %v1340
  %v1342 = vpop.f32.mrb[0].mxu0
  %1343 = vdwg.mxu0
  %v1345 = vsel %vm283, %v721, 0
  %v1348 = vsel %vm283, %v722, 0
  %v1351 = vsel %vm283, %v723, 0
  %v1354 = vsel %vm283, %v724, 0
  %v1357 = vsel %vm283, %v725, 0
  %v1360 = vsel %vm283, %v726, 0
  %v1363 = vsel %vm283, %v727, 0
  %v1366 = vsel %vm283, %v728, 0
  %v1369 = vsel %vm283, %v729, 0
  %v1371 = vsel %vm1231, %v252, 0
  %1373 = vmatprep.subr.mxu0 0.0
  %1374 = vmatpush1.msra.mxu0 %v1371
  %1375 = vmatprep.subr.mxu0 0.0
  %1376 = vmatpush1.msra.mxu0 0.0
  %1377 = vmatprep.subr.mxu0 0.0
  %1378 = vmatpush1.msra.mxu0 0.0
  %1379 = vmatprep.subr.mxu0 0.0
  %1380 = vmatpush1.msra.mxu0 0.0
  %1381 = vmatprep.subr.mxu0 0.0
  %1382 = vmatpush1.msra.mxu0 0.0
  %1383 = vmatprep.subr.mxu0 0.0
  %1384 = vmatpush1.msra.mxu0 0.0
  %1385 = vmatprep.subr.mxu0 0.0
  %1386 = vmatpush1.msra.mxu0 0.0
  %1387 = vmatprep.subr.mxu0 0.0
  %1388 = vmatpush1.msra.mxu0 0.0
  %1389 = vmatprep.subr.mxu0 0.0
  %1390 = vmatpush1.msra.mxu0 0.0
  %1391 = vmatprep.subr.mxu0 0.0
  %1392 = vmatpush1.msra.mxu0 0.0
  %1393 = vmatprep.subr.mxu0 0.0
  %1394 = vmatpush1.msra.mxu0 0.0
  %1395 = vmatprep.subr.mxu0 0.0
  %1396 = vmatpush1.msra.mxu0 0.0
  %1397 = vmatprep.subr.mxu0 0.0
  %1398 = vmatpush1.msra.mxu0 0.0
  %1399 = vmatprep.subr.mxu0 0.0
  %1400 = vmatpush1.msra.mxu0 0.0
  %1401 = vmatprep.subr.mxu0 0.0
  %1402 = vmatpush1.msra.mxu0 0.0
  %1403 = vmatprep.subr.mxu0 0.0
  %1404 = vmatpush1.msra.mxu0 0.0
  %1405 = vmatprep.subr.mxu0 0.0
  %1406 = vmatpush1.msra.mxu0 0.0
  %1407 = vmatprep.subr.mxu0 0.0
  %1408 = vmatpush1.msra.mxu0 0.0
  %1409 = vmatprep.subr.mxu0 0.0
  %1410 = vmatpush1.msra.mxu0 0.0
  %1411 = vmatprep.subr.mxu0 0.0
  %1412 = vmatpush1.msra.mxu0 0.0
  %1413 = vmatprep.subr.mxu0 0.0
  %1414 = vmatpush1.msra.mxu0 0.0
  %1415 = vmatprep.subr.mxu0 0.0
  %1416 = vmatpush1.msra.mxu0 0.0
  %1417 = vmatprep.subr.mxu0 0.0
  %1418 = vmatpush1.msra.mxu0 0.0
  %1419 = vmatprep.subr.mxu0 0.0
  %1420 = vmatpush1.msra.mxu0 0.0
  %1421 = vmatprep.subr.mxu0 0.0
  %1422 = vmatpush1.msra.mxu0 0.0
  %1423 = vmatprep.subr.mxu0 0.0
  %1424 = vmatpush1.msra.mxu0 0.0
  %1425 = vmatprep.subr.mxu0 0.0
  %1426 = vmatpush1.msra.mxu0 0.0
  %1427 = vmatprep.subr.mxu0 0.0
  %1428 = vmatpush1.msra.mxu0 0.0
  %1429 = vmatprep.subr.mxu0 0.0
  %1430 = vmatpush1.msra.mxu0 0.0
  %1431 = vmatprep.subr.mxu0 0.0
  %1432 = vmatpush1.msra.mxu0 0.0
  %1433 = vmatprep.subr.mxu0 0.0
  %1434 = vmatpush1.msra.mxu0 0.0
  %1435 = vmatprep.subr.mxu0 0.0
  %1436 = vmatpush1.msra.mxu0 0.0
  %1437 = vmatprep.mubr.f32.mxu0 0.0
  %1438 = vmatmul.mubr.f32.gmra.mrb[0].mxu0 %v1345
  %v1439 = vpop.f32.mrb[0].mxu0
  %v1440 = vadd.f32 %v1301, %v1439
  %v1441 = vpop.f32.mrb[0].mxu0
  %1442 = vmatprep.mubr.f32.mxu0 0.0
  %1443 = vmatmul.mubr.f32.gmra.mrb[0].mxu0 %v1348
  %v1444 = vpop.f32.mrb[0].mxu0
  %v1445 = vadd.f32 %v1306, %v1444
  %v1446 = vpop.f32.mrb[0].mxu0
  %1447 = vmatprep.mubr.f32.mxu0 0.0
  %1448 = vmatmul.mubr.f32.gmra.mrb[0].mxu0 %v1351
  %v1449 = vpop.f32.mrb[0].mxu0
  %v1450 = vadd.f32 %v1311, %v1449
  %v1451 = vpop.f32.mrb[0].mxu0
  %1452 = vmatprep.mubr.f32.mxu0 0.0
  %1453 = vmatmul.mubr.f32.gmra.mrb[0].mxu0 %v1354
  %v1454 = vpop.f32.mrb[0].mxu0
  %v1455 = vadd.f32 %v1316, %v1454
  %v1456 = vpop.f32.mrb[0].mxu0
  %1457 = vmatprep.mubr.f32.mxu0 0.0
  %1458 = vmatmul.mubr.f32.gmra.mrb[0].mxu0 %v1357
  %v1459 = vpop.f32.mrb[0].mxu0
  %v1460 = vadd.f32 %v1321, %v1459
  %v1461 = vpop.f32.mrb[0].mxu0
  %1462 = vmatprep.mubr.f32.mxu0 0.0
  %1463 = vmatmul.mubr.f32.gmra.mrb[0].mxu0 %v1360
  %v1464 = vpop.f32.mrb[0].mxu0
  %v1465 = vadd.f32 %v1326, %v1464
  %v1466 = vpop.f32.mrb[0].mxu0
  %1467 = vmatprep.mubr.f32.mxu0 0.0
  %1468 = vmatmul.mubr.f32.gmra.mrb[0].mxu0 %v1363
  %v1469 = vpop.f32.mrb[0].mxu0
  %v1470 = vadd.f32 %v1331, %v1469
  %v1471 = vpop.f32.mrb[0].mxu0
  %1472 = vmatprep.mubr.f32.mxu0 0.0
  %1473 = vmatmul.mubr.f32.gmra.mrb[0].mxu0 %v1366
  %v1474 = vpop.f32.mrb[0].mxu0
  %v1475 = vadd.f32 %v1336, %v1474
  %v1476 = vpop.f32.mrb[0].mxu0
  %1477 = vmatprep.mubr.f32.mxu0 0.0
  %1478 = vmatmul.mubr.f32.gmra.mrb[0].mxu0 %v1369
  %v1479 = vpop.f32.mrb[0].mxu0
  %v1480 = vadd.f32 %v1341, %v1479
  %v1481 = vpop.f32.mrb[0].mxu0
  %1482 = vdwg.mxu0
  %1483 = vrot.lane.b32.xlu0 %v184, 120
  %v1484 = vpop.permute.xlu0 %1483
  %1485 = vrot.lane.b32.xlu0 %v185, 120
  %v1486 = vpop.permute.xlu0 %1485
  %1487 = vrot.lane.b32.xlu0 %v186, 120
  %v1488 = vpop.permute.xlu0 %1487
  %1489 = vrot.lane.b32.xlu0 %v187, 120
  %v1490 = vpop.permute.xlu0 %1489
  %1491 = vrot.lane.b32.xlu0 %v188, 120
  %v1492 = vpop.permute.xlu0 %1491
  %1493 = vrot.lane.b32.xlu0 %v189, 120
  %v1494 = vpop.permute.xlu0 %1493
  %1495 = vrot.lane.b32.xlu0 %v190, 120
  %v1496 = vpop.permute.xlu0 %1495
  %1497 = vrot.lane.b32.xlu0 %v191, 120
  %v1498 = vpop.permute.xlu0 %1497
  %1499 = vrot.lane.b32.xlu0 %v192, 120
  %v1500 = vpop.permute.xlu0 %1499
  %1501 = vrot.lane.b32.xlu0 %v141, 88
  %v1502 = vpop.permute.xlu0 %1501
  %1503 = vrot.lane.b32.xlu0 %v146, 88
  %v1504 = vpop.permute.xlu0 %1503
  %1505 = vrot.lane.b32.xlu0 %v151, 88
  %v1506 = vpop.permute.xlu0 %1505
  %1507 = vrot.lane.b32.xlu0 %v156, 88
  %v1508 = vpop.permute.xlu0 %1507
  %1509 = vrot.lane.b32.xlu0 %v161, 88
  %v1510 = vpop.permute.xlu0 %1509
  %1511 = vrot.lane.b32.xlu0 %v166, 88
  %v1512 = vpop.permute.xlu0 %1511
  %1513 = vrot.lane.b32.xlu0 %v171, 88
  %v1514 = vpop.permute.xlu0 %1513
  %1515 = vrot.lane.b32.xlu0 %v176, 88
  %v1516 = vpop.permute.xlu0 %1515
  %1517 = vrot.lane.b32.xlu0 %v181, 88
  %v1518 = vpop.permute.xlu0 %1517
  %v1519 = vsel %vm283, %v1484, 0
  %v1521 = vsel %vm283, %v1486, 0
  %v1523 = vsel %vm283, %v1488, 0
  %v1525 = vsel %vm283, %v1490, 0
  %v1527 = vsel %vm283, %v1492, 0
  %v1529 = vsel %vm283, %v1494, 0
  %v1531 = vsel %vm283, %v1496, 0
  %v1533 = vsel %vm283, %v1498, 0
  %v1535 = vsel %vm283, %v1500, 0
  %v1537 = vsel %vm283, %v1502, 0
  %v1539 = vsel %vm283, %v1504, 0
  %v1541 = vsel %vm283, %v1506, 0
  %v1543 = vsel %vm283, %v1508, 0
  %v1545 = vsel %vm283, %v1510, 0
  %v1547 = vsel %vm283, %v1512, 0
  %v1549 = vsel %vm283, %v1514, 0
  %v1551 = vsel %vm283, %v1516, 0
  %v1553 = vsel %vm283, %v1518, 0
  %1555 = vmatprep.subr.mxu0 0.0
  %1556 = vmatpush1.xpose.msra.mxu0 %v1537
  %1557 = vmatprep.subr.mxu0 0.0
  %1558 = vmatpush1.xpose.msra.mxu0 %v1539
  %1559 = vmatprep.subr.mxu0 0.0
  %1560 = vmatpush1.xpose.msra.mxu0 %v1541
  %1561 = vmatprep.subr.mxu0 0.0
  %1562 = vmatpush1.xpose.msra.mxu0 %v1543
  %1563 = vmatprep.subr.mxu0 0.0
  %1564 = vmatpush1.xpose.msra.mxu0 %v1545
  %1565 = vmatprep.subr.mxu0 0.0
  %1566 = vmatpush1.xpose.msra.mxu0 %v1547
  %1567 = vmatprep.subr.mxu0 0.0
  %1568 = vmatpush1.xpose.msra.mxu0 %v1549
  %1569 = vmatprep.subr.mxu0 0.0
  %1570 = vmatpush1.xpose.msra.mxu0 %v1551
  %1571 = vmatprep.subr.mxu0 0.0
  %1572 = vmatpush1.xpose.msra.mxu0 %v1553
  %1573 = vmatprep.subr.mxu0 0.0
  %1574 = vmatpush1.xpose.msra.mxu0 0.0
  %1575 = vmatprep.subr.mxu0 0.0
  %1576 = vmatpush1.xpose.msra.mxu0 0.0
  %1577 = vmatprep.subr.mxu0 0.0
  %1578 = vmatpush1.xpose.msra.mxu0 0.0
  %1579 = vmatprep.subr.mxu0 0.0
  %1580 = vmatpush1.xpose.msra.mxu0 0.0
  %1581 = vmatprep.subr.mxu0 0.0
  %1582 = vmatpush1.xpose.msra.mxu0 0.0
  %1583 = vmatprep.subr.mxu0 0.0
  %1584 = vmatpush1.xpose.msra.mxu0 0.0
  %1585 = vmatprep.subr.mxu0 0.0
  %1586 = vmatpush1.xpose.msra.mxu0 0.0
  %1587 = vmatprep.subr.mxu0 0.0
  %1588 = vmatpush1.xpose.msra.mxu0 0.0
  %1589 = vmatprep.subr.mxu0 0.0
  %1590 = vmatpush1.xpose.msra.mxu0 0.0
  %1591 = vmatprep.subr.mxu0 0.0
  %1592 = vmatpush1.xpose.msra.mxu0 0.0
  %1593 = vmatprep.subr.mxu0 0.0
  %1594 = vmatpush1.xpose.msra.mxu0 0.0
  %1595 = vmatprep.subr.mxu0 0.0
  %1596 = vmatpush1.xpose.msra.mxu0 0.0
  %1597 = vmatprep.subr.mxu0 0.0
  %1598 = vmatpush1.xpose.msra.mxu0 0.0
  %1599 = vmatprep.subr.mxu0 0.0
  %1600 = vmatpush1.xpose.msra.mxu0 0.0
  %1601 = vmatprep.subr.mxu0 0.0
  %1602 = vmatpush1.xpose.msra.mxu0 0.0
  %1603 = vmatprep.subr.mxu0 0.0
  %1604 = vmatpush1.xpose.msra.mxu0 0.0
  %1605 = vmatprep.subr.mxu0 0.0
  %1606 = vmatpush1.xpose.msra.mxu0 0.0
  %1607 = vmatprep.subr.mxu0 0.0
  %1608 = vmatpush1.xpose.msra.mxu0 0.0
  %1609 = vmatprep.subr.mxu0 0.0
  %1610 = vmatpush1.xpose.msra.mxu0 0.0
  %1611 = vmatprep.subr.mxu0 0.0
  %1612 = vmatpush1.xpose.msra.mxu0 0.0
  %1613 = vmatprep.subr.mxu0 0.0
  %1614 = vmatpush1.xpose.msra.mxu0 0.0
  %1615 = vmatprep.subr.mxu0 0.0
  %1616 = vmatpush1.xpose.msra.mxu0 0.0
  %1617 = vmatprep.subr.mxu0 0.0
  %1618 = vmatpush1.xpose.msra.mxu0 0.0
  %1619 = vmatprep.mubr.f32.mxu0 0.0
  %1620 = vmatmul.mubr.f32.gmra.mrb[0].mxu0 %v1519
  %v1621 = vpop.f32.mrb[0].mxu0
  %v1622 = vadd.f32 %v243, %v1621
  %v1623 = vpop.f32.mrb[0].mxu0
  %1624 = vmatprep.mubr.f32.mxu0 0.0
  %1625 = vmatmul.mubr.f32.gmra.mrb[0].mxu0 %v1521
  %v1626 = vpop.f32.mrb[0].mxu0
  %v1627 = vadd.f32 %v244, %v1626
  %v1628 = vpop.f32.mrb[0].mxu0
  %1629 = vmatprep.mubr.f32.mxu0 0.0
  %1630 = vmatmul.mubr.f32.gmra.mrb[0].mxu0 %v1523
  %v1631 = vpop.f32.mrb[0].mxu0
  %v1632 = vadd.f32 %v245, %v1631
  %v1633 = vpop.f32.mrb[0].mxu0
  %1634 = vmatprep.mubr.f32.mxu0 0.0
  %1635 = vmatmul.mubr.f32.gmra.mrb[0].mxu0 %v1525
  %v1636 = vpop.f32.mrb[0].mxu0
  %v1637 = vadd.f32 %v246, %v1636
  %v1638 = vpop.f32.mrb[0].mxu0
  %1639 = vmatprep.mubr.f32.mxu0 0.0
  %1640 = vmatmul.mubr.f32.gmra.mrb[0].mxu0 %v1527
  %v1641 = vpop.f32.mrb[0].mxu0
  %v1642 = vadd.f32 %v247, %v1641
  %v1643 = vpop.f32.mrb[0].mxu0
  %1644 = vmatprep.mubr.f32.mxu0 0.0
  %1645 = vmatmul.mubr.f32.gmra.mrb[0].mxu0 %v1529
  %v1646 = vpop.f32.mrb[0].mxu0
  %v1647 = vadd.f32 %v248, %v1646
  %v1648 = vpop.f32.mrb[0].mxu0
  %1649 = vmatprep.mubr.f32.mxu0 0.0
  %1650 = vmatmul.mubr.f32.gmra.mrb[0].mxu0 %v1531
  %v1651 = vpop.f32.mrb[0].mxu0
  %v1652 = vadd.f32 %v249, %v1651
  %v1653 = vpop.f32.mrb[0].mxu0
  %1654 = vmatprep.mubr.f32.mxu0 0.0
  %1655 = vmatmul.mubr.f32.gmra.mrb[0].mxu0 %v1533
  %v1656 = vpop.f32.mrb[0].mxu0
  %v1657 = vadd.f32 %v250, %v1656
  %v1658 = vpop.f32.mrb[0].mxu0
  %1659 = vmatprep.mubr.f32.mxu0 0.0
  %1660 = vmatmul.mubr.f32.gmra.mrb[0].mxu0 %v1535
  %v1661 = vpop.f32.mrb[0].mxu0
  %v1662 = vadd.f32 %v251, %v1661
  %v1663 = vpop.f32.mrb[0].mxu0
  %1664 = vdwg.mxu0
  %v1665 = vsel %vm439, %v1622, -inf
  %1666 = vmax.xlane.f32.xlu0 %v1665
  %v1667 = vpop.xlane.xlu0 %1666
  %v1668 = vsel %vm439, %v1627, -inf
  %1669 = vmax.xlane.f32.xlu0 %v1668
  %v1670 = vpop.xlane.xlu0 %1669
  %v1671 = vsel %vm439, %v1632, -inf
  %1672 = vmax.xlane.f32.xlu0 %v1671
  %v1673 = vpop.xlane.xlu0 %1672
  %v1674 = vsel %vm439, %v1637, -inf
  %1675 = vmax.xlane.f32.xlu0 %v1674
  %v1676 = vpop.xlane.xlu0 %1675
  %v1677 = vsel %vm439, %v1642, -inf
  %1678 = vmax.xlane.f32.xlu0 %v1677
  %v1679 = vpop.xlane.xlu0 %1678
  %v1680 = vsel %vm439, %v1647, -inf
  %1681 = vmax.xlane.f32.xlu0 %v1680
  %v1682 = vpop.xlane.xlu0 %1681
  %v1683 = vsel %vm439, %v1652, -inf
  %1684 = vmax.xlane.f32.xlu0 %v1683
  %v1685 = vpop.xlane.xlu0 %1684
  %v1686 = vsel %vm439, %v1657, -inf
  %1687 = vmax.xlane.f32.xlu0 %v1686
  %v1688 = vpop.xlane.xlu0 %1687
  %v1689 = vsel %vm439, %v1662, -inf
  %1690 = vmax.xlane.f32.xlu0 %v1689
  %v1691 = vpop.xlane.xlu0 %1690
  %v1692 = vsub.f32 %v1622, %v1667
  %v1693 = vsub.f32 %v1627, %v1670
  %v1694 = vsub.f32 %v1632, %v1673
  %v1695 = vsub.f32 %v1637, %v1676
  %v1696 = vsub.f32 %v1642, %v1679
  %v1697 = vsub.f32 %v1647, %v1682
  %v1698 = vsub.f32 %v1652, %v1685
  %v1699 = vsub.f32 %v1657, %v1688
  %v1700 = vsub.f32 %v1662, %v1691
  %v1701 = vmul.f32 %v1692, 1.442695
  %v1702 = vpow.pop %v1701
  %v1703 = vmul.f32 %v1693, 1.442695
  %v1704 = vpow.pop %v1703
  %v1705 = vmul.f32 %v1694, 1.442695
  %v1706 = vpow.pop %v1705
  %v1707 = vmul.f32 %v1695, 1.442695
  %v1708 = vpow.pop %v1707
  %v1709 = vmul.f32 %v1696, 1.442695
  %v1710 = vpow.pop %v1709
  %v1711 = vmul.f32 %v1697, 1.442695
  %v1712 = vpow.pop %v1711
  %v1713 = vmul.f32 %v1698, 1.442695
  %v1714 = vpow.pop %v1713
  %v1715 = vmul.f32 %v1699, 1.442695
  %v1716 = vpow.pop %v1715
  %v1717 = vmul.f32 %v1700, 1.442695
  %v1718 = vpow.pop %v1717
  %v1719 = vsel %vm439, %v1702, 0.0
  %1720 = vadd.xlane.f32.xlu0 %v1719
  %v1721 = vpop.xlane.xlu0 %1720
  %v1722 = vsel %vm439, %v1704, 0.0
  %1723 = vadd.xlane.f32.xlu0 %v1722
  %v1724 = vpop.xlane.xlu0 %1723
  %v1725 = vsel %vm439, %v1706, 0.0
  %1726 = vadd.xlane.f32.xlu0 %v1725
  %v1727 = vpop.xlane.xlu0 %1726
  %v1728 = vsel %vm439, %v1708, 0.0
  %1729 = vadd.xlane.f32.xlu0 %v1728
  %v1730 = vpop.xlane.xlu0 %1729
  %v1731 = vsel %vm439, %v1710, 0.0
  %1732 = vadd.xlane.f32.xlu0 %v1731
  %v1733 = vpop.xlane.xlu0 %1732
  %v1734 = vsel %vm439, %v1712, 0.0
  %1735 = vadd.xlane.f32.xlu0 %v1734
  %v1736 = vpop.xlane.xlu0 %1735
  %v1737 = vsel %vm439, %v1714, 0.0
  %1738 = vadd.xlane.f32.xlu0 %v1737
  %v1739 = vpop.xlane.xlu0 %1738
  %v1740 = vsel %vm439, %v1716, 0.0
  %1741 = vadd.xlane.f32.xlu0 %v1740
  %v1742 = vpop.xlane.xlu0 %1741
  %v1743 = vsel %vm439, %v1718, 0.0
  %1744 = vadd.xlane.f32.xlu0 %v1743
  %v1745 = vpop.xlane.xlu0 %1744
  %v1746 = vrcp.pop %v1721
  %v1747 = vrcp.pop %v1724
  %v1748 = vrcp.pop %v1727
  %v1749 = vrcp.pop %v1730
  %v1750 = vrcp.pop %v1733
  %v1751 = vrcp.pop %v1736
  %v1752 = vrcp.pop %v1739
  %v1753 = vrcp.pop %v1742
  %v1754 = vrcp.pop %v1745
  %v1755 = vmul.f32 %v1721, %v1746
  %v1756 = vmul.f32 %v1724, %v1747
  %v1757 = vmul.f32 %v1727, %v1748
  %v1758 = vmul.f32 %v1730, %v1749
  %v1759 = vmul.f32 %v1733, %v1750
  %v1760 = vmul.f32 %v1736, %v1751
  %v1761 = vmul.f32 %v1739, %v1752
  %v1762 = vmul.f32 %v1742, %v1753
  %v1763 = vmul.f32 %v1745, %v1754
  %v1764 = vsub.f32 2.0, %v1755
  %v1765 = vsub.f32 2.0, %v1756
  %v1766 = vsub.f32 2.0, %v1757
  %v1767 = vsub.f32 2.0, %v1758
  %v1768 = vsub.f32 2.0, %v1759
  %v1769 = vsub.f32 2.0, %v1760
  %v1770 = vsub.f32 2.0, %v1761
  %v1771 = vsub.f32 2.0, %v1762
  %v1772 = vsub.f32 2.0, %v1763
  %v1773 = vmul.f32 %v1746, %v1764
  %v1774 = vmul.f32 %v1747, %v1765
  %v1775 = vmul.f32 %v1748, %v1766
  %v1776 = vmul.f32 %v1749, %v1767
  %v1777 = vmul.f32 %v1750, %v1768
  %v1778 = vmul.f32 %v1751, %v1769
  %v1779 = vmul.f32 %v1752, %v1770
  %v1780 = vmul.f32 %v1753, %v1771
  %v1781 = vmul.f32 %v1754, %v1772
  %1782 = vrot.lane.b32.xlu0 %v141, 56
  %v1783 = vpop.permute.xlu0 %1782
  %1784 = vrot.lane.b32.xlu0 %v146, 56
  %v1785 = vpop.permute.xlu0 %1784
  %1786 = vrot.lane.b32.xlu0 %v151, 56
  %v1787 = vpop.permute.xlu0 %1786
  %1788 = vrot.lane.b32.xlu0 %v156, 56
  %v1789 = vpop.permute.xlu0 %1788
  %1790 = vrot.lane.b32.xlu0 %v161, 56
  %v1791 = vpop.permute.xlu0 %1790
  %1792 = vrot.lane.b32.xlu0 %v166, 56
  %v1793 = vpop.permute.xlu0 %1792
  %1794 = vrot.lane.b32.xlu0 %v171, 56
  %v1795 = vpop.permute.xlu0 %1794
  %1796 = vrot.lane.b32.xlu0 %v176, 56
  %v1797 = vpop.permute.xlu0 %1796
  %1798 = vrot.lane.b32.xlu0 %v181, 56
  %v1799 = vpop.permute.xlu0 %1798
  %v1810 = vsel %vm439, %v1702, 0
  %v1813 = vsel %vm439, %v1704, 0
  %v1816 = vsel %vm439, %v1706, 0
  %v1819 = vsel %vm439, %v1708, 0
  %v1822 = vsel %vm439, %v1710, 0
  %v1825 = vsel %vm439, %v1712, 0
  %v1828 = vsel %vm439, %v1714, 0
  %v1831 = vsel %vm439, %v1716, 0
  %v1834 = vsel %vm439, %v1718, 0
  %1836 = vmatprep.subr.mxu0 0.0
  %1837 = vmatpush1.msra.mxu0 %v1783
  %1838 = vmatprep.subr.mxu0 0.0
  %1839 = vmatpush1.msra.mxu0 %v1785
  %1840 = vmatprep.subr.mxu0 0.0
  %1841 = vmatpush1.msra.mxu0 %v1787
  %1842 = vmatprep.subr.mxu0 0.0
  %1843 = vmatpush1.msra.mxu0 %v1789
  %1844 = vmatprep.subr.mxu0 0.0
  %1845 = vmatpush1.msra.mxu0 %v1791
  %1846 = vmatprep.subr.mxu0 0.0
  %1847 = vmatpush1.msra.mxu0 %v1793
  %1848 = vmatprep.subr.mxu0 0.0
  %1849 = vmatpush1.msra.mxu0 %v1795
  %1850 = vmatprep.subr.mxu0 0.0
  %1851 = vmatpush1.msra.mxu0 %v1797
  %1852 = vmatprep.subr.mxu0 0.0
  %1853 = vmatpush1.msra.mxu0 %v1799
  %1854 = vmatprep.subr.mxu0 0.0
  %1855 = vmatpush1.msra.mxu0 0.0
  %1856 = vmatprep.subr.mxu0 0.0
  %1857 = vmatpush1.msra.mxu0 0.0
  %1858 = vmatprep.subr.mxu0 0.0
  %1859 = vmatpush1.msra.mxu0 0.0
  %1860 = vmatprep.subr.mxu0 0.0
  %1861 = vmatpush1.msra.mxu0 0.0
  %1862 = vmatprep.subr.mxu0 0.0
  %1863 = vmatpush1.msra.mxu0 0.0
  %1864 = vmatprep.subr.mxu0 0.0
  %1865 = vmatpush1.msra.mxu0 0.0
  %1866 = vmatprep.subr.mxu0 0.0
  %1867 = vmatpush1.msra.mxu0 0.0
  %1868 = vmatprep.subr.mxu0 0.0
  %1869 = vmatpush1.msra.mxu0 0.0
  %1870 = vmatprep.subr.mxu0 0.0
  %1871 = vmatpush1.msra.mxu0 0.0
  %1872 = vmatprep.subr.mxu0 0.0
  %1873 = vmatpush1.msra.mxu0 0.0
  %1874 = vmatprep.subr.mxu0 0.0
  %1875 = vmatpush1.msra.mxu0 0.0
  %1876 = vmatprep.subr.mxu0 0.0
  %1877 = vmatpush1.msra.mxu0 0.0
  %1878 = vmatprep.subr.mxu0 0.0
  %1879 = vmatpush1.msra.mxu0 0.0
  %1880 = vmatprep.subr.mxu0 0.0
  %1881 = vmatpush1.msra.mxu0 0.0
  %1882 = vmatprep.subr.mxu0 0.0
  %1883 = vmatpush1.msra.mxu0 0.0
  %1884 = vmatprep.subr.mxu0 0.0
  %1885 = vmatpush1.msra.mxu0 0.0
  %1886 = vmatprep.subr.mxu0 0.0
  %1887 = vmatpush1.msra.mxu0 0.0
  %1888 = vmatprep.subr.mxu0 0.0
  %1889 = vmatpush1.msra.mxu0 0.0
  %1890 = vmatprep.subr.mxu0 0.0
  %1891 = vmatpush1.msra.mxu0 0.0
  %1892 = vmatprep.subr.mxu0 0.0
  %1893 = vmatpush1.msra.mxu0 0.0
  %1894 = vmatprep.subr.mxu0 0.0
  %1895 = vmatpush1.msra.mxu0 0.0
  %1896 = vmatprep.subr.mxu0 0.0
  %1897 = vmatpush1.msra.mxu0 0.0
  %1898 = vmatprep.subr.mxu0 0.0
  %1899 = vmatpush1.msra.mxu0 0.0
  %1900 = vmatprep.mubr.f32.mxu0 0.0
  %1901 = vmatmul.mubr.f32.gmra.mrb[0].mxu0 %v1810
  %v1902 = vpop.f32.mrb[0].mxu0
  %v1903 = vadd.f32 0.0, %v1902
  %v1904 = vpop.f32.mrb[0].mxu0
  %1905 = vmatprep.mubr.f32.mxu0 0.0
  %1906 = vmatmul.mubr.f32.gmra.mrb[0].mxu0 %v1813
  %v1907 = vpop.f32.mrb[0].mxu0
  %v1908 = vadd.f32 0.0, %v1907
  %v1909 = vpop.f32.mrb[0].mxu0
  %1910 = vmatprep.mubr.f32.mxu0 0.0
  %1911 = vmatmul.mubr.f32.gmra.mrb[0].mxu0 %v1816
  %v1912 = vpop.f32.mrb[0].mxu0
  %v1913 = vadd.f32 0.0, %v1912
  %v1914 = vpop.f32.mrb[0].mxu0
  %1915 = vmatprep.mubr.f32.mxu0 0.0
  %1916 = vmatmul.mubr.f32.gmra.mrb[0].mxu0 %v1819
  %v1917 = vpop.f32.mrb[0].mxu0
  %v1918 = vadd.f32 0.0, %v1917
  %v1919 = vpop.f32.mrb[0].mxu0
  %1920 = vmatprep.mubr.f32.mxu0 0.0
  %1921 = vmatmul.mubr.f32.gmra.mrb[0].mxu0 %v1822
  %v1922 = vpop.f32.mrb[0].mxu0
  %v1923 = vadd.f32 0.0, %v1922
  %v1924 = vpop.f32.mrb[0].mxu0
  %1925 = vmatprep.mubr.f32.mxu0 0.0
  %1926 = vmatmul.mubr.f32.gmra.mrb[0].mxu0 %v1825
  %v1927 = vpop.f32.mrb[0].mxu0
  %v1928 = vadd.f32 0.0, %v1927
  %v1929 = vpop.f32.mrb[0].mxu0
  %1930 = vmatprep.mubr.f32.mxu0 0.0
  %1931 = vmatmul.mubr.f32.gmra.mrb[0].mxu0 %v1828
  %v1932 = vpop.f32.mrb[0].mxu0
  %v1933 = vadd.f32 0.0, %v1932
  %v1934 = vpop.f32.mrb[0].mxu0
  %1935 = vmatprep.mubr.f32.mxu0 0.0
  %1936 = vmatmul.mubr.f32.gmra.mrb[0].mxu0 %v1831
  %v1937 = vpop.f32.mrb[0].mxu0
  %v1938 = vadd.f32 0.0, %v1937
  %v1939 = vpop.f32.mrb[0].mxu0
  %1940 = vmatprep.mubr.f32.mxu0 0.0
  %1941 = vmatmul.mubr.f32.gmra.mrb[0].mxu0 %v1834
  %v1942 = vpop.f32.mrb[0].mxu0
  %v1943 = vadd.f32 0.0, %v1942
  %v1944 = vpop.f32.mrb[0].mxu0
  %1945 = vdwg.mxu0
  %v1946 = vmul.f32 %v1903, %v1773
  %v1947 = vmul.f32 %v1908, %v1774
  %v1948 = vmul.f32 %v1913, %v1775
  %v1949 = vmul.f32 %v1918, %v1776
  %v1950 = vmul.f32 %v1923, %v1777
  %v1951 = vmul.f32 %v1928, %v1778
  %v1952 = vmul.f32 %v1933, %v1779
  %v1953 = vmul.f32 %v1938, %v1780
  %v1954 = vmul.f32 %v1943, %v1781
  %v1956 = vsel %vm283, %v1946, 0
  %v1959 = vsel %vm283, %v1947, 0
  %v1962 = vsel %vm283, %v1948, 0
  %v1965 = vsel %vm283, %v1949, 0
  %v1968 = vsel %vm283, %v1950, 0
  %v1971 = vsel %vm283, %v1951, 0
  %v1974 = vsel %vm283, %v1952, 0
  %v1977 = vsel %vm283, %v1953, 0
  %v1980 = vsel %vm283, %v1954, 0
  %v1983 = vsel %vm1231, %v253, 0
  %1985 = vmatprep.subr.mxu0 0.0
  %1986 = vmatpush1.msra.mxu0 %v1983
  %1987 = vmatprep.subr.mxu0 0.0
  %1988 = vmatpush1.msra.mxu0 0.0
  %1989 = vmatprep.subr.mxu0 0.0
  %1990 = vmatpush1.msra.mxu0 0.0
  %1991 = vmatprep.subr.mxu0 0.0
  %1992 = vmatpush1.msra.mxu0 0.0
  %1993 = vmatprep.subr.mxu0 0.0
  %1994 = vmatpush1.msra.mxu0 0.0
  %1995 = vmatprep.subr.mxu0 0.0
  %1996 = vmatpush1.msra.mxu0 0.0
  %1997 = vmatprep.subr.mxu0 0.0
  %1998 = vmatpush1.msra.mxu0 0.0
  %1999 = vmatprep.subr.mxu0 0.0
  %2000 = vmatpush1.msra.mxu0 0.0
  %2001 = vmatprep.subr.mxu0 0.0
  %2002 = vmatpush1.msra.mxu0 0.0
  %2003 = vmatprep.subr.mxu0 0.0
  %2004 = vmatpush1.msra.mxu0 0.0
  %2005 = vmatprep.subr.mxu0 0.0
  %2006 = vmatpush1.msra.mxu0 0.0
  %2007 = vmatprep.subr.mxu0 0.0
  %2008 = vmatpush1.msra.mxu0 0.0
  %2009 = vmatprep.subr.mxu0 0.0
  %2010 = vmatpush1.msra.mxu0 0.0
  %2011 = vmatprep.subr.mxu0 0.0
  %2012 = vmatpush1.msra.mxu0 0.0
  %2013 = vmatprep.subr.mxu0 0.0
  %2014 = vmatpush1.msra.mxu0 0.0
  %2015 = vmatprep.subr.mxu0 0.0
  %2016 = vmatpush1.msra.mxu0 0.0
  %2017 = vmatprep.subr.mxu0 0.0
  %2018 = vmatpush1.msra.mxu0 0.0
  %2019 = vmatprep.subr.mxu0 0.0
  %2020 = vmatpush1.msra.mxu0 0.0
  %2021 = vmatprep.subr.mxu0 0.0
  %2022 = vmatpush1.msra.mxu0 0.0
  %2023 = vmatprep.subr.mxu0 0.0
  %2024 = vmatpush1.msra.mxu0 0.0
  %2025 = vmatprep.subr.mxu0 0.0
  %2026 = vmatpush1.msra.mxu0 0.0
  %2027 = vmatprep.subr.mxu0 0.0
  %2028 = vmatpush1.msra.mxu0 0.0
  %2029 = vmatprep.subr.mxu0 0.0
  %2030 = vmatpush1.msra.mxu0 0.0
  %2031 = vmatprep.subr.mxu0 0.0
  %2032 = vmatpush1.msra.mxu0 0.0
  %2033 = vmatprep.subr.mxu0 0.0
  %2034 = vmatpush1.msra.mxu0 0.0
  %2035 = vmatprep.subr.mxu0 0.0
  %2036 = vmatpush1.msra.mxu0 0.0
  %2037 = vmatprep.subr.mxu0 0.0
  %2038 = vmatpush1.msra.mxu0 0.0
  %2039 = vmatprep.subr.mxu0 0.0
  %2040 = vmatpush1.msra.mxu0 0.0
  %2041 = vmatprep.subr.mxu0 0.0
  %2042 = vmatpush1.msra.mxu0 0.0
  %2043 = vmatprep.subr.mxu0 0.0
  %2044 = vmatpush1.msra.mxu0 0.0
  %2045 = vmatprep.subr.mxu0 0.0
  %2046 = vmatpush1.msra.mxu0 0.0
  %2047 = vmatprep.subr.mxu0 0.0
  %2048 = vmatpush1.msra.mxu0 0.0
  %2049 = vmatprep.mubr.f32.mxu0 0.0
  %2050 = vmatmul.mubr.f32.gmra.mrb[0].mxu0 %v1956
  %v2051 = vpop.f32.mrb[0].mxu0
  %v2052 = vadd.f32 0.0, %v2051
  %v2053 = vpop.f32.mrb[0].mxu0
  %2054 = vmatprep.mubr.f32.mxu0 0.0
  %2055 = vmatmul.mubr.f32.gmra.mrb[0].mxu0 %v1959
  %v2056 = vpop.f32.mrb[0].mxu0
  %v2057 = vadd.f32 0.0, %v2056
  %v2058 = vpop.f32.mrb[0].mxu0
  %2059 = vmatprep.mubr.f32.mxu0 0.0
  %2060 = vmatmul.mubr.f32.gmra.mrb[0].mxu0 %v1962
  %v2061 = vpop.f32.mrb[0].mxu0
  %v2062 = vadd.f32 0.0, %v2061
  %v2063 = vpop.f32.mrb[0].mxu0
  %2064 = vmatprep.mubr.f32.mxu0 0.0
  %2065 = vmatmul.mubr.f32.gmra.mrb[0].mxu0 %v1965
  %v2066 = vpop.f32.mrb[0].mxu0
  %v2067 = vadd.f32 0.0, %v2066
  %v2068 = vpop.f32.mrb[0].mxu0
  %2069 = vmatprep.mubr.f32.mxu0 0.0
  %2070 = vmatmul.mubr.f32.gmra.mrb[0].mxu0 %v1968
  %v2071 = vpop.f32.mrb[0].mxu0
  %v2072 = vadd.f32 0.0, %v2071
  %v2073 = vpop.f32.mrb[0].mxu0
  %2074 = vmatprep.mubr.f32.mxu0 0.0
  %2075 = vmatmul.mubr.f32.gmra.mrb[0].mxu0 %v1971
  %v2076 = vpop.f32.mrb[0].mxu0
  %v2077 = vadd.f32 0.0, %v2076
  %v2078 = vpop.f32.mrb[0].mxu0
  %2079 = vmatprep.mubr.f32.mxu0 0.0
  %2080 = vmatmul.mubr.f32.gmra.mrb[0].mxu0 %v1974
  %v2081 = vpop.f32.mrb[0].mxu0
  %v2082 = vadd.f32 0.0, %v2081
  %v2083 = vpop.f32.mrb[0].mxu0
  %2084 = vmatprep.mubr.f32.mxu0 0.0
  %2085 = vmatmul.mubr.f32.gmra.mrb[0].mxu0 %v1977
  %v2086 = vpop.f32.mrb[0].mxu0
  %v2087 = vadd.f32 0.0, %v2086
  %v2088 = vpop.f32.mrb[0].mxu0
  %2089 = vmatprep.mubr.f32.mxu0 0.0
  %2090 = vmatmul.mubr.f32.gmra.mrb[0].mxu0 %v1980
  %v2091 = vpop.f32.mrb[0].mxu0
  %v2092 = vadd.f32 0.0, %v2091
  %v2093 = vpop.f32.mrb[0].mxu0
  %2094 = vdwg.mxu0
  %v2095 = vadd.f32 %v1440, %v2052
  %v2096 = vadd.f32 %v1445, %v2057
  %v2097 = vadd.f32 %v1450, %v2062
  %v2098 = vadd.f32 %v1455, %v2067
  %v2099 = vadd.f32 %v1460, %v2072
  %v2100 = vadd.f32 %v1465, %v2077
  %v2101 = vadd.f32 %v1470, %v2082
  %v2102 = vadd.f32 %v1475, %v2087
  %v2103 = vadd.f32 %v1480, %v2092
  %2104 = vrot.lane.b32.xlu0 %v184, 116
  %v2105 = vpop.permute.xlu0 %2104
  %2106 = vrot.lane.b32.xlu0 %v185, 116
  %v2107 = vpop.permute.xlu0 %2106
  %2108 = vrot.lane.b32.xlu0 %v186, 116
  %v2109 = vpop.permute.xlu0 %2108
  %2110 = vrot.lane.b32.xlu0 %v187, 116
  %v2111 = vpop.permute.xlu0 %2110
  %2112 = vrot.lane.b32.xlu0 %v188, 116
  %v2113 = vpop.permute.xlu0 %2112
  %2114 = vrot.lane.b32.xlu0 %v189, 116
  %v2115 = vpop.permute.xlu0 %2114
  %2116 = vrot.lane.b32.xlu0 %v190, 116
  %v2117 = vpop.permute.xlu0 %2116
  %2118 = vrot.lane.b32.xlu0 %v191, 116
  %v2119 = vpop.permute.xlu0 %2118
  %2120 = vrot.lane.b32.xlu0 %v192, 116
  %v2121 = vpop.permute.xlu0 %2120
  %2122 = vrot.lane.b32.xlu0 %v141, 84
  %v2123 = vpop.permute.xlu0 %2122
  %2124 = vrot.lane.b32.xlu0 %v146, 84
  %v2125 = vpop.permute.xlu0 %2124
  %2126 = vrot.lane.b32.xlu0 %v151, 84
  %v2127 = vpop.permute.xlu0 %2126
  %2128 = vrot.lane.b32.xlu0 %v156, 84
  %v2129 = vpop.permute.xlu0 %2128
  %2130 = vrot.lane.b32.xlu0 %v161, 84
  %v2131 = vpop.permute.xlu0 %2130
  %2132 = vrot.lane.b32.xlu0 %v166, 84
  %v2133 = vpop.permute.xlu0 %2132
  %2134 = vrot.lane.b32.xlu0 %v171, 84
  %v2135 = vpop.permute.xlu0 %2134
  %2136 = vrot.lane.b32.xlu0 %v176, 84
  %v2137 = vpop.permute.xlu0 %2136
  %2138 = vrot.lane.b32.xlu0 %v181, 84
  %v2139 = vpop.permute.xlu0 %2138
  %v2140 = vsel %vm283, %v2105, 0
  %v2142 = vsel %vm283, %v2107, 0
  %v2144 = vsel %vm283, %v2109, 0
  %v2146 = vsel %vm283, %v2111, 0
  %v2148 = vsel %vm283, %v2113, 0
  %v2150 = vsel %vm283, %v2115, 0
  %v2152 = vsel %vm283, %v2117, 0
  %v2154 = vsel %vm283, %v2119, 0
  %v2156 = vsel %vm283, %v2121, 0
  %v2158 = vsel %vm283, %v2123, 0
  %v2160 = vsel %vm283, %v2125, 0
  %v2162 = vsel %vm283, %v2127, 0
  %v2164 = vsel %vm283, %v2129, 0
  %v2166 = vsel %vm283, %v2131, 0
  %v2168 = vsel %vm283, %v2133, 0
  %v2170 = vsel %vm283, %v2135, 0
  %v2172 = vsel %vm283, %v2137, 0
  %v2174 = vsel %vm283, %v2139, 0
  %2176 = vmatprep.subr.mxu0 0.0
  %2177 = vmatpush1.xpose.msra.mxu0 %v2158
  %2178 = vmatprep.subr.mxu0 0.0
  %2179 = vmatpush1.xpose.msra.mxu0 %v2160
  %2180 = vmatprep.subr.mxu0 0.0
  %2181 = vmatpush1.xpose.msra.mxu0 %v2162
  %2182 = vmatprep.subr.mxu0 0.0
  %2183 = vmatpush1.xpose.msra.mxu0 %v2164
  %2184 = vmatprep.subr.mxu0 0.0
  %2185 = vmatpush1.xpose.msra.mxu0 %v2166
  %2186 = vmatprep.subr.mxu0 0.0
  %2187 = vmatpush1.xpose.msra.mxu0 %v2168
  %2188 = vmatprep.subr.mxu0 0.0
  %2189 = vmatpush1.xpose.msra.mxu0 %v2170
  %2190 = vmatprep.subr.mxu0 0.0
  %2191 = vmatpush1.xpose.msra.mxu0 %v2172
  %2192 = vmatprep.subr.mxu0 0.0
  %2193 = vmatpush1.xpose.msra.mxu0 %v2174
  %2194 = vmatprep.subr.mxu0 0.0
  %2195 = vmatpush1.xpose.msra.mxu0 0.0
  %2196 = vmatprep.subr.mxu0 0.0
  %2197 = vmatpush1.xpose.msra.mxu0 0.0
  %2198 = vmatprep.subr.mxu0 0.0
  %2199 = vmatpush1.xpose.msra.mxu0 0.0
  %2200 = vmatprep.subr.mxu0 0.0
  %2201 = vmatpush1.xpose.msra.mxu0 0.0
  %2202 = vmatprep.subr.mxu0 0.0
  %2203 = vmatpush1.xpose.msra.mxu0 0.0
  %2204 = vmatprep.subr.mxu0 0.0
  %2205 = vmatpush1.xpose.msra.mxu0 0.0
  %2206 = vmatprep.subr.mxu0 0.0
  %2207 = vmatpush1.xpose.msra.mxu0 0.0
  %2208 = vmatprep.subr.mxu0 0.0
  %2209 = vmatpush1.xpose.msra.mxu0 0.0
  %2210 = vmatprep.subr.mxu0 0.0
  %2211 = vmatpush1.xpose.msra.mxu0 0.0
  %2212 = vmatprep.subr.mxu0 0.0
  %2213 = vmatpush1.xpose.msra.mxu0 0.0
  %2214 = vmatprep.subr.mxu0 0.0
  %2215 = vmatpush1.xpose.msra.mxu0 0.0
  %2216 = vmatprep.subr.mxu0 0.0
  %2217 = vmatpush1.xpose.msra.mxu0 0.0
  %2218 = vmatprep.subr.mxu0 0.0
  %2219 = vmatpush1.xpose.msra.mxu0 0.0
  %2220 = vmatprep.subr.mxu0 0.0
  %2221 = vmatpush1.xpose.msra.mxu0 0.0
  %2222 = vmatprep.subr.mxu0 0.0
  %2223 = vmatpush1.xpose.msra.mxu0 0.0
  %2224 = vmatprep.subr.mxu0 0.0
  %2225 = vmatpush1.xpose.msra.mxu0 0.0
  %2226 = vmatprep.subr.mxu0 0.0
  %2227 = vmatpush1.xpose.msra.mxu0 0.0
  %2228 = vmatprep.subr.mxu0 0.0
  %2229 = vmatpush1.xpose.msra.mxu0 0.0
  %2230 = vmatprep.subr.mxu0 0.0
  %2231 = vmatpush1.xpose.msra.mxu0 0.0
  %2232 = vmatprep.subr.mxu0 0.0
  %2233 = vmatpush1.xpose.msra.mxu0 0.0
  %2234 = vmatprep.subr.mxu0 0.0
  %2235 = vmatpush1.xpose.msra.mxu0 0.0
  %2236 = vmatprep.subr.mxu0 0.0
  %2237 = vmatpush1.xpose.msra.mxu0 0.0
  %2238 = vmatprep.subr.mxu0 0.0
  %2239 = vmatpush1.xpose.msra.mxu0 0.0
  %2240 = vmatprep.mubr.f32.mxu0 0.0
  %2241 = vmatmul.mubr.f32.gmra.mrb[0].mxu0 %v2140
  %v2242 = vpop.f32.mrb[0].mxu0
  %v2243 = vadd.f32 %v243, %v2242
  %v2244 = vpop.f32.mrb[0].mxu0
  %2245 = vmatprep.mubr.f32.mxu0 0.0
  %2246 = vmatmul.mubr.f32.gmra.mrb[0].mxu0 %v2142
  %v2247 = vpop.f32.mrb[0].mxu0
  %v2248 = vadd.f32 %v244, %v2247
  %v2249 = vpop.f32.mrb[0].mxu0
  %2250 = vmatprep.mubr.f32.mxu0 0.0
  %2251 = vmatmul.mubr.f32.gmra.mrb[0].mxu0 %v2144
  %v2252 = vpop.f32.mrb[0].mxu0
  %v2253 = vadd.f32 %v245, %v2252
  %v2254 = vpop.f32.mrb[0].mxu0
  %2255 = vmatprep.mubr.f32.mxu0 0.0
  %2256 = vmatmul.mubr.f32.gmra.mrb[0].mxu0 %v2146
  %v2257 = vpop.f32.mrb[0].mxu0
  %v2258 = vadd.f32 %v246, %v2257
  %v2259 = vpop.f32.mrb[0].mxu0
  %2260 = vmatprep.mubr.f32.mxu0 0.0
  %2261 = vmatmul.mubr.f32.gmra.mrb[0].mxu0 %v2148
  %v2262 = vpop.f32.mrb[0].mxu0
  %v2263 = vadd.f32 %v247, %v2262
  %v2264 = vpop.f32.mrb[0].mxu0
  %2265 = vmatprep.mubr.f32.mxu0 0.0
  %2266 = vmatmul.mubr.f32.gmra.mrb[0].mxu0 %v2150
  %v2267 = vpop.f32.mrb[0].mxu0
  %v2268 = vadd.f32 %v248, %v2267
  %v2269 = vpop.f32.mrb[0].mxu0
  %2270 = vmatprep.mubr.f32.mxu0 0.0
  %2271 = vmatmul.mubr.f32.gmra.mrb[0].mxu0 %v2152
  %v2272 = vpop.f32.mrb[0].mxu0
  %v2273 = vadd.f32 %v249, %v2272
  %v2274 = vpop.f32.mrb[0].mxu0
  %2275 = vmatprep.mubr.f32.mxu0 0.0
  %2276 = vmatmul.mubr.f32.gmra.mrb[0].mxu0 %v2154
  %v2277 = vpop.f32.mrb[0].mxu0
  %v2278 = vadd.f32 %v250, %v2277
  %v2279 = vpop.f32.mrb[0].mxu0
  %2280 = vmatprep.mubr.f32.mxu0 0.0
  %2281 = vmatmul.mubr.f32.gmra.mrb[0].mxu0 %v2156
  %v2282 = vpop.f32.mrb[0].mxu0
  %v2283 = vadd.f32 %v251, %v2282
  %v2284 = vpop.f32.mrb[0].mxu0
  %2285 = vdwg.mxu0
  %v2286 = vsel %vm439, %v2243, -inf
  %2287 = vmax.xlane.f32.xlu0 %v2286
  %v2288 = vpop.xlane.xlu0 %2287
  %v2289 = vsel %vm439, %v2248, -inf
  %2290 = vmax.xlane.f32.xlu0 %v2289
  %v2291 = vpop.xlane.xlu0 %2290
  %v2292 = vsel %vm439, %v2253, -inf
  %2293 = vmax.xlane.f32.xlu0 %v2292
  %v2294 = vpop.xlane.xlu0 %2293
  %v2295 = vsel %vm439, %v2258, -inf
  %2296 = vmax.xlane.f32.xlu0 %v2295
  %v2297 = vpop.xlane.xlu0 %2296
  %v2298 = vsel %vm439, %v2263, -inf
  %2299 = vmax.xlane.f32.xlu0 %v2298
  %v2300 = vpop.xlane.xlu0 %2299
  %v2301 = vsel %vm439, %v2268, -inf
  %2302 = vmax.xlane.f32.xlu0 %v2301
  %v2303 = vpop.xlane.xlu0 %2302
  %v2304 = vsel %vm439, %v2273, -inf
  %2305 = vmax.xlane.f32.xlu0 %v2304
  %v2306 = vpop.xlane.xlu0 %2305
  %v2307 = vsel %vm439, %v2278, -inf
  %2308 = vmax.xlane.f32.xlu0 %v2307
  %v2309 = vpop.xlane.xlu0 %2308
  %v2310 = vsel %vm439, %v2283, -inf
  %2311 = vmax.xlane.f32.xlu0 %v2310
  %v2312 = vpop.xlane.xlu0 %2311
  %v2313 = vsub.f32 %v2243, %v2288
  %v2314 = vsub.f32 %v2248, %v2291
  %v2315 = vsub.f32 %v2253, %v2294
  %v2316 = vsub.f32 %v2258, %v2297
  %v2317 = vsub.f32 %v2263, %v2300
  %v2318 = vsub.f32 %v2268, %v2303
  %v2319 = vsub.f32 %v2273, %v2306
  %v2320 = vsub.f32 %v2278, %v2309
  %v2321 = vsub.f32 %v2283, %v2312
  %v2322 = vmul.f32 %v2313, 1.442695
  %v2323 = vpow.pop %v2322
  %v2324 = vmul.f32 %v2314, 1.442695
  %v2325 = vpow.pop %v2324
  %v2326 = vmul.f32 %v2315, 1.442695
  %v2327 = vpow.pop %v2326
  %v2328 = vmul.f32 %v2316, 1.442695
  %v2329 = vpow.pop %v2328
  %v2330 = vmul.f32 %v2317, 1.442695
  %v2331 = vpow.pop %v2330
  %v2332 = vmul.f32 %v2318, 1.442695
  %v2333 = vpow.pop %v2332
  %v2334 = vmul.f32 %v2319, 1.442695
  %v2335 = vpow.pop %v2334
  %v2336 = vmul.f32 %v2320, 1.442695
  %v2337 = vpow.pop %v2336
  %v2338 = vmul.f32 %v2321, 1.442695
  %v2339 = vpow.pop %v2338
  %v2340 = vsel %vm439, %v2323, 0.0
  %2341 = vadd.xlane.f32.xlu0 %v2340
  %v2342 = vpop.xlane.xlu0 %2341
  %v2343 = vsel %vm439, %v2325, 0.0
  %2344 = vadd.xlane.f32.xlu0 %v2343
  %v2345 = vpop.xlane.xlu0 %2344
  %v2346 = vsel %vm439, %v2327, 0.0
  %2347 = vadd.xlane.f32.xlu0 %v2346
  %v2348 = vpop.xlane.xlu0 %2347
  %v2349 = vsel %vm439, %v2329, 0.0
  %2350 = vadd.xlane.f32.xlu0 %v2349
  %v2351 = vpop.xlane.xlu0 %2350
  %v2352 = vsel %vm439, %v2331, 0.0
  %2353 = vadd.xlane.f32.xlu0 %v2352
  %v2354 = vpop.xlane.xlu0 %2353
  %v2355 = vsel %vm439, %v2333, 0.0
  %2356 = vadd.xlane.f32.xlu0 %v2355
  %v2357 = vpop.xlane.xlu0 %2356
  %v2358 = vsel %vm439, %v2335, 0.0
  %2359 = vadd.xlane.f32.xlu0 %v2358
  %v2360 = vpop.xlane.xlu0 %2359
  %v2361 = vsel %vm439, %v2337, 0.0
  %2362 = vadd.xlane.f32.xlu0 %v2361
  %v2363 = vpop.xlane.xlu0 %2362
  %v2364 = vsel %vm439, %v2339, 0.0
  %2365 = vadd.xlane.f32.xlu0 %v2364
  %v2366 = vpop.xlane.xlu0 %2365
  %v2367 = vrcp.pop %v2342
  %v2368 = vrcp.pop %v2345
  %v2369 = vrcp.pop %v2348
  %v2370 = vrcp.pop %v2351
  %v2371 = vrcp.pop %v2354
  %v2372 = vrcp.pop %v2357
  %v2373 = vrcp.pop %v2360
  %v2374 = vrcp.pop %v2363
  %v2375 = vrcp.pop %v2366
  %v2376 = vmul.f32 %v2342, %v2367
  %v2377 = vmul.f32 %v2345, %v2368
  %v2378 = vmul.f32 %v2348, %v2369
  %v2379 = vmul.f32 %v2351, %v2370
  %v2380 = vmul.f32 %v2354, %v2371
  %v2381 = vmul.f32 %v2357, %v2372
  %v2382 = vmul.f32 %v2360, %v2373
  %v2383 = vmul.f32 %v2363, %v2374
  %v2384 = vmul.f32 %v2366, %v2375
  %v2385 = vsub.f32 2.0, %v2376
  %v2386 = vsub.f32 2.0, %v2377
  %v2387 = vsub.f32 2.0, %v2378
  %v2388 = vsub.f32 2.0, %v2379
  %v2389 = vsub.f32 2.0, %v2380
  %v2390 = vsub.f32 2.0, %v2381
  %v2391 = vsub.f32 2.0, %v2382
  %v2392 = vsub.f32 2.0, %v2383
  %v2393 = vsub.f32 2.0, %v2384
  %v2394 = vmul.f32 %v2367, %v2385
  %v2395 = vmul.f32 %v2368, %v2386
  %v2396 = vmul.f32 %v2369, %v2387
  %v2397 = vmul.f32 %v2370, %v2388
  %v2398 = vmul.f32 %v2371, %v2389
  %v2399 = vmul.f32 %v2372, %v2390
  %v2400 = vmul.f32 %v2373, %v2391
  %v2401 = vmul.f32 %v2374, %v2392
  %v2402 = vmul.f32 %v2375, %v2393
  %2403 = vrot.lane.b32.xlu0 %v141, 52
  %v2404 = vpop.permute.xlu0 %2403
  %2405 = vrot.lane.b32.xlu0 %v146, 52
  %v2406 = vpop.permute.xlu0 %2405
  %2407 = vrot.lane.b32.xlu0 %v151, 52
  %v2408 = vpop.permute.xlu0 %2407
  %2409 = vrot.lane.b32.xlu0 %v156, 52
  %v2410 = vpop.permute.xlu0 %2409
  %2411 = vrot.lane.b32.xlu0 %v161, 52
  %v2412 = vpop.permute.xlu0 %2411
  %2413 = vrot.lane.b32.xlu0 %v166, 52
  %v2414 = vpop.permute.xlu0 %2413
  %2415 = vrot.lane.b32.xlu0 %v171, 52
  %v2416 = vpop.permute.xlu0 %2415
  %2417 = vrot.lane.b32.xlu0 %v176, 52
  %v2418 = vpop.permute.xlu0 %2417
  %2419 = vrot.lane.b32.xlu0 %v181, 52
  %v2420 = vpop.permute.xlu0 %2419
  %v2431 = vsel %vm439, %v2323, 0
  %v2434 = vsel %vm439, %v2325, 0
  %v2437 = vsel %vm439, %v2327, 0
  %v2440 = vsel %vm439, %v2329, 0
  %v2443 = vsel %vm439, %v2331, 0
  %v2446 = vsel %vm439, %v2333, 0
  %v2449 = vsel %vm439, %v2335, 0
  %v2452 = vsel %vm439, %v2337, 0
  %v2455 = vsel %vm439, %v2339, 0
  %2457 = vmatprep.subr.mxu0 0.0
  %2458 = vmatpush1.msra.mxu0 %v2404
  %2459 = vmatprep.subr.mxu0 0.0
  %2460 = vmatpush1.msra.mxu0 %v2406
  %2461 = vmatprep.subr.mxu0 0.0
  %2462 = vmatpush1.msra.mxu0 %v2408
  %2463 = vmatprep.subr.mxu0 0.0
  %2464 = vmatpush1.msra.mxu0 %v2410
  %2465 = vmatprep.subr.mxu0 0.0
  %2466 = vmatpush1.msra.mxu0 %v2412
  %2467 = vmatprep.subr.mxu0 0.0
  %2468 = vmatpush1.msra.mxu0 %v2414
  %2469 = vmatprep.subr.mxu0 0.0
  %2470 = vmatpush1.msra.mxu0 %v2416
  %2471 = vmatprep.subr.mxu0 0.0
  %2472 = vmatpush1.msra.mxu0 %v2418
  %2473 = vmatprep.subr.mxu0 0.0
  %2474 = vmatpush1.msra.mxu0 %v2420
  %2475 = vmatprep.subr.mxu0 0.0
  %2476 = vmatpush1.msra.mxu0 0.0
  %2477 = vmatprep.subr.mxu0 0.0
  %2478 = vmatpush1.msra.mxu0 0.0
  %2479 = vmatprep.subr.mxu0 0.0
  %2480 = vmatpush1.msra.mxu0 0.0
  %2481 = vmatprep.subr.mxu0 0.0
  %2482 = vmatpush1.msra.mxu0 0.0
  %2483 = vmatprep.subr.mxu0 0.0
  %2484 = vmatpush1.msra.mxu0 0.0
  %2485 = vmatprep.subr.mxu0 0.0
  %2486 = vmatpush1.msra.mxu0 0.0
  %2487 = vmatprep.subr.mxu0 0.0
  %2488 = vmatpush1.msra.mxu0 0.0
  %2489 = vmatprep.subr.mxu0 0.0
  %2490 = vmatpush1.msra.mxu0 0.0
  %2491 = vmatprep.subr.mxu0 0.0
  %2492 = vmatpush1.msra.mxu0 0.0
  %2493 = vmatprep.subr.mxu0 0.0
  %2494 = vmatpush1.msra.mxu0 0.0
  %2495 = vmatprep.subr.mxu0 0.0
  %2496 = vmatpush1.msra.mxu0 0.0
  %2497 = vmatprep.subr.mxu0 0.0
  %2498 = vmatpush1.msra.mxu0 0.0
  %2499 = vmatprep.subr.mxu0 0.0
  %2500 = vmatpush1.msra.mxu0 0.0
  %2501 = vmatprep.subr.mxu0 0.0
  %2502 = vmatpush1.msra.mxu0 0.0
  %2503 = vmatprep.subr.mxu0 0.0
  %2504 = vmatpush1.msra.mxu0 0.0
  %2505 = vmatprep.subr.mxu0 0.0
  %2506 = vmatpush1.msra.mxu0 0.0
  %2507 = vmatprep.subr.mxu0 0.0
  %2508 = vmatpush1.msra.mxu0 0.0
  %2509 = vmatprep.subr.mxu0 0.0
  %2510 = vmatpush1.msra.mxu0 0.0
  %2511 = vmatprep.subr.mxu0 0.0
  %2512 = vmatpush1.msra.mxu0 0.0
  %2513 = vmatprep.subr.mxu0 0.0
  %2514 = vmatpush1.msra.mxu0 0.0
  %2515 = vmatprep.subr.mxu0 0.0
  %2516 = vmatpush1.msra.mxu0 0.0
  %2517 = vmatprep.subr.mxu0 0.0
  %2518 = vmatpush1.msra.mxu0 0.0
  %2519 = vmatprep.subr.mxu0 0.0
  %2520 = vmatpush1.msra.mxu0 0.0
  %2521 = vmatprep.mubr.f32.mxu0 0.0
  %2522 = vmatmul.mubr.f32.gmra.mrb[0].mxu0 %v2431
  %v2523 = vpop.f32.mrb[0].mxu0
  %v2524 = vadd.f32 0.0, %v2523
  %v2525 = vpop.f32.mrb[0].mxu0
  %2526 = vmatprep.mubr.f32.mxu0 0.0
  %2527 = vmatmul.mubr.f32.gmra.mrb[0].mxu0 %v2434
  %v2528 = vpop.f32.mrb[0].mxu0
  %v2529 = vadd.f32 0.0, %v2528
  %v2530 = vpop.f32.mrb[0].mxu0
  %2531 = vmatprep.mubr.f32.mxu0 0.0
  %2532 = vmatmul.mubr.f32.gmra.mrb[0].mxu0 %v2437
  %v2533 = vpop.f32.mrb[0].mxu0
  %v2534 = vadd.f32 0.0, %v2533
  %v2535 = vpop.f32.mrb[0].mxu0
  %2536 = vmatprep.mubr.f32.mxu0 0.0
  %2537 = vmatmul.mubr.f32.gmra.mrb[0].mxu0 %v2440
  %v2538 = vpop.f32.mrb[0].mxu0
  %v2539 = vadd.f32 0.0, %v2538
  %v2540 = vpop.f32.mrb[0].mxu0
  %2541 = vmatprep.mubr.f32.mxu0 0.0
  %2542 = vmatmul.mubr.f32.gmra.mrb[0].mxu0 %v2443
  %v2543 = vpop.f32.mrb[0].mxu0
  %v2544 = vadd.f32 0.0, %v2543
  %v2545 = vpop.f32.mrb[0].mxu0
  %2546 = vmatprep.mubr.f32.mxu0 0.0
  %2547 = vmatmul.mubr.f32.gmra.mrb[0].mxu0 %v2446
  %v2548 = vpop.f32.mrb[0].mxu0
  %v2549 = vadd.f32 0.0, %v2548
  %v2550 = vpop.f32.mrb[0].mxu0
  %2551 = vmatprep.mubr.f32.mxu0 0.0
  %2552 = vmatmul.mubr.f32.gmra.mrb[0].mxu0 %v2449
  %v2553 = vpop.f32.mrb[0].mxu0
  %v2554 = vadd.f32 0.0, %v2553
  %v2555 = vpop.f32.mrb[0].mxu0
  %2556 = vmatprep.mubr.f32.mxu0 0.0
  %2557 = vmatmul.mubr.f32.gmra.mrb[0].mxu0 %v2452
  %v2558 = vpop.f32.mrb[0].mxu0
  %v2559 = vadd.f32 0.0, %v2558
  %v2560 = vpop.f32.mrb[0].mxu0
  %2561 = vmatprep.mubr.f32.mxu0 0.0
  %2562 = vmatmul.mubr.f32.gmra.mrb[0].mxu0 %v2455
  %v2563 = vpop.f32.mrb[0].mxu0
  %v2564 = vadd.f32 0.0, %v2563
  %v2565 = vpop.f32.mrb[0].mxu0
  %2566 = vdwg.mxu0
  %v2567 = vmul.f32 %v2524, %v2394
  %v2568 = vmul.f32 %v2529, %v2395
  %v2569 = vmul.f32 %v2534, %v2396
  %v2570 = vmul.f32 %v2539, %v2397
  %v2571 = vmul.f32 %v2544, %v2398
  %v2572 = vmul.f32 %v2549, %v2399
  %v2573 = vmul.f32 %v2554, %v2400
  %v2574 = vmul.f32 %v2559, %v2401
  %v2575 = vmul.f32 %v2564, %v2402
  %v2576 = vrot.slane %v253, 4
  %v2578 = vsel %vm283, %v2567, 0
  %v2581 = vsel %vm283, %v2568, 0
  %v2584 = vsel %vm283, %v2569, 0
  %v2587 = vsel %vm283, %v2570, 0
  %v2590 = vsel %vm283, %v2571, 0
  %v2593 = vsel %vm283, %v2572, 0
  %v2596 = vsel %vm283, %v2573, 0
  %v2599 = vsel %vm283, %v2574, 0
  %v2602 = vsel %vm283, %v2575, 0
  %v2604 = vsel %vm1231, %v2576, 0
  %2606 = vmatprep.subr.mxu0 0.0
  %2607 = vmatpush1.msra.mxu0 %v2604
  %2608 = vmatprep.subr.mxu0 0.0
  %2609 = vmatpush1.msra.mxu0 0.0
  %2610 = vmatprep.subr.mxu0 0.0
  %2611 = vmatpush1.msra.mxu0 0.0
  %2612 = vmatprep.subr.mxu0 0.0
  %2613 = vmatpush1.msra.mxu0 0.0
  %2614 = vmatprep.subr.mxu0 0.0
  %2615 = vmatpush1.msra.mxu0 0.0
  %2616 = vmatprep.subr.mxu0 0.0
  %2617 = vmatpush1.msra.mxu0 0.0
  %2618 = vmatprep.subr.mxu0 0.0
  %2619 = vmatpush1.msra.mxu0 0.0
  %2620 = vmatprep.subr.mxu0 0.0
  %2621 = vmatpush1.msra.mxu0 0.0
  %2622 = vmatprep.subr.mxu0 0.0
  %2623 = vmatpush1.msra.mxu0 0.0
  %2624 = vmatprep.subr.mxu0 0.0
  %2625 = vmatpush1.msra.mxu0 0.0
  %2626 = vmatprep.subr.mxu0 0.0
  %2627 = vmatpush1.msra.mxu0 0.0
  %2628 = vmatprep.subr.mxu0 0.0
  %2629 = vmatpush1.msra.mxu0 0.0
  %2630 = vmatprep.subr.mxu0 0.0
  %2631 = vmatpush1.msra.mxu0 0.0
  %2632 = vmatprep.subr.mxu0 0.0
  %2633 = vmatpush1.msra.mxu0 0.0
  %2634 = vmatprep.subr.mxu0 0.0
  %2635 = vmatpush1.msra.mxu0 0.0
  %2636 = vmatprep.subr.mxu0 0.0
  %2637 = vmatpush1.msra.mxu0 0.0
  %2638 = vmatprep.subr.mxu0 0.0
  %2639 = vmatpush1.msra.mxu0 0.0
  %2640 = vmatprep.subr.mxu0 0.0
  %2641 = vmatpush1.msra.mxu0 0.0
  %2642 = vmatprep.subr.mxu0 0.0
  %2643 = vmatpush1.msra.mxu0 0.0
  %2644 = vmatprep.subr.mxu0 0.0
  %2645 = vmatpush1.msra.mxu0 0.0
  %2646 = vmatprep.subr.mxu0 0.0
  %2647 = vmatpush1.msra.mxu0 0.0
  %2648 = vmatprep.subr.mxu0 0.0
  %2649 = vmatpush1.msra.mxu0 0.0
  %2650 = vmatprep.subr.mxu0 0.0
  %2651 = vmatpush1.msra.mxu0 0.0
  %2652 = vmatprep.subr.mxu0 0.0
  %2653 = vmatpush1.msra.mxu0 0.0
  %2654 = vmatprep.subr.mxu0 0.0
  %2655 = vmatpush1.msra.mxu0 0.0
  %2656 = vmatprep.subr.mxu0 0.0
  %2657 = vmatpush1.msra.mxu0 0.0
  %2658 = vmatprep.subr.mxu0 0.0
  %2659 = vmatpush1.msra.mxu0 0.0
  %2660 = vmatprep.subr.mxu0 0.0
  %2661 = vmatpush1.msra.mxu0 0.0
  %2662 = vmatprep.subr.mxu0 0.0
  %2663 = vmatpush1.msra.mxu0 0.0
  %2664 = vmatprep.subr.mxu0 0.0
  %2665 = vmatpush1.msra.mxu0 0.0
  %2666 = vmatprep.subr.mxu0 0.0
  %2667 = vmatpush1.msra.mxu0 0.0
  %2668 = vmatprep.subr.mxu0 0.0
  %2669 = vmatpush1.msra.mxu0 0.0
  %2670 = vmatprep.mubr.f32.mxu0 0.0
  %2671 = vmatmul.mubr.f32.gmra.mrb[0].mxu0 %v2578
  %v2672 = vpop.f32.mrb[0].mxu0
  %v2673 = vadd.f32 0.0, %v2672
  %v2674 = vpop.f32.mrb[0].mxu0
  %2675 = vmatprep.mubr.f32.mxu0 0.0
  %2676 = vmatmul.mubr.f32.gmra.mrb[0].mxu0 %v2581
  %v2677 = vpop.f32.mrb[0].mxu0
  %v2678 = vadd.f32 0.0, %v2677
  %v2679 = vpop.f32.mrb[0].mxu0
  %2680 = vmatprep.mubr.f32.mxu0 0.0
  %2681 = vmatmul.mubr.f32.gmra.mrb[0].mxu0 %v2584
  %v2682 = vpop.f32.mrb[0].mxu0
  %v2683 = vadd.f32 0.0, %v2682
  %v2684 = vpop.f32.mrb[0].mxu0
  %2685 = vmatprep.mubr.f32.mxu0 0.0
  %2686 = vmatmul.mubr.f32.gmra.mrb[0].mxu0 %v2587
  %v2687 = vpop.f32.mrb[0].mxu0
  %v2688 = vadd.f32 0.0, %v2687
  %v2689 = vpop.f32.mrb[0].mxu0
  %2690 = vmatprep.mubr.f32.mxu0 0.0
  %2691 = vmatmul.mubr.f32.gmra.mrb[0].mxu0 %v2590
  %v2692 = vpop.f32.mrb[0].mxu0
  %v2693 = vadd.f32 0.0, %v2692
  %v2694 = vpop.f32.mrb[0].mxu0
  %2695 = vmatprep.mubr.f32.mxu0 0.0
  %2696 = vmatmul.mubr.f32.gmra.mrb[0].mxu0 %v2593
  %v2697 = vpop.f32.mrb[0].mxu0
  %v2698 = vadd.f32 0.0, %v2697
  %v2699 = vpop.f32.mrb[0].mxu0
  %2700 = vmatprep.mubr.f32.mxu0 0.0
  %2701 = vmatmul.mubr.f32.gmra.mrb[0].mxu0 %v2596
  %v2702 = vpop.f32.mrb[0].mxu0
  %v2703 = vadd.f32 0.0, %v2702
  %v2704 = vpop.f32.mrb[0].mxu0
  %2705 = vmatprep.mubr.f32.mxu0 0.0
  %2706 = vmatmul.mubr.f32.gmra.mrb[0].mxu0 %v2599
  %v2707 = vpop.f32.mrb[0].mxu0
  %v2708 = vadd.f32 0.0, %v2707
  %v2709 = vpop.f32.mrb[0].mxu0
  %2710 = vmatprep.mubr.f32.mxu0 0.0
  %2711 = vmatmul.mubr.f32.gmra.mrb[0].mxu0 %v2602
  %v2712 = vpop.f32.mrb[0].mxu0
  %v2713 = vadd.f32 0.0, %v2712
  %v2714 = vpop.f32.mrb[0].mxu0
  %2715 = vdwg.mxu0
  %v2716 = vadd.f32 %v2095, %v2673
  %v2717 = vadd.f32 %v2096, %v2678
  %v2718 = vadd.f32 %v2097, %v2683
  %v2719 = vadd.f32 %v2098, %v2688
  %v2720 = vadd.f32 %v2099, %v2693
  %v2721 = vadd.f32 %v2100, %v2698
  %v2722 = vadd.f32 %v2101, %v2703
  %v2723 = vadd.f32 %v2102, %v2708
  %v2724 = vadd.f32 %v2103, %v2713
  %2725 = vrot.lane.b32.xlu0 %v184, 112
  %v2726 = vpop.permute.xlu0 %2725
  %2727 = vrot.lane.b32.xlu0 %v185, 112
  %v2728 = vpop.permute.xlu0 %2727
  %2729 = vrot.lane.b32.xlu0 %v186, 112
  %v2730 = vpop.permute.xlu0 %2729
  %2731 = vrot.lane.b32.xlu0 %v187, 112
  %v2732 = vpop.permute.xlu0 %2731
  %2733 = vrot.lane.b32.xlu0 %v188, 112
  %v2734 = vpop.permute.xlu0 %2733
  %2735 = vrot.lane.b32.xlu0 %v189, 112
  %v2736 = vpop.permute.xlu0 %2735
  %2737 = vrot.lane.b32.xlu0 %v190, 112
  %v2738 = vpop.permute.xlu0 %2737
  %2739 = vrot.lane.b32.xlu0 %v191, 112
  %v2740 = vpop.permute.xlu0 %2739
  %2741 = vrot.lane.b32.xlu0 %v192, 112
  %v2742 = vpop.permute.xlu0 %2741
  %2743 = vrot.lane.b32.xlu0 %v141, 80
  %v2744 = vpop.permute.xlu0 %2743
  %2745 = vrot.lane.b32.xlu0 %v146, 80
  %v2746 = vpop.permute.xlu0 %2745
  %2747 = vrot.lane.b32.xlu0 %v151, 80
  %v2748 = vpop.permute.xlu0 %2747
  %2749 = vrot.lane.b32.xlu0 %v156, 80
  %v2750 = vpop.permute.xlu0 %2749
  %2751 = vrot.lane.b32.xlu0 %v161, 80
  %v2752 = vpop.permute.xlu0 %2751
  %2753 = vrot.lane.b32.xlu0 %v166, 80
  %v2754 = vpop.permute.xlu0 %2753
  %2755 = vrot.lane.b32.xlu0 %v171, 80
  %v2756 = vpop.permute.xlu0 %2755
  %2757 = vrot.lane.b32.xlu0 %v176, 80
  %v2758 = vpop.permute.xlu0 %2757
  %2759 = vrot.lane.b32.xlu0 %v181, 80
  %v2760 = vpop.permute.xlu0 %2759
  %v2761 = vsel %vm283, %v2726, 0
  %v2763 = vsel %vm283, %v2728, 0
  %v2765 = vsel %vm283, %v2730, 0
  %v2767 = vsel %vm283, %v2732, 0
  %v2769 = vsel %vm283, %v2734, 0
  %v2771 = vsel %vm283, %v2736, 0
  %v2773 = vsel %vm283, %v2738, 0
  %v2775 = vsel %vm283, %v2740, 0
  %v2777 = vsel %vm283, %v2742, 0
  %v2779 = vsel %vm283, %v2744, 0
  %v2781 = vsel %vm283, %v2746, 0
  %v2783 = vsel %vm283, %v2748, 0
  %v2785 = vsel %vm283, %v2750, 0
  %v2787 = vsel %vm283, %v2752, 0
  %v2789 = vsel %vm283, %v2754, 0
  %v2791 = vsel %vm283, %v2756, 0
  %v2793 = vsel %vm283, %v2758, 0
  %v2795 = vsel %vm283, %v2760, 0
  %2797 = vmatprep.subr.mxu0 0.0
  %2798 = vmatpush1.xpose.msra.mxu0 %v2779
  %2799 = vmatprep.subr.mxu0 0.0
  %2800 = vmatpush1.xpose.msra.mxu0 %v2781
  %2801 = vmatprep.subr.mxu0 0.0
  %2802 = vmatpush1.xpose.msra.mxu0 %v2783
  %2803 = vmatprep.subr.mxu0 0.0
  %2804 = vmatpush1.xpose.msra.mxu0 %v2785
  %2805 = vmatprep.subr.mxu0 0.0
  %2806 = vmatpush1.xpose.msra.mxu0 %v2787
  %2807 = vmatprep.subr.mxu0 0.0
  %2808 = vmatpush1.xpose.msra.mxu0 %v2789
  %2809 = vmatprep.subr.mxu0 0.0
  %2810 = vmatpush1.xpose.msra.mxu0 %v2791
  %2811 = vmatprep.subr.mxu0 0.0
  %2812 = vmatpush1.xpose.msra.mxu0 %v2793
  %2813 = vmatprep.subr.mxu0 0.0
  %2814 = vmatpush1.xpose.msra.mxu0 %v2795
  %2815 = vmatprep.subr.mxu0 0.0
  %2816 = vmatpush1.xpose.msra.mxu0 0.0
  %2817 = vmatprep.subr.mxu0 0.0
  %2818 = vmatpush1.xpose.msra.mxu0 0.0
  %2819 = vmatprep.subr.mxu0 0.0
  %2820 = vmatpush1.xpose.msra.mxu0 0.0
  %2821 = vmatprep.subr.mxu0 0.0
  %2822 = vmatpush1.xpose.msra.mxu0 0.0
  %2823 = vmatprep.subr.mxu0 0.0
  %2824 = vmatpush1.xpose.msra.mxu0 0.0
  %2825 = vmatprep.subr.mxu0 0.0
  %2826 = vmatpush1.xpose.msra.mxu0 0.0
  %2827 = vmatprep.subr.mxu0 0.0
  %2828 = vmatpush1.xpose.msra.mxu0 0.0
  %2829 = vmatprep.subr.mxu0 0.0
  %2830 = vmatpush1.xpose.msra.mxu0 0.0
  %2831 = vmatprep.subr.mxu0 0.0
  %2832 = vmatpush1.xpose.msra.mxu0 0.0
  %2833 = vmatprep.subr.mxu0 0.0
  %2834 = vmatpush1.xpose.msra.mxu0 0.0
  %2835 = vmatprep.subr.mxu0 0.0
  %2836 = vmatpush1.xpose.msra.mxu0 0.0
  %2837 = vmatprep.subr.mxu0 0.0
  %2838 = vmatpush1.xpose.msra.mxu0 0.0
  %2839 = vmatprep.subr.mxu0 0.0
  %2840 = vmatpush1.xpose.msra.mxu0 0.0
  %2841 = vmatprep.subr.mxu0 0.0
  %2842 = vmatpush1.xpose.msra.mxu0 0.0
  %2843 = vmatprep.subr.mxu0 0.0
  %2844 = vmatpush1.xpose.msra.mxu0 0.0
  %2845 = vmatprep.subr.mxu0 0.0
  %2846 = vmatpush1.xpose.msra.mxu0 0.0
  %2847 = vmatprep.subr.mxu0 0.0
  %2848 = vmatpush1.xpose.msra.mxu0 0.0
  %2849 = vmatprep.subr.mxu0 0.0
  %2850 = vmatpush1.xpose.msra.mxu0 0.0
  %2851 = vmatprep.subr.mxu0 0.0
  %2852 = vmatpush1.xpose.msra.mxu0 0.0
  %2853 = vmatprep.subr.mxu0 0.0
  %2854 = vmatpush1.xpose.msra.mxu0 0.0
  %2855 = vmatprep.subr.mxu0 0.0
  %2856 = vmatpush1.xpose.msra.mxu0 0.0
  %2857 = vmatprep.subr.mxu0 0.0
  %2858 = vmatpush1.xpose.msra.mxu0 0.0
  %2859 = vmatprep.subr.mxu0 0.0
  %2860 = vmatpush1.xpose.msra.mxu0 0.0
  %2861 = vmatprep.mubr.f32.mxu0 0.0
  %2862 = vmatmul.mubr.f32.gmra.mrb[0].mxu0 %v2761
  %v2863 = vpop.f32.mrb[0].mxu0
  %v2864 = vadd.f32 %v243, %v2863
  %v2865 = vpop.f32.mrb[0].mxu0
  %2866 = vmatprep.mubr.f32.mxu0 0.0
  %2867 = vmatmul.mubr.f32.gmra.mrb[0].mxu0 %v2763
  %v2868 = vpop.f32.mrb[0].mxu0
  %v2869 = vadd.f32 %v244, %v2868
  %v2870 = vpop.f32.mrb[0].mxu0
  %2871 = vmatprep.mubr.f32.mxu0 0.0
  %2872 = vmatmul.mubr.f32.gmra.mrb[0].mxu0 %v2765
  %v2873 = vpop.f32.mrb[0].mxu0
  %v2874 = vadd.f32 %v245, %v2873
  %v2875 = vpop.f32.mrb[0].mxu0
  %2876 = vmatprep.mubr.f32.mxu0 0.0
  %2877 = vmatmul.mubr.f32.gmra.mrb[0].mxu0 %v2767
  %v2878 = vpop.f32.mrb[0].mxu0
  %v2879 = vadd.f32 %v246, %v2878
  %v2880 = vpop.f32.mrb[0].mxu0
  %2881 = vmatprep.mubr.f32.mxu0 0.0
  %2882 = vmatmul.mubr.f32.gmra.mrb[0].mxu0 %v2769
  %v2883 = vpop.f32.mrb[0].mxu0
  %v2884 = vadd.f32 %v247, %v2883
  %v2885 = vpop.f32.mrb[0].mxu0
  %2886 = vmatprep.mubr.f32.mxu0 0.0
  %2887 = vmatmul.mubr.f32.gmra.mrb[0].mxu0 %v2771
  %v2888 = vpop.f32.mrb[0].mxu0
  %v2889 = vadd.f32 %v248, %v2888
  %v2890 = vpop.f32.mrb[0].mxu0
  %2891 = vmatprep.mubr.f32.mxu0 0.0
  %2892 = vmatmul.mubr.f32.gmra.mrb[0].mxu0 %v2773
  %v2893 = vpop.f32.mrb[0].mxu0
  %v2894 = vadd.f32 %v249, %v2893
  %v2895 = vpop.f32.mrb[0].mxu0
  %2896 = vmatprep.mubr.f32.mxu0 0.0
  %2897 = vmatmul.mubr.f32.gmra.mrb[0].mxu0 %v2775
  %v2898 = vpop.f32.mrb[0].mxu0
  %v2899 = vadd.f32 %v250, %v2898
  %v2900 = vpop.f32.mrb[0].mxu0
  %2901 = vmatprep.mubr.f32.mxu0 0.0
  %2902 = vmatmul.mubr.f32.gmra.mrb[0].mxu0 %v2777
  %v2903 = vpop.f32.mrb[0].mxu0
  %v2904 = vadd.f32 %v251, %v2903
  %v2905 = vpop.f32.mrb[0].mxu0
  %2906 = vdwg.mxu0
  %v2907 = vsel %vm439, %v2864, -inf
  %2908 = vmax.xlane.f32.xlu0 %v2907
  %v2909 = vpop.xlane.xlu0 %2908
  %v2910 = vsel %vm439, %v2869, -inf
  %2911 = vmax.xlane.f32.xlu0 %v2910
  %v2912 = vpop.xlane.xlu0 %2911
  %v2913 = vsel %vm439, %v2874, -inf
  %2914 = vmax.xlane.f32.xlu0 %v2913
  %v2915 = vpop.xlane.xlu0 %2914
  %v2916 = vsel %vm439, %v2879, -inf
  %2917 = vmax.xlane.f32.xlu0 %v2916
  %v2918 = vpop.xlane.xlu0 %2917
  %v2919 = vsel %vm439, %v2884, -inf
  %2920 = vmax.xlane.f32.xlu0 %v2919
  %v2921 = vpop.xlane.xlu0 %2920
  %v2922 = vsel %vm439, %v2889, -inf
  %2923 = vmax.xlane.f32.xlu0 %v2922
  %v2924 = vpop.xlane.xlu0 %2923
  %v2925 = vsel %vm439, %v2894, -inf
  %2926 = vmax.xlane.f32.xlu0 %v2925
  %v2927 = vpop.xlane.xlu0 %2926
  %v2928 = vsel %vm439, %v2899, -inf
  %2929 = vmax.xlane.f32.xlu0 %v2928
  %v2930 = vpop.xlane.xlu0 %2929
  %v2931 = vsel %vm439, %v2904, -inf
  %2932 = vmax.xlane.f32.xlu0 %v2931
  %v2933 = vpop.xlane.xlu0 %2932
  %v2934 = vsub.f32 %v2864, %v2909
  %v2935 = vsub.f32 %v2869, %v2912
  %v2936 = vsub.f32 %v2874, %v2915
  %v2937 = vsub.f32 %v2879, %v2918
  %v2938 = vsub.f32 %v2884, %v2921
  %v2939 = vsub.f32 %v2889, %v2924
  %v2940 = vsub.f32 %v2894, %v2927
  %v2941 = vsub.f32 %v2899, %v2930
  %v2942 = vsub.f32 %v2904, %v2933
  %v2943 = vmul.f32 %v2934, 1.442695
  %v2944 = vpow.pop %v2943
  %v2945 = vmul.f32 %v2935, 1.442695
  %v2946 = vpow.pop %v2945
  %v2947 = vmul.f32 %v2936, 1.442695
  %v2948 = vpow.pop %v2947
  %v2949 = vmul.f32 %v2937, 1.442695
  %v2950 = vpow.pop %v2949
  %v2951 = vmul.f32 %v2938, 1.442695
  %v2952 = vpow.pop %v2951
  %v2953 = vmul.f32 %v2939, 1.442695
  %v2954 = vpow.pop %v2953
  %v2955 = vmul.f32 %v2940, 1.442695
  %v2956 = vpow.pop %v2955
  %v2957 = vmul.f32 %v2941, 1.442695
  %v2958 = vpow.pop %v2957
  %v2959 = vmul.f32 %v2942, 1.442695
  %v2960 = vpow.pop %v2959
  %v2961 = vsel %vm439, %v2944, 0.0
  %2962 = vadd.xlane.f32.xlu0 %v2961
  %v2963 = vpop.xlane.xlu0 %2962
  %v2964 = vsel %vm439, %v2946, 0.0
  %2965 = vadd.xlane.f32.xlu0 %v2964
  %v2966 = vpop.xlane.xlu0 %2965
  %v2967 = vsel %vm439, %v2948, 0.0
  %2968 = vadd.xlane.f32.xlu0 %v2967
  %v2969 = vpop.xlane.xlu0 %2968
  %v2970 = vsel %vm439, %v2950, 0.0
  %2971 = vadd.xlane.f32.xlu0 %v2970
  %v2972 = vpop.xlane.xlu0 %2971
  %v2973 = vsel %vm439, %v2952, 0.0
  %2974 = vadd.xlane.f32.xlu0 %v2973
  %v2975 = vpop.xlane.xlu0 %2974
  %v2976 = vsel %vm439, %v2954, 0.0
  %2977 = vadd.xlane.f32.xlu0 %v2976
  %v2978 = vpop.xlane.xlu0 %2977
  %v2979 = vsel %vm439, %v2956, 0.0
  %2980 = vadd.xlane.f32.xlu0 %v2979
  %v2981 = vpop.xlane.xlu0 %2980
  %v2982 = vsel %vm439, %v2958, 0.0
  %2983 = vadd.xlane.f32.xlu0 %v2982
  %v2984 = vpop.xlane.xlu0 %2983
  %v2985 = vsel %vm439, %v2960, 0.0
  %2986 = vadd.xlane.f32.xlu0 %v2985
  %v2987 = vpop.xlane.xlu0 %2986
  %v2988 = vrcp.pop %v2963
  %v2989 = vrcp.pop %v2966
  %v2990 = vrcp.pop %v2969
  %v2991 = vrcp.pop %v2972
  %v2992 = vrcp.pop %v2975
  %v2993 = vrcp.pop %v2978
  %v2994 = vrcp.pop %v2981
  %v2995 = vrcp.pop %v2984
  %v2996 = vrcp.pop %v2987
  %v2997 = vmul.f32 %v2963, %v2988
  %v2998 = vmul.f32 %v2966, %v2989
  %v2999 = vmul.f32 %v2969, %v2990
  %v3000 = vmul.f32 %v2972, %v2991
  %v3001 = vmul.f32 %v2975, %v2992
  %v3002 = vmul.f32 %v2978, %v2993
  %v3003 = vmul.f32 %v2981, %v2994
  %v3004 = vmul.f32 %v2984, %v2995
  %v3005 = vmul.f32 %v2987, %v2996
  %v3006 = vsub.f32 2.0, %v2997
  %v3007 = vsub.f32 2.0, %v2998
  %v3008 = vsub.f32 2.0, %v2999
  %v3009 = vsub.f32 2.0, %v3000
  %v3010 = vsub.f32 2.0, %v3001
  %v3011 = vsub.f32 2.0, %v3002
  %v3012 = vsub.f32 2.0, %v3003
  %v3013 = vsub.f32 2.0, %v3004
  %v3014 = vsub.f32 2.0, %v3005
  %v3015 = vmul.f32 %v2988, %v3006
  %v3016 = vmul.f32 %v2989, %v3007
  %v3017 = vmul.f32 %v2990, %v3008
  %v3018 = vmul.f32 %v2991, %v3009
  %v3019 = vmul.f32 %v2992, %v3010
  %v3020 = vmul.f32 %v2993, %v3011
  %v3021 = vmul.f32 %v2994, %v3012
  %v3022 = vmul.f32 %v2995, %v3013
  %v3023 = vmul.f32 %v2996, %v3014
  %3024 = vrot.lane.b32.xlu0 %v141, 48
  %v3025 = vpop.permute.xlu0 %3024
  %3026 = vrot.lane.b32.xlu0 %v146, 48
  %v3027 = vpop.permute.xlu0 %3026
  %3028 = vrot.lane.b32.xlu0 %v151, 48
  %v3029 = vpop.permute.xlu0 %3028
  %3030 = vrot.lane.b32.xlu0 %v156, 48
  %v3031 = vpop.permute.xlu0 %3030
  %3032 = vrot.lane.b32.xlu0 %v161, 48
  %v3033 = vpop.permute.xlu0 %3032
  %3034 = vrot.lane.b32.xlu0 %v166, 48
  %v3035 = vpop.permute.xlu0 %3034
  %3036 = vrot.lane.b32.xlu0 %v171, 48
  %v3037 = vpop.permute.xlu0 %3036
  %3038 = vrot.lane.b32.xlu0 %v176, 48
  %v3039 = vpop.permute.xlu0 %3038
  %3040 = vrot.lane.b32.xlu0 %v181, 48
  %v3041 = vpop.permute.xlu0 %3040
  %v3052 = vsel %vm439, %v2944, 0
  %v3055 = vsel %vm439, %v2946, 0
  %v3058 = vsel %vm439, %v2948, 0
  %v3061 = vsel %vm439, %v2950, 0
  %v3064 = vsel %vm439, %v2952, 0
  %v3067 = vsel %vm439, %v2954, 0
  %v3070 = vsel %vm439, %v2956, 0
  %v3073 = vsel %vm439, %v2958, 0
  %v3076 = vsel %vm439, %v2960, 0
  %3078 = vmatprep.subr.mxu0 0.0
  %3079 = vmatpush1.msra.mxu0 %v3025
  %3080 = vmatprep.subr.mxu0 0.0
  %3081 = vmatpush1.msra.mxu0 %v3027
  %3082 = vmatprep.subr.mxu0 0.0
  %3083 = vmatpush1.msra.mxu0 %v3029
  %3084 = vmatprep.subr.mxu0 0.0
  %3085 = vmatpush1.msra.mxu0 %v3031
  %3086 = vmatprep.subr.mxu0 0.0
  %3087 = vmatpush1.msra.mxu0 %v3033
  %3088 = vmatprep.subr.mxu0 0.0
  %3089 = vmatpush1.msra.mxu0 %v3035
  %3090 = vmatprep.subr.mxu0 0.0
  %3091 = vmatpush1.msra.mxu0 %v3037
  %3092 = vmatprep.subr.mxu0 0.0
  %3093 = vmatpush1.msra.mxu0 %v3039
  %3094 = vmatprep.subr.mxu0 0.0
  %3095 = vmatpush1.msra.mxu0 %v3041
  %3096 = vmatprep.subr.mxu0 0.0
  %3097 = vmatpush1.msra.mxu0 0.0
  %3098 = vmatprep.subr.mxu0 0.0
  %3099 = vmatpush1.msra.mxu0 0.0
  %3100 = vmatprep.subr.mxu0 0.0
  %3101 = vmatpush1.msra.mxu0 0.0
  %3102 = vmatprep.subr.mxu0 0.0
  %3103 = vmatpush1.msra.mxu0 0.0
  %3104 = vmatprep.subr.mxu0 0.0
  %3105 = vmatpush1.msra.mxu0 0.0
  %3106 = vmatprep.subr.mxu0 0.0
  %3107 = vmatpush1.msra.mxu0 0.0
  %3108 = vmatprep.subr.mxu0 0.0
  %3109 = vmatpush1.msra.mxu0 0.0
  %3110 = vmatprep.subr.mxu0 0.0
  %3111 = vmatpush1.msra.mxu0 0.0
  %3112 = vmatprep.subr.mxu0 0.0
  %3113 = vmatpush1.msra.mxu0 0.0
  %3114 = vmatprep.subr.mxu0 0.0
  %3115 = vmatpush1.msra.mxu0 0.0
  %3116 = vmatprep.subr.mxu0 0.0
  %3117 = vmatpush1.msra.mxu0 0.0
  %3118 = vmatprep.subr.mxu0 0.0
  %3119 = vmatpush1.msra.mxu0 0.0
  %3120 = vmatprep.subr.mxu0 0.0
  %3121 = vmatpush1.msra.mxu0 0.0
  %3122 = vmatprep.subr.mxu0 0.0
  %3123 = vmatpush1.msra.mxu0 0.0
  %3124 = vmatprep.subr.mxu0 0.0
  %3125 = vmatpush1.msra.mxu0 0.0
  %3126 = vmatprep.subr.mxu0 0.0
  %3127 = vmatpush1.msra.mxu0 0.0
  %3128 = vmatprep.subr.mxu0 0.0
  %3129 = vmatpush1.msra.mxu0 0.0
  %3130 = vmatprep.subr.mxu0 0.0
  %3131 = vmatpush1.msra.mxu0 0.0
  %3132 = vmatprep.subr.mxu0 0.0
  %3133 = vmatpush1.msra.mxu0 0.0
  %3134 = vmatprep.subr.mxu0 0.0
  %3135 = vmatpush1.msra.mxu0 0.0
  %3136 = vmatprep.subr.mxu0 0.0
  %3137 = vmatpush1.msra.mxu0 0.0
  %3138 = vmatprep.subr.mxu0 0.0
  %3139 = vmatpush1.msra.mxu0 0.0
  %3140 = vmatprep.subr.mxu0 0.0
  %3141 = vmatpush1.msra.mxu0 0.0
  %3142 = vmatprep.mubr.f32.mxu0 0.0
  %3143 = vmatmul.mubr.f32.gmra.mrb[0].mxu0 %v3052
  %v3144 = vpop.f32.mrb[0].mxu0
  %v3145 = vadd.f32 0.0, %v3144
  %v3146 = vpop.f32.mrb[0].mxu0
  %3147 = vmatprep.mubr.f32.mxu0 0.0
  %3148 = vmatmul.mubr.f32.gmra.mrb[0].mxu0 %v3055
  %v3149 = vpop.f32.mrb[0].mxu0
  %v3150 = vadd.f32 0.0, %v3149
  %v3151 = vpop.f32.mrb[0].mxu0
  %3152 = vmatprep.mubr.f32.mxu0 0.0
  %3153 = vmatmul.mubr.f32.gmra.mrb[0].mxu0 %v3058
  %v3154 = vpop.f32.mrb[0].mxu0
  %v3155 = vadd.f32 0.0, %v3154
  %v3156 = vpop.f32.mrb[0].mxu0
  %3157 = vmatprep.mubr.f32.mxu0 0.0
  %3158 = vmatmul.mubr.f32.gmra.mrb[0].mxu0 %v3061
  %v3159 = vpop.f32.mrb[0].mxu0
  %v3160 = vadd.f32 0.0, %v3159
  %v3161 = vpop.f32.mrb[0].mxu0
  %3162 = vmatprep.mubr.f32.mxu0 0.0
  %3163 = vmatmul.mubr.f32.gmra.mrb[0].mxu0 %v3064
  %v3164 = vpop.f32.mrb[0].mxu0
  %v3165 = vadd.f32 0.0, %v3164
  %v3166 = vpop.f32.mrb[0].mxu0
  %3167 = vmatprep.mubr.f32.mxu0 0.0
  %3168 = vmatmul.mubr.f32.gmra.mrb[0].mxu0 %v3067
  %v3169 = vpop.f32.mrb[0].mxu0
  %v3170 = vadd.f32 0.0, %v3169
  %v3171 = vpop.f32.mrb[0].mxu0
  %3172 = vmatprep.mubr.f32.mxu0 0.0
  %3173 = vmatmul.mubr.f32.gmra.mrb[0].mxu0 %v3070
  %v3174 = vpop.f32.mrb[0].mxu0
  %v3175 = vadd.f32 0.0, %v3174
  %v3176 = vpop.f32.mrb[0].mxu0
  %3177 = vmatprep.mubr.f32.mxu0 0.0
  %3178 = vmatmul.mubr.f32.gmra.mrb[0].mxu0 %v3073
  %v3179 = vpop.f32.mrb[0].mxu0
  %v3180 = vadd.f32 0.0, %v3179
  %v3181 = vpop.f32.mrb[0].mxu0
  %3182 = vmatprep.mubr.f32.mxu0 0.0
  %3183 = vmatmul.mubr.f32.gmra.mrb[0].mxu0 %v3076
  %v3184 = vpop.f32.mrb[0].mxu0
  %v3185 = vadd.f32 0.0, %v3184
  %v3186 = vpop.f32.mrb[0].mxu0
  %3187 = vdwg.mxu0
  %v3188 = vmul.f32 %v3145, %v3015
  %v3189 = vmul.f32 %v3150, %v3016
  %v3190 = vmul.f32 %v3155, %v3017
  %v3191 = vmul.f32 %v3160, %v3018
  %v3192 = vmul.f32 %v3165, %v3019
  %v3193 = vmul.f32 %v3170, %v3020
  %v3194 = vmul.f32 %v3175, %v3021
  %v3195 = vmul.f32 %v3180, %v3022
  %v3196 = vmul.f32 %v3185, %v3023
  %v3198 = vsel %vm283, %v3188, 0
  %v3201 = vsel %vm283, %v3189, 0
  %v3204 = vsel %vm283, %v3190, 0
  %v3207 = vsel %vm283, %v3191, 0
  %v3210 = vsel %vm283, %v3192, 0
  %v3213 = vsel %vm283, %v3193, 0
  %v3216 = vsel %vm283, %v3194, 0
  %v3219 = vsel %vm283, %v3195, 0
  %v3222 = vsel %vm283, %v3196, 0
  %v3225 = vsel %vm1231, %v254, 0
  %3227 = vmatprep.subr.mxu0 0.0
  %3228 = vmatpush1.msra.mxu0 %v3225
  %3229 = vmatprep.subr.mxu0 0.0
  %3230 = vmatpush1.msra.mxu0 0.0
  %3231 = vmatprep.subr.mxu0 0.0
  %3232 = vmatpush1.msra.mxu0 0.0
  %3233 = vmatprep.subr.mxu0 0.0
  %3234 = vmatpush1.msra.mxu0 0.0
  %3235 = vmatprep.subr.mxu0 0.0
  %3236 = vmatpush1.msra.mxu0 0.0
  %3237 = vmatprep.subr.mxu0 0.0
  %3238 = vmatpush1.msra.mxu0 0.0
  %3239 = vmatprep.subr.mxu0 0.0
  %3240 = vmatpush1.msra.mxu0 0.0
  %3241 = vmatprep.subr.mxu0 0.0
  %3242 = vmatpush1.msra.mxu0 0.0
  %3243 = vmatprep.subr.mxu0 0.0
  %3244 = vmatpush1.msra.mxu0 0.0
  %3245 = vmatprep.subr.mxu0 0.0
  %3246 = vmatpush1.msra.mxu0 0.0
  %3247 = vmatprep.subr.mxu0 0.0
  %3248 = vmatpush1.msra.mxu0 0.0
  %3249 = vmatprep.subr.mxu0 0.0
  %3250 = vmatpush1.msra.mxu0 0.0
  %3251 = vmatprep.subr.mxu0 0.0
  %3252 = vmatpush1.msra.mxu0 0.0
  %3253 = vmatprep.subr.mxu0 0.0
  %3254 = vmatpush1.msra.mxu0 0.0
  %3255 = vmatprep.subr.mxu0 0.0
  %3256 = vmatpush1.msra.mxu0 0.0
  %3257 = vmatprep.subr.mxu0 0.0
  %3258 = vmatpush1.msra.mxu0 0.0
  %3259 = vmatprep.subr.mxu0 0.0
  %3260 = vmatpush1.msra.mxu0 0.0
  %3261 = vmatprep.subr.mxu0 0.0
  %3262 = vmatpush1.msra.mxu0 0.0
  %3263 = vmatprep.subr.mxu0 0.0
  %3264 = vmatpush1.msra.mxu0 0.0
  %3265 = vmatprep.subr.mxu0 0.0
  %3266 = vmatpush1.msra.mxu0 0.0
  %3267 = vmatprep.subr.mxu0 0.0
  %3268 = vmatpush1.msra.mxu0 0.0
  %3269 = vmatprep.subr.mxu0 0.0
  %3270 = vmatpush1.msra.mxu0 0.0
  %3271 = vmatprep.subr.mxu0 0.0
  %3272 = vmatpush1.msra.mxu0 0.0
  %3273 = vmatprep.subr.mxu0 0.0
  %3274 = vmatpush1.msra.mxu0 0.0
  %3275 = vmatprep.subr.mxu0 0.0
  %3276 = vmatpush1.msra.mxu0 0.0
  %3277 = vmatprep.subr.mxu0 0.0
  %3278 = vmatpush1.msra.mxu0 0.0
  %3279 = vmatprep.subr.mxu0 0.0
  %3280 = vmatpush1.msra.mxu0 0.0
  %3281 = vmatprep.subr.mxu0 0.0
  %3282 = vmatpush1.msra.mxu0 0.0
  %3283 = vmatprep.subr.mxu0 0.0
  %3284 = vmatpush1.msra.mxu0 0.0
  %3285 = vmatprep.subr.mxu0 0.0
  %3286 = vmatpush1.msra.mxu0 0.0
  %3287 = vmatprep.subr.mxu0 0.0
  %3288 = vmatpush1.msra.mxu0 0.0
  %3289 = vmatprep.subr.mxu0 0.0
  %3290 = vmatpush1.msra.mxu0 0.0
  %3291 = vmatprep.mubr.f32.mxu0 0.0
  %3292 = vmatmul.mubr.f32.gmra.mrb[0].mxu0 %v3198
  %v3293 = vpop.f32.mrb[0].mxu0
  %v3294 = vadd.f32 0.0, %v3293
  %v3295 = vpop.f32.mrb[0].mxu0
  %3296 = vmatprep.mubr.f32.mxu0 0.0
  %3297 = vmatmul.mubr.f32.gmra.mrb[0].mxu0 %v3201
  %v3298 = vpop.f32.mrb[0].mxu0
  %v3299 = vadd.f32 0.0, %v3298
  %v3300 = vpop.f32.mrb[0].mxu0
  %3301 = vmatprep.mubr.f32.mxu0 0.0
  %3302 = vmatmul.mubr.f32.gmra.mrb[0].mxu0 %v3204
  %v3303 = vpop.f32.mrb[0].mxu0
  %v3304 = vadd.f32 0.0, %v3303
  %v3305 = vpop.f32.mrb[0].mxu0
  %3306 = vmatprep.mubr.f32.mxu0 0.0
  %3307 = vmatmul.mubr.f32.gmra.mrb[0].mxu0 %v3207
  %v3308 = vpop.f32.mrb[0].mxu0
  %v3309 = vadd.f32 0.0, %v3308
  %v3310 = vpop.f32.mrb[0].mxu0
  %3311 = vmatprep.mubr.f32.mxu0 0.0
  %3312 = vmatmul.mubr.f32.gmra.mrb[0].mxu0 %v3210
  %v3313 = vpop.f32.mrb[0].mxu0
  %v3314 = vadd.f32 0.0, %v3313
  %v3315 = vpop.f32.mrb[0].mxu0
  %3316 = vmatprep.mubr.f32.mxu0 0.0
  %3317 = vmatmul.mubr.f32.gmra.mrb[0].mxu0 %v3213
  %v3318 = vpop.f32.mrb[0].mxu0
  %v3319 = vadd.f32 0.0, %v3318
  %v3320 = vpop.f32.mrb[0].mxu0
  %3321 = vmatprep.mubr.f32.mxu0 0.0
  %3322 = vmatmul.mubr.f32.gmra.mrb[0].mxu0 %v3216
  %v3323 = vpop.f32.mrb[0].mxu0
  %v3324 = vadd.f32 0.0, %v3323
  %v3325 = vpop.f32.mrb[0].mxu0
  %3326 = vmatprep.mubr.f32.mxu0 0.0
  %3327 = vmatmul.mubr.f32.gmra.mrb[0].mxu0 %v3219
  %v3328 = vpop.f32.mrb[0].mxu0
  %v3329 = vadd.f32 0.0, %v3328
  %v3330 = vpop.f32.mrb[0].mxu0
  %3331 = vmatprep.mubr.f32.mxu0 0.0
  %3332 = vmatmul.mubr.f32.gmra.mrb[0].mxu0 %v3222
  %v3333 = vpop.f32.mrb[0].mxu0
  %v3334 = vadd.f32 0.0, %v3333
  %v3335 = vpop.f32.mrb[0].mxu0
  %3336 = vdwg.mxu0
  %v3337 = vadd.f32 %v2716, %v3294
  %v3338 = vadd.f32 %v2717, %v3299
  %v3339 = vadd.f32 %v2718, %v3304
  %v3340 = vadd.f32 %v2719, %v3309
  %v3341 = vadd.f32 %v2720, %v3314
  %v3342 = vadd.f32 %v2721, %v3319
  %v3343 = vadd.f32 %v2722, %v3324
  %v3344 = vadd.f32 %v2723, %v3329
  %v3345 = vadd.f32 %v2724, %v3334
  %3346 = vrot.lane.b32.xlu0 %v184, 108
  %v3347 = vpop.permute.xlu0 %3346
  %3348 = vrot.lane.b32.xlu0 %v185, 108
  %v3349 = vpop.permute.xlu0 %3348
  %3350 = vrot.lane.b32.xlu0 %v186, 108
  %v3351 = vpop.permute.xlu0 %3350
  %3352 = vrot.lane.b32.xlu0 %v187, 108
  %v3353 = vpop.permute.xlu0 %3352
  %3354 = vrot.lane.b32.xlu0 %v188, 108
  %v3355 = vpop.permute.xlu0 %3354
  %3356 = vrot.lane.b32.xlu0 %v189, 108
  %v3357 = vpop.permute.xlu0 %3356
  %3358 = vrot.lane.b32.xlu0 %v190, 108
  %v3359 = vpop.permute.xlu0 %3358
  %3360 = vrot.lane.b32.xlu0 %v191, 108
  %v3361 = vpop.permute.xlu0 %3360
  %3362 = vrot.lane.b32.xlu0 %v192, 108
  %v3363 = vpop.permute.xlu0 %3362
  %3364 = vrot.lane.b32.xlu0 %v141, 76
  %v3365 = vpop.permute.xlu0 %3364
  %3366 = vrot.lane.b32.xlu0 %v146, 76
  %v3367 = vpop.permute.xlu0 %3366
  %3368 = vrot.lane.b32.xlu0 %v151, 76
  %v3369 = vpop.permute.xlu0 %3368
  %3370 = vrot.lane.b32.xlu0 %v156, 76
  %v3371 = vpop.permute.xlu0 %3370
  %3372 = vrot.lane.b32.xlu0 %v161, 76
  %v3373 = vpop.permute.xlu0 %3372
  %3374 = vrot.lane.b32.xlu0 %v166, 76
  %v3375 = vpop.permute.xlu0 %3374
  %3376 = vrot.lane.b32.xlu0 %v171, 76
  %v3377 = vpop.permute.xlu0 %3376
  %3378 = vrot.lane.b32.xlu0 %v176, 76
  %v3379 = vpop.permute.xlu0 %3378
  %3380 = vrot.lane.b32.xlu0 %v181, 76
  %v3381 = vpop.permute.xlu0 %3380
  %v3382 = vsel %vm283, %v3347, 0
  %v3384 = vsel %vm283, %v3349, 0
  %v3386 = vsel %vm283, %v3351, 0
  %v3388 = vsel %vm283, %v3353, 0
  %v3390 = vsel %vm283, %v3355, 0
  %v3392 = vsel %vm283, %v3357, 0
  %v3394 = vsel %vm283, %v3359, 0
  %v3396 = vsel %vm283, %v3361, 0
  %v3398 = vsel %vm283, %v3363, 0
  %v3400 = vsel %vm283, %v3365, 0
  %v3402 = vsel %vm283, %v3367, 0
  %v3404 = vsel %vm283, %v3369, 0
  %v3406 = vsel %vm283, %v3371, 0
  %v3408 = vsel %vm283, %v3373, 0
  %v3410 = vsel %vm283, %v3375, 0
  %v3412 = vsel %vm283, %v3377, 0
  %v3414 = vsel %vm283, %v3379, 0
  %v3416 = vsel %vm283, %v3381, 0
  %3418 = vmatprep.subr.mxu0 0.0
  %3419 = vmatpush1.xpose.msra.mxu0 %v3400
  %3420 = vmatprep.subr.mxu0 0.0
  %3421 = vmatpush1.xpose.msra.mxu0 %v3402
  %3422 = vmatprep.subr.mxu0 0.0
  %3423 = vmatpush1.xpose.msra.mxu0 %v3404
  %3424 = vmatprep.subr.mxu0 0.0
  %3425 = vmatpush1.xpose.msra.mxu0 %v3406
  %3426 = vmatprep.subr.mxu0 0.0
  %3427 = vmatpush1.xpose.msra.mxu0 %v3408
  %3428 = vmatprep.subr.mxu0 0.0
  %3429 = vmatpush1.xpose.msra.mxu0 %v3410
  %3430 = vmatprep.subr.mxu0 0.0
  %3431 = vmatpush1.xpose.msra.mxu0 %v3412
  %3432 = vmatprep.subr.mxu0 0.0
  %3433 = vmatpush1.xpose.msra.mxu0 %v3414
  %3434 = vmatprep.subr.mxu0 0.0
  %3435 = vmatpush1.xpose.msra.mxu0 %v3416
  %3436 = vmatprep.subr.mxu0 0.0
  %3437 = vmatpush1.xpose.msra.mxu0 0.0
  %3438 = vmatprep.subr.mxu0 0.0
  %3439 = vmatpush1.xpose.msra.mxu0 0.0
  %3440 = vmatprep.subr.mxu0 0.0
  %3441 = vmatpush1.xpose.msra.mxu0 0.0
  %3442 = vmatprep.subr.mxu0 0.0
  %3443 = vmatpush1.xpose.msra.mxu0 0.0
  %3444 = vmatprep.subr.mxu0 0.0
  %3445 = vmatpush1.xpose.msra.mxu0 0.0
  %3446 = vmatprep.subr.mxu0 0.0
  %3447 = vmatpush1.xpose.msra.mxu0 0.0
  %3448 = vmatprep.subr.mxu0 0.0
  %3449 = vmatpush1.xpose.msra.mxu0 0.0
  %3450 = vmatprep.subr.mxu0 0.0
  %3451 = vmatpush1.xpose.msra.mxu0 0.0
  %3452 = vmatprep.subr.mxu0 0.0
  %3453 = vmatpush1.xpose.msra.mxu0 0.0
  %3454 = vmatprep.subr.mxu0 0.0
  %3455 = vmatpush1.xpose.msra.mxu0 0.0
  %3456 = vmatprep.subr.mxu0 0.0
  %3457 = vmatpush1.xpose.msra.mxu0 0.0
  %3458 = vmatprep.subr.mxu0 0.0
  %3459 = vmatpush1.xpose.msra.mxu0 0.0
  %3460 = vmatprep.subr.mxu0 0.0
  %3461 = vmatpush1.xpose.msra.mxu0 0.0
  %3462 = vmatprep.subr.mxu0 0.0
  %3463 = vmatpush1.xpose.msra.mxu0 0.0
  %3464 = vmatprep.subr.mxu0 0.0
  %3465 = vmatpush1.xpose.msra.mxu0 0.0
  %3466 = vmatprep.subr.mxu0 0.0
  %3467 = vmatpush1.xpose.msra.mxu0 0.0
  %3468 = vmatprep.subr.mxu0 0.0
  %3469 = vmatpush1.xpose.msra.mxu0 0.0
  %3470 = vmatprep.subr.mxu0 0.0
  %3471 = vmatpush1.xpose.msra.mxu0 0.0
  %3472 = vmatprep.subr.mxu0 0.0
  %3473 = vmatpush1.xpose.msra.mxu0 0.0
  %3474 = vmatprep.subr.mxu0 0.0
  %3475 = vmatpush1.xpose.msra.mxu0 0.0
  %3476 = vmatprep.subr.mxu0 0.0
  %3477 = vmatpush1.xpose.msra.mxu0 0.0
  %3478 = vmatprep.subr.mxu0 0.0
  %3479 = vmatpush1.xpose.msra.mxu0 0.0
  %3480 = vmatprep.subr.mxu0 0.0
  %3481 = vmatpush1.xpose.msra.mxu0 0.0
  %3482 = vmatprep.mubr.f32.mxu0 0.0
  %3483 = vmatmul.mubr.f32.gmra.mrb[0].mxu0 %v3382
  %v3484 = vpop.f32.mrb[0].mxu0
  %v3485 = vadd.f32 %v243, %v3484
  %v3486 = vpop.f32.mrb[0].mxu0
  %3487 = vmatprep.mubr.f32.mxu0 0.0
  %3488 = vmatmul.mubr.f32.gmra.mrb[0].mxu0 %v3384
  %v3489 = vpop.f32.mrb[0].mxu0
  %v3490 = vadd.f32 %v244, %v3489
  %v3491 = vpop.f32.mrb[0].mxu0
  %3492 = vmatprep.mubr.f32.mxu0 0.0
  %3493 = vmatmul.mubr.f32.gmra.mrb[0].mxu0 %v3386
  %v3494 = vpop.f32.mrb[0].mxu0
  %v3495 = vadd.f32 %v245, %v3494
  %v3496 = vpop.f32.mrb[0].mxu0
  %3497 = vmatprep.mubr.f32.mxu0 0.0
  %3498 = vmatmul.mubr.f32.gmra.mrb[0].mxu0 %v3388
  %v3499 = vpop.f32.mrb[0].mxu0
  %v3500 = vadd.f32 %v246, %v3499
  %v3501 = vpop.f32.mrb[0].mxu0
  %3502 = vmatprep.mubr.f32.mxu0 0.0
  %3503 = vmatmul.mubr.f32.gmra.mrb[0].mxu0 %v3390
  %v3504 = vpop.f32.mrb[0].mxu0
  %v3505 = vadd.f32 %v247, %v3504
  %v3506 = vpop.f32.mrb[0].mxu0
  %3507 = vmatprep.mubr.f32.mxu0 0.0
  %3508 = vmatmul.mubr.f32.gmra.mrb[0].mxu0 %v3392
  %v3509 = vpop.f32.mrb[0].mxu0
  %v3510 = vadd.f32 %v248, %v3509
  %v3511 = vpop.f32.mrb[0].mxu0
  %3512 = vmatprep.mubr.f32.mxu0 0.0
  %3513 = vmatmul.mubr.f32.gmra.mrb[0].mxu0 %v3394
  %v3514 = vpop.f32.mrb[0].mxu0
  %v3515 = vadd.f32 %v249, %v3514
  %v3516 = vpop.f32.mrb[0].mxu0
  %3517 = vmatprep.mubr.f32.mxu0 0.0
  %3518 = vmatmul.mubr.f32.gmra.mrb[0].mxu0 %v3396
  %v3519 = vpop.f32.mrb[0].mxu0
  %v3520 = vadd.f32 %v250, %v3519
  %v3521 = vpop.f32.mrb[0].mxu0
  %3522 = vmatprep.mubr.f32.mxu0 0.0
  %3523 = vmatmul.mubr.f32.gmra.mrb[0].mxu0 %v3398
  %v3524 = vpop.f32.mrb[0].mxu0
  %v3525 = vadd.f32 %v251, %v3524
  %v3526 = vpop.f32.mrb[0].mxu0
  %3527 = vdwg.mxu0
  %v3528 = vsel %vm439, %v3485, -inf
  %3529 = vmax.xlane.f32.xlu0 %v3528
  %v3530 = vpop.xlane.xlu0 %3529
  %v3531 = vsel %vm439, %v3490, -inf
  %3532 = vmax.xlane.f32.xlu0 %v3531
  %v3533 = vpop.xlane.xlu0 %3532
  %v3534 = vsel %vm439, %v3495, -inf
  %3535 = vmax.xlane.f32.xlu0 %v3534
  %v3536 = vpop.xlane.xlu0 %3535
  %v3537 = vsel %vm439, %v3500, -inf
  %3538 = vmax.xlane.f32.xlu0 %v3537
  %v3539 = vpop.xlane.xlu0 %3538
  %v3540 = vsel %vm439, %v3505, -inf
  %3541 = vmax.xlane.f32.xlu0 %v3540
  %v3542 = vpop.xlane.xlu0 %3541
  %v3543 = vsel %vm439, %v3510, -inf
  %3544 = vmax.xlane.f32.xlu0 %v3543
  %v3545 = vpop.xlane.xlu0 %3544
  %v3546 = vsel %vm439, %v3515, -inf
  %3547 = vmax.xlane.f32.xlu0 %v3546
  %v3548 = vpop.xlane.xlu0 %3547
  %v3549 = vsel %vm439, %v3520, -inf
  %3550 = vmax.xlane.f32.xlu0 %v3549
  %v3551 = vpop.xlane.xlu0 %3550
  %v3552 = vsel %vm439, %v3525, -inf
  %3553 = vmax.xlane.f32.xlu0 %v3552
  %v3554 = vpop.xlane.xlu0 %3553
  %v3555 = vsub.f32 %v3485, %v3530
  %v3556 = vsub.f32 %v3490, %v3533
  %v3557 = vsub.f32 %v3495, %v3536
  %v3558 = vsub.f32 %v3500, %v3539
  %v3559 = vsub.f32 %v3505, %v3542
  %v3560 = vsub.f32 %v3510, %v3545
  %v3561 = vsub.f32 %v3515, %v3548
  %v3562 = vsub.f32 %v3520, %v3551
  %v3563 = vsub.f32 %v3525, %v3554
  %v3564 = vmul.f32 %v3555, 1.442695
  %v3565 = vpow.pop %v3564
  %v3566 = vmul.f32 %v3556, 1.442695
  %v3567 = vpow.pop %v3566
  %v3568 = vmul.f32 %v3557, 1.442695
  %v3569 = vpow.pop %v3568
  %v3570 = vmul.f32 %v3558, 1.442695
  %v3571 = vpow.pop %v3570
  %v3572 = vmul.f32 %v3559, 1.442695
  %v3573 = vpow.pop %v3572
  %v3574 = vmul.f32 %v3560, 1.442695
  %v3575 = vpow.pop %v3574
  %v3576 = vmul.f32 %v3561, 1.442695
  %v3577 = vpow.pop %v3576
  %v3578 = vmul.f32 %v3562, 1.442695
  %v3579 = vpow.pop %v3578
  %v3580 = vmul.f32 %v3563, 1.442695
  %v3581 = vpow.pop %v3580
  %v3582 = vsel %vm439, %v3565, 0.0
  %3583 = vadd.xlane.f32.xlu0 %v3582
  %v3584 = vpop.xlane.xlu0 %3583
  %v3585 = vsel %vm439, %v3567, 0.0
  %3586 = vadd.xlane.f32.xlu0 %v3585
  %v3587 = vpop.xlane.xlu0 %3586
  %v3588 = vsel %vm439, %v3569, 0.0
  %3589 = vadd.xlane.f32.xlu0 %v3588
  %v3590 = vpop.xlane.xlu0 %3589
  %v3591 = vsel %vm439, %v3571, 0.0
  %3592 = vadd.xlane.f32.xlu0 %v3591
  %v3593 = vpop.xlane.xlu0 %3592
  %v3594 = vsel %vm439, %v3573, 0.0
  %3595 = vadd.xlane.f32.xlu0 %v3594
  %v3596 = vpop.xlane.xlu0 %3595
  %v3597 = vsel %vm439, %v3575, 0.0
  %3598 = vadd.xlane.f32.xlu0 %v3597
  %v3599 = vpop.xlane.xlu0 %3598
  %v3600 = vsel %vm439, %v3577, 0.0
  %3601 = vadd.xlane.f32.xlu0 %v3600
  %v3602 = vpop.xlane.xlu0 %3601
  %v3603 = vsel %vm439, %v3579, 0.0
  %3604 = vadd.xlane.f32.xlu0 %v3603
  %v3605 = vpop.xlane.xlu0 %3604
  %v3606 = vsel %vm439, %v3581, 0.0
  %3607 = vadd.xlane.f32.xlu0 %v3606
  %v3608 = vpop.xlane.xlu0 %3607
  %v3609 = vrcp.pop %v3584
  %v3610 = vrcp.pop %v3587
  %v3611 = vrcp.pop %v3590
  %v3612 = vrcp.pop %v3593
  %v3613 = vrcp.pop %v3596
  %v3614 = vrcp.pop %v3599
  %v3615 = vrcp.pop %v3602
  %v3616 = vrcp.pop %v3605
  %v3617 = vrcp.pop %v3608
  %v3618 = vmul.f32 %v3584, %v3609
  %v3619 = vmul.f32 %v3587, %v3610
  %v3620 = vmul.f32 %v3590, %v3611
  %v3621 = vmul.f32 %v3593, %v3612
  %v3622 = vmul.f32 %v3596, %v3613
  %v3623 = vmul.f32 %v3599, %v3614
  %v3624 = vmul.f32 %v3602, %v3615
  %v3625 = vmul.f32 %v3605, %v3616
  %v3626 = vmul.f32 %v3608, %v3617
  %v3627 = vsub.f32 2.0, %v3618
  %v3628 = vsub.f32 2.0, %v3619
  %v3629 = vsub.f32 2.0, %v3620
  %v3630 = vsub.f32 2.0, %v3621
  %v3631 = vsub.f32 2.0, %v3622
  %v3632 = vsub.f32 2.0, %v3623
  %v3633 = vsub.f32 2.0, %v3624
  %v3634 = vsub.f32 2.0, %v3625
  %v3635 = vsub.f32 2.0, %v3626
  %v3636 = vmul.f32 %v3609, %v3627
  %v3637 = vmul.f32 %v3610, %v3628
  %v3638 = vmul.f32 %v3611, %v3629
  %v3639 = vmul.f32 %v3612, %v3630
  %v3640 = vmul.f32 %v3613, %v3631
  %v3641 = vmul.f32 %v3614, %v3632
  %v3642 = vmul.f32 %v3615, %v3633
  %v3643 = vmul.f32 %v3616, %v3634
  %v3644 = vmul.f32 %v3617, %v3635
  %3645 = vrot.lane.b32.xlu0 %v141, 44
  %v3646 = vpop.permute.xlu0 %3645
  %3647 = vrot.lane.b32.xlu0 %v146, 44
  %v3648 = vpop.permute.xlu0 %3647
  %3649 = vrot.lane.b32.xlu0 %v151, 44
  %v3650 = vpop.permute.xlu0 %3649
  %3651 = vrot.lane.b32.xlu0 %v156, 44
  %v3652 = vpop.permute.xlu0 %3651
  %3653 = vrot.lane.b32.xlu0 %v161, 44
  %v3654 = vpop.permute.xlu0 %3653
  %3655 = vrot.lane.b32.xlu0 %v166, 44
  %v3656 = vpop.permute.xlu0 %3655
  %3657 = vrot.lane.b32.xlu0 %v171, 44
  %v3658 = vpop.permute.xlu0 %3657
  %3659 = vrot.lane.b32.xlu0 %v176, 44
  %v3660 = vpop.permute.xlu0 %3659
  %3661 = vrot.lane.b32.xlu0 %v181, 44
  %v3662 = vpop.permute.xlu0 %3661
  %v3673 = vsel %vm439, %v3565, 0
  %v3676 = vsel %vm439, %v3567, 0
  %v3679 = vsel %vm439, %v3569, 0
  %v3682 = vsel %vm439, %v3571, 0
  %v3685 = vsel %vm439, %v3573, 0
  %v3688 = vsel %vm439, %v3575, 0
  %v3691 = vsel %vm439, %v3577, 0
  %v3694 = vsel %vm439, %v3579, 0
  %v3697 = vsel %vm439, %v3581, 0
  %3699 = vmatprep.subr.mxu0 0.0
  %3700 = vmatpush1.msra.mxu0 %v3646
  %3701 = vmatprep.subr.mxu0 0.0
  %3702 = vmatpush1.msra.mxu0 %v3648
  %3703 = vmatprep.subr.mxu0 0.0
  %3704 = vmatpush1.msra.mxu0 %v3650
  %3705 = vmatprep.subr.mxu0 0.0
  %3706 = vmatpush1.msra.mxu0 %v3652
  %3707 = vmatprep.subr.mxu0 0.0
  %3708 = vmatpush1.msra.mxu0 %v3654
  %3709 = vmatprep.subr.mxu0 0.0
  %3710 = vmatpush1.msra.mxu0 %v3656
  %3711 = vmatprep.subr.mxu0 0.0
  %3712 = vmatpush1.msra.mxu0 %v3658
  %3713 = vmatprep.subr.mxu0 0.0
  %3714 = vmatpush1.msra.mxu0 %v3660
  %3715 = vmatprep.subr.mxu0 0.0
  %3716 = vmatpush1.msra.mxu0 %v3662
  %3717 = vmatprep.subr.mxu0 0.0
  %3718 = vmatpush1.msra.mxu0 0.0
  %3719 = vmatprep.subr.mxu0 0.0
  %3720 = vmatpush1.msra.mxu0 0.0
  %3721 = vmatprep.subr.mxu0 0.0
  %3722 = vmatpush1.msra.mxu0 0.0
  %3723 = vmatprep.subr.mxu0 0.0
  %3724 = vmatpush1.msra.mxu0 0.0
  %3725 = vmatprep.subr.mxu0 0.0
  %3726 = vmatpush1.msra.mxu0 0.0
  %3727 = vmatprep.subr.mxu0 0.0
  %3728 = vmatpush1.msra.mxu0 0.0
  %3729 = vmatprep.subr.mxu0 0.0
  %3730 = vmatpush1.msra.mxu0 0.0
  %3731 = vmatprep.subr.mxu0 0.0
  %3732 = vmatpush1.msra.mxu0 0.0
  %3733 = vmatprep.subr.mxu0 0.0
  %3734 = vmatpush1.msra.mxu0 0.0
  %3735 = vmatprep.subr.mxu0 0.0
  %3736 = vmatpush1.msra.mxu0 0.0
  %3737 = vmatprep.subr.mxu0 0.0
  %3738 = vmatpush1.msra.mxu0 0.0
  %3739 = vmatprep.subr.mxu0 0.0
  %3740 = vmatpush1.msra.mxu0 0.0
  %3741 = vmatprep.subr.mxu0 0.0
  %3742 = vmatpush1.msra.mxu0 0.0
  %3743 = vmatprep.subr.mxu0 0.0
  %3744 = vmatpush1.msra.mxu0 0.0
  %3745 = vmatprep.subr.mxu0 0.0
  %3746 = vmatpush1.msra.mxu0 0.0
  %3747 = vmatprep.subr.mxu0 0.0
  %3748 = vmatpush1.msra.mxu0 0.0
  %3749 = vmatprep.subr.mxu0 0.0
  %3750 = vmatpush1.msra.mxu0 0.0
  %3751 = vmatprep.subr.mxu0 0.0
  %3752 = vmatpush1.msra.mxu0 0.0
  %3753 = vmatprep.subr.mxu0 0.0
  %3754 = vmatpush1.msra.mxu0 0.0
  %3755 = vmatprep.subr.mxu0 0.0
  %3756 = vmatpush1.msra.mxu0 0.0
  %3757 = vmatprep.subr.mxu0 0.0
  %3758 = vmatpush1.msra.mxu0 0.0
  %3759 = vmatprep.subr.mxu0 0.0
  %3760 = vmatpush1.msra.mxu0 0.0
  %3761 = vmatprep.subr.mxu0 0.0
  %3762 = vmatpush1.msra.mxu0 0.0
  %3763 = vmatprep.mubr.f32.mxu0 0.0
  %3764 = vmatmul.mubr.f32.gmra.mrb[0].mxu0 %v3673
  %v3765 = vpop.f32.mrb[0].mxu0
  %v3766 = vadd.f32 0.0, %v3765
  %v3767 = vpop.f32.mrb[0].mxu0
  %3768 = vmatprep.mubr.f32.mxu0 0.0
  %3769 = vmatmul.mubr.f32.gmra.mrb[0].mxu0 %v3676
  %v3770 = vpop.f32.mrb[0].mxu0
  %v3771 = vadd.f32 0.0, %v3770
  %v3772 = vpop.f32.mrb[0].mxu0
  %3773 = vmatprep.mubr.f32.mxu0 0.0
  %3774 = vmatmul.mubr.f32.gmra.mrb[0].mxu0 %v3679
  %v3775 = vpop.f32.mrb[0].mxu0
  %v3776 = vadd.f32 0.0, %v3775
  %v3777 = vpop.f32.mrb[0].mxu0
  %3778 = vmatprep.mubr.f32.mxu0 0.0
  %3779 = vmatmul.mubr.f32.gmra.mrb[0].mxu0 %v3682
  %v3780 = vpop.f32.mrb[0].mxu0
  %v3781 = vadd.f32 0.0, %v3780
  %v3782 = vpop.f32.mrb[0].mxu0
  %3783 = vmatprep.mubr.f32.mxu0 0.0
  %3784 = vmatmul.mubr.f32.gmra.mrb[0].mxu0 %v3685
  %v3785 = vpop.f32.mrb[0].mxu0
  %v3786 = vadd.f32 0.0, %v3785
  %v3787 = vpop.f32.mrb[0].mxu0
  %3788 = vmatprep.mubr.f32.mxu0 0.0
  %3789 = vmatmul.mubr.f32.gmra.mrb[0].mxu0 %v3688
  %v3790 = vpop.f32.mrb[0].mxu0
  %v3791 = vadd.f32 0.0, %v3790
  %v3792 = vpop.f32.mrb[0].mxu0
  %3793 = vmatprep.mubr.f32.mxu0 0.0
  %3794 = vmatmul.mubr.f32.gmra.mrb[0].mxu0 %v3691
  %v3795 = vpop.f32.mrb[0].mxu0
  %v3796 = vadd.f32 0.0, %v3795
  %v3797 = vpop.f32.mrb[0].mxu0
  %3798 = vmatprep.mubr.f32.mxu0 0.0
  %3799 = vmatmul.mubr.f32.gmra.mrb[0].mxu0 %v3694
  %v3800 = vpop.f32.mrb[0].mxu0
  %v3801 = vadd.f32 0.0, %v3800
  %v3802 = vpop.f32.mrb[0].mxu0
  %3803 = vmatprep.mubr.f32.mxu0 0.0
  %3804 = vmatmul.mubr.f32.gmra.mrb[0].mxu0 %v3697
  %v3805 = vpop.f32.mrb[0].mxu0
  %v3806 = vadd.f32 0.0, %v3805
  %v3807 = vpop.f32.mrb[0].mxu0
  %3808 = vdwg.mxu0
  %v3809 = vmul.f32 %v3766, %v3636
  %v3810 = vmul.f32 %v3771, %v3637
  %v3811 = vmul.f32 %v3776, %v3638
  %v3812 = vmul.f32 %v3781, %v3639
  %v3813 = vmul.f32 %v3786, %v3640
  %v3814 = vmul.f32 %v3791, %v3641
  %v3815 = vmul.f32 %v3796, %v3642
  %v3816 = vmul.f32 %v3801, %v3643
  %v3817 = vmul.f32 %v3806, %v3644
  %v3818 = vrot.slane %v254, 4
  %v3820 = vsel %vm283, %v3809, 0
  %v3823 = vsel %vm283, %v3810, 0
  %v3826 = vsel %vm283, %v3811, 0
  %v3829 = vsel %vm283, %v3812, 0
  %v3832 = vsel %vm283, %v3813, 0
  %v3835 = vsel %vm283, %v3814, 0
  %v3838 = vsel %vm283, %v3815, 0
  %v3841 = vsel %vm283, %v3816, 0
  %v3844 = vsel %vm283, %v3817, 0
  %v3846 = vsel %vm1231, %v3818, 0
  %3848 = vmatprep.subr.mxu0 0.0
  %3849 = vmatpush1.msra.mxu0 %v3846
  %3850 = vmatprep.subr.mxu0 0.0
  %3851 = vmatpush1.msra.mxu0 0.0
  %3852 = vmatprep.subr.mxu0 0.0
  %3853 = vmatpush1.msra.mxu0 0.0
  %3854 = vmatprep.subr.mxu0 0.0
  %3855 = vmatpush1.msra.mxu0 0.0
  %3856 = vmatprep.subr.mxu0 0.0
  %3857 = vmatpush1.msra.mxu0 0.0
  %3858 = vmatprep.subr.mxu0 0.0
  %3859 = vmatpush1.msra.mxu0 0.0
  %3860 = vmatprep.subr.mxu0 0.0
  %3861 = vmatpush1.msra.mxu0 0.0
  %3862 = vmatprep.subr.mxu0 0.0
  %3863 = vmatpush1.msra.mxu0 0.0
  %3864 = vmatprep.subr.mxu0 0.0
  %3865 = vmatpush1.msra.mxu0 0.0
  %3866 = vmatprep.subr.mxu0 0.0
  %3867 = vmatpush1.msra.mxu0 0.0
  %3868 = vmatprep.subr.mxu0 0.0
  %3869 = vmatpush1.msra.mxu0 0.0
  %3870 = vmatprep.subr.mxu0 0.0
  %3871 = vmatpush1.msra.mxu0 0.0
  %3872 = vmatprep.subr.mxu0 0.0
  %3873 = vmatpush1.msra.mxu0 0.0
  %3874 = vmatprep.subr.mxu0 0.0
  %3875 = vmatpush1.msra.mxu0 0.0
  %3876 = vmatprep.subr.mxu0 0.0
  %3877 = vmatpush1.msra.mxu0 0.0
  %3878 = vmatprep.subr.mxu0 0.0
  %3879 = vmatpush1.msra.mxu0 0.0
  %3880 = vmatprep.subr.mxu0 0.0
  %3881 = vmatpush1.msra.mxu0 0.0
  %3882 = vmatprep.subr.mxu0 0.0
  %3883 = vmatpush1.msra.mxu0 0.0
  %3884 = vmatprep.subr.mxu0 0.0
  %3885 = vmatpush1.msra.mxu0 0.0
  %3886 = vmatprep.subr.mxu0 0.0
  %3887 = vmatpush1.msra.mxu0 0.0
  %3888 = vmatprep.subr.mxu0 0.0
  %3889 = vmatpush1.msra.mxu0 0.0
  %3890 = vmatprep.subr.mxu0 0.0
  %3891 = vmatpush1.msra.mxu0 0.0
  %3892 = vmatprep.subr.mxu0 0.0
  %3893 = vmatpush1.msra.mxu0 0.0
  %3894 = vmatprep.subr.mxu0 0.0
  %3895 = vmatpush1.msra.mxu0 0.0
  %3896 = vmatprep.subr.mxu0 0.0
  %3897 = vmatpush1.msra.mxu0 0.0
  %3898 = vmatprep.subr.mxu0 0.0
  %3899 = vmatpush1.msra.mxu0 0.0
  %3900 = vmatprep.subr.mxu0 0.0
  %3901 = vmatpush1.msra.mxu0 0.0
  %3902 = vmatprep.subr.mxu0 0.0
  %3903 = vmatpush1.msra.mxu0 0.0
  %3904 = vmatprep.subr.mxu0 0.0
  %3905 = vmatpush1.msra.mxu0 0.0
  %3906 = vmatprep.subr.mxu0 0.0
  %3907 = vmatpush1.msra.mxu0 0.0
  %3908 = vmatprep.subr.mxu0 0.0
  %3909 = vmatpush1.msra.mxu0 0.0
  %3910 = vmatprep.subr.mxu0 0.0
  %3911 = vmatpush1.msra.mxu0 0.0
  %3912 = vmatprep.mubr.f32.mxu0 0.0
  %3913 = vmatmul.mubr.f32.gmra.mrb[0].mxu0 %v3820
  %v3914 = vpop.f32.mrb[0].mxu0
  %v3915 = vadd.f32 0.0, %v3914
  %v3916 = vpop.f32.mrb[0].mxu0
  %3917 = vmatprep.mubr.f32.mxu0 0.0
  %3918 = vmatmul.mubr.f32.gmra.mrb[0].mxu0 %v3823
  %v3919 = vpop.f32.mrb[0].mxu0
  %v3920 = vadd.f32 0.0, %v3919
  %v3921 = vpop.f32.mrb[0].mxu0
  %3922 = vmatprep.mubr.f32.mxu0 0.0
  %3923 = vmatmul.mubr.f32.gmra.mrb[0].mxu0 %v3826
  %v3924 = vpop.f32.mrb[0].mxu0
  %v3925 = vadd.f32 0.0, %v3924
  %v3926 = vpop.f32.mrb[0].mxu0
  %3927 = vmatprep.mubr.f32.mxu0 0.0
  %3928 = vmatmul.mubr.f32.gmra.mrb[0].mxu0 %v3829
  %v3929 = vpop.f32.mrb[0].mxu0
  %v3930 = vadd.f32 0.0, %v3929
  %v3931 = vpop.f32.mrb[0].mxu0
  %3932 = vmatprep.mubr.f32.mxu0 0.0
  %3933 = vmatmul.mubr.f32.gmra.mrb[0].mxu0 %v3832
  %v3934 = vpop.f32.mrb[0].mxu0
  %v3935 = vadd.f32 0.0, %v3934
  %v3936 = vpop.f32.mrb[0].mxu0
  %3937 = vmatprep.mubr.f32.mxu0 0.0
  %3938 = vmatmul.mubr.f32.gmra.mrb[0].mxu0 %v3835
  %v3939 = vpop.f32.mrb[0].mxu0
  %v3940 = vadd.f32 0.0, %v3939
  %v3941 = vpop.f32.mrb[0].mxu0
  %3942 = vmatprep.mubr.f32.mxu0 0.0
  %3943 = vmatmul.mubr.f32.gmra.mrb[0].mxu0 %v3838
  %v3944 = vpop.f32.mrb[0].mxu0
  %v3945 = vadd.f32 0.0, %v3944
  %v3946 = vpop.f32.mrb[0].mxu0
  %3947 = vmatprep.mubr.f32.mxu0 0.0
  %3948 = vmatmul.mubr.f32.gmra.mrb[0].mxu0 %v3841
  %v3949 = vpop.f32.mrb[0].mxu0
  %v3950 = vadd.f32 0.0, %v3949
  %v3951 = vpop.f32.mrb[0].mxu0
  %3952 = vmatprep.mubr.f32.mxu0 0.0
  %3953 = vmatmul.mubr.f32.gmra.mrb[0].mxu0 %v3844
  %v3954 = vpop.f32.mrb[0].mxu0
  %v3955 = vadd.f32 0.0, %v3954
  %v3956 = vpop.f32.mrb[0].mxu0
  %3957 = vdwg.mxu0
  %v3958 = vadd.f32 %v3337, %v3915
  %v3959 = vadd.f32 %v3338, %v3920
  %v3960 = vadd.f32 %v3339, %v3925
  %v3961 = vadd.f32 %v3340, %v3930
  %v3962 = vadd.f32 %v3341, %v3935
  %v3963 = vadd.f32 %v3342, %v3940
  %v3964 = vadd.f32 %v3343, %v3945
  %v3965 = vadd.f32 %v3344, %v3950
  %v3966 = vadd.f32 %v3345, %v3955
  %3967 = vrot.lane.b32.xlu0 %v184, 104
  %v3968 = vpop.permute.xlu0 %3967
  %3969 = vrot.lane.b32.xlu0 %v185, 104
  %v3970 = vpop.permute.xlu0 %3969
  %3971 = vrot.lane.b32.xlu0 %v186, 104
  %v3972 = vpop.permute.xlu0 %3971
  %3973 = vrot.lane.b32.xlu0 %v187, 104
  %v3974 = vpop.permute.xlu0 %3973
  %3975 = vrot.lane.b32.xlu0 %v188, 104
  %v3976 = vpop.permute.xlu0 %3975
  %3977 = vrot.lane.b32.xlu0 %v189, 104
  %v3978 = vpop.permute.xlu0 %3977
  %3979 = vrot.lane.b32.xlu0 %v190, 104
  %v3980 = vpop.permute.xlu0 %3979
  %3981 = vrot.lane.b32.xlu0 %v191, 104
  %v3982 = vpop.permute.xlu0 %3981
  %3983 = vrot.lane.b32.xlu0 %v192, 104
  %v3984 = vpop.permute.xlu0 %3983
  %3985 = vrot.lane.b32.xlu0 %v141, 72
  %v3986 = vpop.permute.xlu0 %3985
  %3987 = vrot.lane.b32.xlu0 %v146, 72
  %v3988 = vpop.permute.xlu0 %3987
  %3989 = vrot.lane.b32.xlu0 %v151, 72
  %v3990 = vpop.permute.xlu0 %3989
  %3991 = vrot.lane.b32.xlu0 %v156, 72
  %v3992 = vpop.permute.xlu0 %3991
  %3993 = vrot.lane.b32.xlu0 %v161, 72
  %v3994 = vpop.permute.xlu0 %3993
  %3995 = vrot.lane.b32.xlu0 %v166, 72
  %v3996 = vpop.permute.xlu0 %3995
  %3997 = vrot.lane.b32.xlu0 %v171, 72
  %v3998 = vpop.permute.xlu0 %3997
  %3999 = vrot.lane.b32.xlu0 %v176, 72
  %v4000 = vpop.permute.xlu0 %3999
  %4001 = vrot.lane.b32.xlu0 %v181, 72
  %v4002 = vpop.permute.xlu0 %4001
  %v4003 = vsel %vm283, %v3968, 0
  %v4005 = vsel %vm283, %v3970, 0
  %v4007 = vsel %vm283, %v3972, 0
  %v4009 = vsel %vm283, %v3974, 0
  %v4011 = vsel %vm283, %v3976, 0
  %v4013 = vsel %vm283, %v3978, 0
  %v4015 = vsel %vm283, %v3980, 0
  %v4017 = vsel %vm283, %v3982, 0
  %v4019 = vsel %vm283, %v3984, 0
  %v4021 = vsel %vm283, %v3986, 0
  %v4023 = vsel %vm283, %v3988, 0
  %v4025 = vsel %vm283, %v3990, 0
  %v4027 = vsel %vm283, %v3992, 0
  %v4029 = vsel %vm283, %v3994, 0
  %v4031 = vsel %vm283, %v3996, 0
  %v4033 = vsel %vm283, %v3998, 0
  %v4035 = vsel %vm283, %v4000, 0
  %v4037 = vsel %vm283, %v4002, 0
  %4039 = vmatprep.subr.mxu0 0.0
  %4040 = vmatpush1.xpose.msra.mxu0 %v4021
  %4041 = vmatprep.subr.mxu0 0.0
  %4042 = vmatpush1.xpose.msra.mxu0 %v4023
  %4043 = vmatprep.subr.mxu0 0.0
  %4044 = vmatpush1.xpose.msra.mxu0 %v4025
  %4045 = vmatprep.subr.mxu0 0.0
  %4046 = vmatpush1.xpose.msra.mxu0 %v4027
  %4047 = vmatprep.subr.mxu0 0.0
  %4048 = vmatpush1.xpose.msra.mxu0 %v4029
  %4049 = vmatprep.subr.mxu0 0.0
  %4050 = vmatpush1.xpose.msra.mxu0 %v4031
  %4051 = vmatprep.subr.mxu0 0.0
  %4052 = vmatpush1.xpose.msra.mxu0 %v4033
  %4053 = vmatprep.subr.mxu0 0.0
  %4054 = vmatpush1.xpose.msra.mxu0 %v4035
  %4055 = vmatprep.subr.mxu0 0.0
  %4056 = vmatpush1.xpose.msra.mxu0 %v4037
  %4057 = vmatprep.subr.mxu0 0.0
  %4058 = vmatpush1.xpose.msra.mxu0 0.0
  %4059 = vmatprep.subr.mxu0 0.0
  %4060 = vmatpush1.xpose.msra.mxu0 0.0
  %4061 = vmatprep.subr.mxu0 0.0
  %4062 = vmatpush1.xpose.msra.mxu0 0.0
  %4063 = vmatprep.subr.mxu0 0.0
  %4064 = vmatpush1.xpose.msra.mxu0 0.0
  %4065 = vmatprep.subr.mxu0 0.0
  %4066 = vmatpush1.xpose.msra.mxu0 0.0
  %4067 = vmatprep.subr.mxu0 0.0
  %4068 = vmatpush1.xpose.msra.mxu0 0.0
  %4069 = vmatprep.subr.mxu0 0.0
  %4070 = vmatpush1.xpose.msra.mxu0 0.0
  %4071 = vmatprep.subr.mxu0 0.0
  %4072 = vmatpush1.xpose.msra.mxu0 0.0
  %4073 = vmatprep.subr.mxu0 0.0
  %4074 = vmatpush1.xpose.msra.mxu0 0.0
  %4075 = vmatprep.subr.mxu0 0.0
  %4076 = vmatpush1.xpose.msra.mxu0 0.0
  %4077 = vmatprep.subr.mxu0 0.0
  %4078 = vmatpush1.xpose.msra.mxu0 0.0
  %4079 = vmatprep.subr.mxu0 0.0
  %4080 = vmatpush1.xpose.msra.mxu0 0.0
  %4081 = vmatprep.subr.mxu0 0.0
  %4082 = vmatpush1.xpose.msra.mxu0 0.0
  %4083 = vmatprep.subr.mxu0 0.0
  %4084 = vmatpush1.xpose.msra.mxu0 0.0
  %4085 = vmatprep.subr.mxu0 0.0
  %4086 = vmatpush1.xpose.msra.mxu0 0.0
  %4087 = vmatprep.subr.mxu0 0.0
  %4088 = vmatpush1.xpose.msra.mxu0 0.0
  %4089 = vmatprep.subr.mxu0 0.0
  %4090 = vmatpush1.xpose.msra.mxu0 0.0
  %4091 = vmatprep.subr.mxu0 0.0
  %4092 = vmatpush1.xpose.msra.mxu0 0.0
  %4093 = vmatprep.subr.mxu0 0.0
  %4094 = vmatpush1.xpose.msra.mxu0 0.0
  %4095 = vmatprep.subr.mxu0 0.0
  %4096 = vmatpush1.xpose.msra.mxu0 0.0
  %4097 = vmatprep.subr.mxu0 0.0
  %4098 = vmatpush1.xpose.msra.mxu0 0.0
  %4099 = vmatprep.subr.mxu0 0.0
  %4100 = vmatpush1.xpose.msra.mxu0 0.0
  %4101 = vmatprep.subr.mxu0 0.0
  %4102 = vmatpush1.xpose.msra.mxu0 0.0
  %4103 = vmatprep.mubr.f32.mxu0 0.0
  %4104 = vmatmul.mubr.f32.gmra.mrb[0].mxu0 %v4003
  %v4105 = vpop.f32.mrb[0].mxu0
  %v4106 = vadd.f32 %v243, %v4105
  %v4107 = vpop.f32.mrb[0].mxu0
  %4108 = vmatprep.mubr.f32.mxu0 0.0
  %4109 = vmatmul.mubr.f32.gmra.mrb[0].mxu0 %v4005
  %v4110 = vpop.f32.mrb[0].mxu0
  %v4111 = vadd.f32 %v244, %v4110
  %v4112 = vpop.f32.mrb[0].mxu0
  %4113 = vmatprep.mubr.f32.mxu0 0.0
  %4114 = vmatmul.mubr.f32.gmra.mrb[0].mxu0 %v4007
  %v4115 = vpop.f32.mrb[0].mxu0
  %v4116 = vadd.f32 %v245, %v4115
  %v4117 = vpop.f32.mrb[0].mxu0
  %4118 = vmatprep.mubr.f32.mxu0 0.0
  %4119 = vmatmul.mubr.f32.gmra.mrb[0].mxu0 %v4009
  %v4120 = vpop.f32.mrb[0].mxu0
  %v4121 = vadd.f32 %v246, %v4120
  %v4122 = vpop.f32.mrb[0].mxu0
  %4123 = vmatprep.mubr.f32.mxu0 0.0
  %4124 = vmatmul.mubr.f32.gmra.mrb[0].mxu0 %v4011
  %v4125 = vpop.f32.mrb[0].mxu0
  %v4126 = vadd.f32 %v247, %v4125
  %v4127 = vpop.f32.mrb[0].mxu0
  %4128 = vmatprep.mubr.f32.mxu0 0.0
  %4129 = vmatmul.mubr.f32.gmra.mrb[0].mxu0 %v4013
  %v4130 = vpop.f32.mrb[0].mxu0
  %v4131 = vadd.f32 %v248, %v4130
  %v4132 = vpop.f32.mrb[0].mxu0
  %4133 = vmatprep.mubr.f32.mxu0 0.0
  %4134 = vmatmul.mubr.f32.gmra.mrb[0].mxu0 %v4015
  %v4135 = vpop.f32.mrb[0].mxu0
  %v4136 = vadd.f32 %v249, %v4135
  %v4137 = vpop.f32.mrb[0].mxu0
  %4138 = vmatprep.mubr.f32.mxu0 0.0
  %4139 = vmatmul.mubr.f32.gmra.mrb[0].mxu0 %v4017
  %v4140 = vpop.f32.mrb[0].mxu0
  %v4141 = vadd.f32 %v250, %v4140
  %v4142 = vpop.f32.mrb[0].mxu0
  %4143 = vmatprep.mubr.f32.mxu0 0.0
  %4144 = vmatmul.mubr.f32.gmra.mrb[0].mxu0 %v4019
  %v4145 = vpop.f32.mrb[0].mxu0
  %v4146 = vadd.f32 %v251, %v4145
  %v4147 = vpop.f32.mrb[0].mxu0
  %4148 = vdwg.mxu0
  %v4149 = vsel %vm439, %v4106, -inf
  %4150 = vmax.xlane.f32.xlu0 %v4149
  %v4151 = vpop.xlane.xlu0 %4150
  %v4152 = vsel %vm439, %v4111, -inf
  %4153 = vmax.xlane.f32.xlu0 %v4152
  %v4154 = vpop.xlane.xlu0 %4153
  %v4155 = vsel %vm439, %v4116, -inf
  %4156 = vmax.xlane.f32.xlu0 %v4155
  %v4157 = vpop.xlane.xlu0 %4156
  %v4158 = vsel %vm439, %v4121, -inf
  %4159 = vmax.xlane.f32.xlu0 %v4158
  %v4160 = vpop.xlane.xlu0 %4159
  %v4161 = vsel %vm439, %v4126, -inf
  %4162 = vmax.xlane.f32.xlu0 %v4161
  %v4163 = vpop.xlane.xlu0 %4162
  %v4164 = vsel %vm439, %v4131, -inf
  %4165 = vmax.xlane.f32.xlu0 %v4164
  %v4166 = vpop.xlane.xlu0 %4165
  %v4167 = vsel %vm439, %v4136, -inf
  %4168 = vmax.xlane.f32.xlu0 %v4167
  %v4169 = vpop.xlane.xlu0 %4168
  %v4170 = vsel %vm439, %v4141, -inf
  %4171 = vmax.xlane.f32.xlu0 %v4170
  %v4172 = vpop.xlane.xlu0 %4171
  %v4173 = vsel %vm439, %v4146, -inf
  %4174 = vmax.xlane.f32.xlu0 %v4173
  %v4175 = vpop.xlane.xlu0 %4174
  %v4176 = vsub.f32 %v4106, %v4151
  %v4177 = vsub.f32 %v4111, %v4154
  %v4178 = vsub.f32 %v4116, %v4157
  %v4179 = vsub.f32 %v4121, %v4160
  %v4180 = vsub.f32 %v4126, %v4163
  %v4181 = vsub.f32 %v4131, %v4166
  %v4182 = vsub.f32 %v4136, %v4169
  %v4183 = vsub.f32 %v4141, %v4172
  %v4184 = vsub.f32 %v4146, %v4175
  %v4185 = vmul.f32 %v4176, 1.442695
  %v4186 = vpow.pop %v4185
  %v4187 = vmul.f32 %v4177, 1.442695
  %v4188 = vpow.pop %v4187
  %v4189 = vmul.f32 %v4178, 1.442695
  %v4190 = vpow.pop %v4189
  %v4191 = vmul.f32 %v4179, 1.442695
  %v4192 = vpow.pop %v4191
  %v4193 = vmul.f32 %v4180, 1.442695
  %v4194 = vpow.pop %v4193
  %v4195 = vmul.f32 %v4181, 1.442695
  %v4196 = vpow.pop %v4195
  %v4197 = vmul.f32 %v4182, 1.442695
  %v4198 = vpow.pop %v4197
  %v4199 = vmul.f32 %v4183, 1.442695
  %v4200 = vpow.pop %v4199
  %v4201 = vmul.f32 %v4184, 1.442695
  %v4202 = vpow.pop %v4201
  %v4203 = vsel %vm439, %v4186, 0.0
  %4204 = vadd.xlane.f32.xlu0 %v4203
  %v4205 = vpop.xlane.xlu0 %4204
  %v4206 = vsel %vm439, %v4188, 0.0
  %4207 = vadd.xlane.f32.xlu0 %v4206
  %v4208 = vpop.xlane.xlu0 %4207
  %v4209 = vsel %vm439, %v4190, 0.0
  %4210 = vadd.xlane.f32.xlu0 %v4209
  %v4211 = vpop.xlane.xlu0 %4210
  %v4212 = vsel %vm439, %v4192, 0.0
  %4213 = vadd.xlane.f32.xlu0 %v4212
  %v4214 = vpop.xlane.xlu0 %4213
  %v4215 = vsel %vm439, %v4194, 0.0
  %4216 = vadd.xlane.f32.xlu0 %v4215
  %v4217 = vpop.xlane.xlu0 %4216
  %v4218 = vsel %vm439, %v4196, 0.0
  %4219 = vadd.xlane.f32.xlu0 %v4218
  %v4220 = vpop.xlane.xlu0 %4219
  %v4221 = vsel %vm439, %v4198, 0.0
  %4222 = vadd.xlane.f32.xlu0 %v4221
  %v4223 = vpop.xlane.xlu0 %4222
  %v4224 = vsel %vm439, %v4200, 0.0
  %4225 = vadd.xlane.f32.xlu0 %v4224
  %v4226 = vpop.xlane.xlu0 %4225
  %v4227 = vsel %vm439, %v4202, 0.0
  %4228 = vadd.xlane.f32.xlu0 %v4227
  %v4229 = vpop.xlane.xlu0 %4228
  %v4230 = vrcp.pop %v4205
  %v4231 = vrcp.pop %v4208
  %v4232 = vrcp.pop %v4211
  %v4233 = vrcp.pop %v4214
  %v4234 = vrcp.pop %v4217
  %v4235 = vrcp.pop %v4220
  %v4236 = vrcp.pop %v4223
  %v4237 = vrcp.pop %v4226
  %v4238 = vrcp.pop %v4229
  %v4239 = vmul.f32 %v4205, %v4230
  %v4240 = vmul.f32 %v4208, %v4231
  %v4241 = vmul.f32 %v4211, %v4232
  %v4242 = vmul.f32 %v4214, %v4233
  %v4243 = vmul.f32 %v4217, %v4234
  %v4244 = vmul.f32 %v4220, %v4235
  %v4245 = vmul.f32 %v4223, %v4236
  %v4246 = vmul.f32 %v4226, %v4237
  %v4247 = vmul.f32 %v4229, %v4238
  %v4248 = vsub.f32 2.0, %v4239
  %v4249 = vsub.f32 2.0, %v4240
  %v4250 = vsub.f32 2.0, %v4241
  %v4251 = vsub.f32 2.0, %v4242
  %v4252 = vsub.f32 2.0, %v4243
  %v4253 = vsub.f32 2.0, %v4244
  %v4254 = vsub.f32 2.0, %v4245
  %v4255 = vsub.f32 2.0, %v4246
  %v4256 = vsub.f32 2.0, %v4247
  %v4257 = vmul.f32 %v4230, %v4248
  %v4258 = vmul.f32 %v4231, %v4249
  %v4259 = vmul.f32 %v4232, %v4250
  %v4260 = vmul.f32 %v4233, %v4251
  %v4261 = vmul.f32 %v4234, %v4252
  %v4262 = vmul.f32 %v4235, %v4253
  %v4263 = vmul.f32 %v4236, %v4254
  %v4264 = vmul.f32 %v4237, %v4255
  %v4265 = vmul.f32 %v4238, %v4256
  %4266 = vrot.lane.b32.xlu0 %v141, 40
  %v4267 = vpop.permute.xlu0 %4266
  %4268 = vrot.lane.b32.xlu0 %v146, 40
  %v4269 = vpop.permute.xlu0 %4268
  %4270 = vrot.lane.b32.xlu0 %v151, 40
  %v4271 = vpop.permute.xlu0 %4270
  %4272 = vrot.lane.b32.xlu0 %v156, 40
  %v4273 = vpop.permute.xlu0 %4272
  %4274 = vrot.lane.b32.xlu0 %v161, 40
  %v4275 = vpop.permute.xlu0 %4274
  %4276 = vrot.lane.b32.xlu0 %v166, 40
  %v4277 = vpop.permute.xlu0 %4276
  %4278 = vrot.lane.b32.xlu0 %v171, 40
  %v4279 = vpop.permute.xlu0 %4278
  %4280 = vrot.lane.b32.xlu0 %v176, 40
  %v4281 = vpop.permute.xlu0 %4280
  %4282 = vrot.lane.b32.xlu0 %v181, 40
  %v4283 = vpop.permute.xlu0 %4282
  %v4294 = vsel %vm439, %v4186, 0
  %v4297 = vsel %vm439, %v4188, 0
  %v4300 = vsel %vm439, %v4190, 0
  %v4303 = vsel %vm439, %v4192, 0
  %v4306 = vsel %vm439, %v4194, 0
  %v4309 = vsel %vm439, %v4196, 0
  %v4312 = vsel %vm439, %v4198, 0
  %v4315 = vsel %vm439, %v4200, 0
  %v4318 = vsel %vm439, %v4202, 0
  %4320 = vmatprep.subr.mxu0 0.0
  %4321 = vmatpush1.msra.mxu0 %v4267
  %4322 = vmatprep.subr.mxu0 0.0
  %4323 = vmatpush1.msra.mxu0 %v4269
  %4324 = vmatprep.subr.mxu0 0.0
  %4325 = vmatpush1.msra.mxu0 %v4271
  %4326 = vmatprep.subr.mxu0 0.0
  %4327 = vmatpush1.msra.mxu0 %v4273
  %4328 = vmatprep.subr.mxu0 0.0
  %4329 = vmatpush1.msra.mxu0 %v4275
  %4330 = vmatprep.subr.mxu0 0.0
  %4331 = vmatpush1.msra.mxu0 %v4277
  %4332 = vmatprep.subr.mxu0 0.0
  %4333 = vmatpush1.msra.mxu0 %v4279
  %4334 = vmatprep.subr.mxu0 0.0
  %4335 = vmatpush1.msra.mxu0 %v4281
  %4336 = vmatprep.subr.mxu0 0.0
  %4337 = vmatpush1.msra.mxu0 %v4283
  %4338 = vmatprep.subr.mxu0 0.0
  %4339 = vmatpush1.msra.mxu0 0.0
  %4340 = vmatprep.subr.mxu0 0.0
  %4341 = vmatpush1.msra.mxu0 0.0
  %4342 = vmatprep.subr.mxu0 0.0
  %4343 = vmatpush1.msra.mxu0 0.0
  %4344 = vmatprep.subr.mxu0 0.0
  %4345 = vmatpush1.msra.mxu0 0.0
  %4346 = vmatprep.subr.mxu0 0.0
  %4347 = vmatpush1.msra.mxu0 0.0
  %4348 = vmatprep.subr.mxu0 0.0
  %4349 = vmatpush1.msra.mxu0 0.0
  %4350 = vmatprep.subr.mxu0 0.0
  %4351 = vmatpush1.msra.mxu0 0.0
  %4352 = vmatprep.subr.mxu0 0.0
  %4353 = vmatpush1.msra.mxu0 0.0
  %4354 = vmatprep.subr.mxu0 0.0
  %4355 = vmatpush1.msra.mxu0 0.0
  %4356 = vmatprep.subr.mxu0 0.0
  %4357 = vmatpush1.msra.mxu0 0.0
  %4358 = vmatprep.subr.mxu0 0.0
  %4359 = vmatpush1.msra.mxu0 0.0
  %4360 = vmatprep.subr.mxu0 0.0
  %4361 = vmatpush1.msra.mxu0 0.0
  %4362 = vmatprep.subr.mxu0 0.0
  %4363 = vmatpush1.msra.mxu0 0.0
  %4364 = vmatprep.subr.mxu0 0.0
  %4365 = vmatpush1.msra.mxu0 0.0
  %4366 = vmatprep.subr.mxu0 0.0
  %4367 = vmatpush1.msra.mxu0 0.0
  %4368 = vmatprep.subr.mxu0 0.0
  %4369 = vmatpush1.msra.mxu0 0.0
  %4370 = vmatprep.subr.mxu0 0.0
  %4371 = vmatpush1.msra.mxu0 0.0
  %4372 = vmatprep.subr.mxu0 0.0
  %4373 = vmatpush1.msra.mxu0 0.0
  %4374 = vmatprep.subr.mxu0 0.0
  %4375 = vmatpush1.msra.mxu0 0.0
  %4376 = vmatprep.subr.mxu0 0.0
  %4377 = vmatpush1.msra.mxu0 0.0
  %4378 = vmatprep.subr.mxu0 0.0
  %4379 = vmatpush1.msra.mxu0 0.0
  %4380 = vmatprep.subr.mxu0 0.0
  %4381 = vmatpush1.msra.mxu0 0.0
  %4382 = vmatprep.subr.mxu0 0.0
  %4383 = vmatpush1.msra.mxu0 0.0
  %4384 = vmatprep.mubr.f32.mxu0 0.0
  %4385 = vmatmul.mubr.f32.gmra.mrb[0].mxu0 %v4294
  %v4386 = vpop.f32.mrb[0].mxu0
  %v4387 = vadd.f32 0.0, %v4386
  %v4388 = vpop.f32.mrb[0].mxu0
  %4389 = vmatprep.mubr.f32.mxu0 0.0
  %4390 = vmatmul.mubr.f32.gmra.mrb[0].mxu0 %v4297
  %v4391 = vpop.f32.mrb[0].mxu0
  %v4392 = vadd.f32 0.0, %v4391
  %v4393 = vpop.f32.mrb[0].mxu0
  %4394 = vmatprep.mubr.f32.mxu0 0.0
  %4395 = vmatmul.mubr.f32.gmra.mrb[0].mxu0 %v4300
  %v4396 = vpop.f32.mrb[0].mxu0
  %v4397 = vadd.f32 0.0, %v4396
  %v4398 = vpop.f32.mrb[0].mxu0
  %4399 = vmatprep.mubr.f32.mxu0 0.0
  %4400 = vmatmul.mubr.f32.gmra.mrb[0].mxu0 %v4303
  %v4401 = vpop.f32.mrb[0].mxu0
  %v4402 = vadd.f32 0.0, %v4401
  %v4403 = vpop.f32.mrb[0].mxu0
  %4404 = vmatprep.mubr.f32.mxu0 0.0
  %4405 = vmatmul.mubr.f32.gmra.mrb[0].mxu0 %v4306
  %v4406 = vpop.f32.mrb[0].mxu0
  %v4407 = vadd.f32 0.0, %v4406
  %v4408 = vpop.f32.mrb[0].mxu0
  %4409 = vmatprep.mubr.f32.mxu0 0.0
  %4410 = vmatmul.mubr.f32.gmra.mrb[0].mxu0 %v4309
  %v4411 = vpop.f32.mrb[0].mxu0
  %v4412 = vadd.f32 0.0, %v4411
  %v4413 = vpop.f32.mrb[0].mxu0
  %4414 = vmatprep.mubr.f32.mxu0 0.0
  %4415 = vmatmul.mubr.f32.gmra.mrb[0].mxu0 %v4312
  %v4416 = vpop.f32.mrb[0].mxu0
  %v4417 = vadd.f32 0.0, %v4416
  %v4418 = vpop.f32.mrb[0].mxu0
  %4419 = vmatprep.mubr.f32.mxu0 0.0
  %4420 = vmatmul.mubr.f32.gmra.mrb[0].mxu0 %v4315
  %v4421 = vpop.f32.mrb[0].mxu0
  %v4422 = vadd.f32 0.0, %v4421
  %v4423 = vpop.f32.mrb[0].mxu0
  %4424 = vmatprep.mubr.f32.mxu0 0.0
  %4425 = vmatmul.mubr.f32.gmra.mrb[0].mxu0 %v4318
  %v4426 = vpop.f32.mrb[0].mxu0
  %v4427 = vadd.f32 0.0, %v4426
  %v4428 = vpop.f32.mrb[0].mxu0
  %4429 = vdwg.mxu0
  %v4430 = vmul.f32 %v4387, %v4257
  %v4431 = vmul.f32 %v4392, %v4258
  %v4432 = vmul.f32 %v4397, %v4259
  %v4433 = vmul.f32 %v4402, %v4260
  %v4434 = vmul.f32 %v4407, %v4261
  %v4435 = vmul.f32 %v4412, %v4262
  %v4436 = vmul.f32 %v4417, %v4263
  %v4437 = vmul.f32 %v4422, %v4264
  %v4438 = vmul.f32 %v4427, %v4265
  %v4440 = vsel %vm283, %v4430, 0
  %v4443 = vsel %vm283, %v4431, 0
  %v4446 = vsel %vm283, %v4432, 0
  %v4449 = vsel %vm283, %v4433, 0
  %v4452 = vsel %vm283, %v4434, 0
  %v4455 = vsel %vm283, %v4435, 0
  %v4458 = vsel %vm283, %v4436, 0
  %v4461 = vsel %vm283, %v4437, 0
  %v4464 = vsel %vm283, %v4438, 0
  %v4467 = vsel %vm1231, %v255, 0
  %4469 = vmatprep.subr.mxu0 0.0
  %4470 = vmatpush1.msra.mxu0 %v4467
  %4471 = vmatprep.subr.mxu0 0.0
  %4472 = vmatpush1.msra.mxu0 0.0
  %4473 = vmatprep.subr.mxu0 0.0
  %4474 = vmatpush1.msra.mxu0 0.0
  %4475 = vmatprep.subr.mxu0 0.0
  %4476 = vmatpush1.msra.mxu0 0.0
  %4477 = vmatprep.subr.mxu0 0.0
  %4478 = vmatpush1.msra.mxu0 0.0
  %4479 = vmatprep.subr.mxu0 0.0
  %4480 = vmatpush1.msra.mxu0 0.0
  %4481 = vmatprep.subr.mxu0 0.0
  %4482 = vmatpush1.msra.mxu0 0.0
  %4483 = vmatprep.subr.mxu0 0.0
  %4484 = vmatpush1.msra.mxu0 0.0
  %4485 = vmatprep.subr.mxu0 0.0
  %4486 = vmatpush1.msra.mxu0 0.0
  %4487 = vmatprep.subr.mxu0 0.0
  %4488 = vmatpush1.msra.mxu0 0.0
  %4489 = vmatprep.subr.mxu0 0.0
  %4490 = vmatpush1.msra.mxu0 0.0
  %4491 = vmatprep.subr.mxu0 0.0
  %4492 = vmatpush1.msra.mxu0 0.0
  %4493 = vmatprep.subr.mxu0 0.0
  %4494 = vmatpush1.msra.mxu0 0.0
  %4495 = vmatprep.subr.mxu0 0.0
  %4496 = vmatpush1.msra.mxu0 0.0
  %4497 = vmatprep.subr.mxu0 0.0
  %4498 = vmatpush1.msra.mxu0 0.0
  %4499 = vmatprep.subr.mxu0 0.0
  %4500 = vmatpush1.msra.mxu0 0.0
  %4501 = vmatprep.subr.mxu0 0.0
  %4502 = vmatpush1.msra.mxu0 0.0
  %4503 = vmatprep.subr.mxu0 0.0
  %4504 = vmatpush1.msra.mxu0 0.0
  %4505 = vmatprep.subr.mxu0 0.0
  %4506 = vmatpush1.msra.mxu0 0.0
  %4507 = vmatprep.subr.mxu0 0.0
  %4508 = vmatpush1.msra.mxu0 0.0
  %4509 = vmatprep.subr.mxu0 0.0
  %4510 = vmatpush1.msra.mxu0 0.0
  %4511 = vmatprep.subr.mxu0 0.0
  %4512 = vmatpush1.msra.mxu0 0.0
  %4513 = vmatprep.subr.mxu0 0.0
  %4514 = vmatpush1.msra.mxu0 0.0
  %4515 = vmatprep.subr.mxu0 0.0
  %4516 = vmatpush1.msra.mxu0 0.0
  %4517 = vmatprep.subr.mxu0 0.0
  %4518 = vmatpush1.msra.mxu0 0.0
  %4519 = vmatprep.subr.mxu0 0.0
  %4520 = vmatpush1.msra.mxu0 0.0
  %4521 = vmatprep.subr.mxu0 0.0
  %4522 = vmatpush1.msra.mxu0 0.0
  %4523 = vmatprep.subr.mxu0 0.0
  %4524 = vmatpush1.msra.mxu0 0.0
  %4525 = vmatprep.subr.mxu0 0.0
  %4526 = vmatpush1.msra.mxu0 0.0
  %4527 = vmatprep.subr.mxu0 0.0
  %4528 = vmatpush1.msra.mxu0 0.0
  %4529 = vmatprep.subr.mxu0 0.0
  %4530 = vmatpush1.msra.mxu0 0.0
  %4531 = vmatprep.subr.mxu0 0.0
  %4532 = vmatpush1.msra.mxu0 0.0
  %4533 = vmatprep.mubr.f32.mxu0 0.0
  %4534 = vmatmul.mubr.f32.gmra.mrb[0].mxu0 %v4440
  %v4535 = vpop.f32.mrb[0].mxu0
  %v4536 = vadd.f32 0.0, %v4535
  %v4537 = vpop.f32.mrb[0].mxu0
  %4538 = vmatprep.mubr.f32.mxu0 0.0
  %4539 = vmatmul.mubr.f32.gmra.mrb[0].mxu0 %v4443
  %v4540 = vpop.f32.mrb[0].mxu0
  %v4541 = vadd.f32 0.0, %v4540
  %v4542 = vpop.f32.mrb[0].mxu0
  %4543 = vmatprep.mubr.f32.mxu0 0.0
  %4544 = vmatmul.mubr.f32.gmra.mrb[0].mxu0 %v4446
  %v4545 = vpop.f32.mrb[0].mxu0
  %v4546 = vadd.f32 0.0, %v4545
  %v4547 = vpop.f32.mrb[0].mxu0
  %4548 = vmatprep.mubr.f32.mxu0 0.0
  %4549 = vmatmul.mubr.f32.gmra.mrb[0].mxu0 %v4449
  %v4550 = vpop.f32.mrb[0].mxu0
  %v4551 = vadd.f32 0.0, %v4550
  %v4552 = vpop.f32.mrb[0].mxu0
  %4553 = vmatprep.mubr.f32.mxu0 0.0
  %4554 = vmatmul.mubr.f32.gmra.mrb[0].mxu0 %v4452
  %v4555 = vpop.f32.mrb[0].mxu0
  %v4556 = vadd.f32 0.0, %v4555
  %v4557 = vpop.f32.mrb[0].mxu0
  %4558 = vmatprep.mubr.f32.mxu0 0.0
  %4559 = vmatmul.mubr.f32.gmra.mrb[0].mxu0 %v4455
  %v4560 = vpop.f32.mrb[0].mxu0
  %v4561 = vadd.f32 0.0, %v4560
  %v4562 = vpop.f32.mrb[0].mxu0
  %4563 = vmatprep.mubr.f32.mxu0 0.0
  %4564 = vmatmul.mubr.f32.gmra.mrb[0].mxu0 %v4458
  %v4565 = vpop.f32.mrb[0].mxu0
  %v4566 = vadd.f32 0.0, %v4565
  %v4567 = vpop.f32.mrb[0].mxu0
  %4568 = vmatprep.mubr.f32.mxu0 0.0
  %4569 = vmatmul.mubr.f32.gmra.mrb[0].mxu0 %v4461
  %v4570 = vpop.f32.mrb[0].mxu0
  %v4571 = vadd.f32 0.0, %v4570
  %v4572 = vpop.f32.mrb[0].mxu0
  %4573 = vmatprep.mubr.f32.mxu0 0.0
  %4574 = vmatmul.mubr.f32.gmra.mrb[0].mxu0 %v4464
  %v4575 = vpop.f32.mrb[0].mxu0
  %v4576 = vadd.f32 0.0, %v4575
  %v4577 = vpop.f32.mrb[0].mxu0
  %4578 = vdwg.mxu0
  %v4579 = vadd.f32 %v3958, %v4536
  %v4580 = vadd.f32 %v3959, %v4541
  %v4581 = vadd.f32 %v3960, %v4546
  %v4582 = vadd.f32 %v3961, %v4551
  %v4583 = vadd.f32 %v3962, %v4556
  %v4584 = vadd.f32 %v3963, %v4561
  %v4585 = vadd.f32 %v3964, %v4566
  %v4586 = vadd.f32 %v3965, %v4571
  %v4587 = vadd.f32 %v3966, %v4576
  %4588 = vrot.lane.b32.xlu0 %v184, 100
  %v4589 = vpop.permute.xlu0 %4588
  %4590 = vrot.lane.b32.xlu0 %v185, 100
  %v4591 = vpop.permute.xlu0 %4590
  %4592 = vrot.lane.b32.xlu0 %v186, 100
  %v4593 = vpop.permute.xlu0 %4592
  %4594 = vrot.lane.b32.xlu0 %v187, 100
  %v4595 = vpop.permute.xlu0 %4594
  %4596 = vrot.lane.b32.xlu0 %v188, 100
  %v4597 = vpop.permute.xlu0 %4596
  %4598 = vrot.lane.b32.xlu0 %v189, 100
  %v4599 = vpop.permute.xlu0 %4598
  %4600 = vrot.lane.b32.xlu0 %v190, 100
  %v4601 = vpop.permute.xlu0 %4600
  %4602 = vrot.lane.b32.xlu0 %v191, 100
  %v4603 = vpop.permute.xlu0 %4602
  %4604 = vrot.lane.b32.xlu0 %v192, 100
  %v4605 = vpop.permute.xlu0 %4604
  %4606 = vrot.lane.b32.xlu0 %v141, 68
  %v4607 = vpop.permute.xlu0 %4606
  %4608 = vrot.lane.b32.xlu0 %v146, 68
  %v4609 = vpop.permute.xlu0 %4608
  %4610 = vrot.lane.b32.xlu0 %v151, 68
  %v4611 = vpop.permute.xlu0 %4610
  %4612 = vrot.lane.b32.xlu0 %v156, 68
  %v4613 = vpop.permute.xlu0 %4612
  %4614 = vrot.lane.b32.xlu0 %v161, 68
  %v4615 = vpop.permute.xlu0 %4614
  %4616 = vrot.lane.b32.xlu0 %v166, 68
  %v4617 = vpop.permute.xlu0 %4616
  %4618 = vrot.lane.b32.xlu0 %v171, 68
  %v4619 = vpop.permute.xlu0 %4618
  %4620 = vrot.lane.b32.xlu0 %v176, 68
  %v4621 = vpop.permute.xlu0 %4620
  %4622 = vrot.lane.b32.xlu0 %v181, 68
  %v4623 = vpop.permute.xlu0 %4622
  %v4624 = vsel %vm283, %v4589, 0
  %v4626 = vsel %vm283, %v4591, 0
  %v4628 = vsel %vm283, %v4593, 0
  %v4630 = vsel %vm283, %v4595, 0
  %v4632 = vsel %vm283, %v4597, 0
  %v4634 = vsel %vm283, %v4599, 0
  %v4636 = vsel %vm283, %v4601, 0
  %v4638 = vsel %vm283, %v4603, 0
  %v4640 = vsel %vm283, %v4605, 0
  %v4642 = vsel %vm283, %v4607, 0
  %v4644 = vsel %vm283, %v4609, 0
  %v4646 = vsel %vm283, %v4611, 0
  %v4648 = vsel %vm283, %v4613, 0
  %v4650 = vsel %vm283, %v4615, 0
  %v4652 = vsel %vm283, %v4617, 0
  %v4654 = vsel %vm283, %v4619, 0
  %v4656 = vsel %vm283, %v4621, 0
  %v4658 = vsel %vm283, %v4623, 0
  %4660 = vmatprep.subr.mxu0 0.0
  %4661 = vmatpush1.xpose.msra.mxu0 %v4642
  %4662 = vmatprep.subr.mxu0 0.0
  %4663 = vmatpush1.xpose.msra.mxu0 %v4644
  %4664 = vmatprep.subr.mxu0 0.0
  %4665 = vmatpush1.xpose.msra.mxu0 %v4646
  %4666 = vmatprep.subr.mxu0 0.0
  %4667 = vmatpush1.xpose.msra.mxu0 %v4648
  %4668 = vmatprep.subr.mxu0 0.0
  %4669 = vmatpush1.xpose.msra.mxu0 %v4650
  %4670 = vmatprep.subr.mxu0 0.0
  %4671 = vmatpush1.xpose.msra.mxu0 %v4652
  %4672 = vmatprep.subr.mxu0 0.0
  %4673 = vmatpush1.xpose.msra.mxu0 %v4654
  %4674 = vmatprep.subr.mxu0 0.0
  %4675 = vmatpush1.xpose.msra.mxu0 %v4656
  %4676 = vmatprep.subr.mxu0 0.0
  %4677 = vmatpush1.xpose.msra.mxu0 %v4658
  %4678 = vmatprep.subr.mxu0 0.0
  %4679 = vmatpush1.xpose.msra.mxu0 0.0
  %4680 = vmatprep.subr.mxu0 0.0
  %4681 = vmatpush1.xpose.msra.mxu0 0.0
  %4682 = vmatprep.subr.mxu0 0.0
  %4683 = vmatpush1.xpose.msra.mxu0 0.0
  %4684 = vmatprep.subr.mxu0 0.0
  %4685 = vmatpush1.xpose.msra.mxu0 0.0
  %4686 = vmatprep.subr.mxu0 0.0
  %4687 = vmatpush1.xpose.msra.mxu0 0.0
  %4688 = vmatprep.subr.mxu0 0.0
  %4689 = vmatpush1.xpose.msra.mxu0 0.0
  %4690 = vmatprep.subr.mxu0 0.0
  %4691 = vmatpush1.xpose.msra.mxu0 0.0
  %4692 = vmatprep.subr.mxu0 0.0
  %4693 = vmatpush1.xpose.msra.mxu0 0.0
  %4694 = vmatprep.subr.mxu0 0.0
  %4695 = vmatpush1.xpose.msra.mxu0 0.0
  %4696 = vmatprep.subr.mxu0 0.0
  %4697 = vmatpush1.xpose.msra.mxu0 0.0
  %4698 = vmatprep.subr.mxu0 0.0
  %4699 = vmatpush1.xpose.msra.mxu0 0.0
  %4700 = vmatprep.subr.mxu0 0.0
  %4701 = vmatpush1.xpose.msra.mxu0 0.0
  %4702 = vmatprep.subr.mxu0 0.0
  %4703 = vmatpush1.xpose.msra.mxu0 0.0
  %4704 = vmatprep.subr.mxu0 0.0
  %4705 = vmatpush1.xpose.msra.mxu0 0.0
  %4706 = vmatprep.subr.mxu0 0.0
  %4707 = vmatpush1.xpose.msra.mxu0 0.0
  %4708 = vmatprep.subr.mxu0 0.0
  %4709 = vmatpush1.xpose.msra.mxu0 0.0
  %4710 = vmatprep.subr.mxu0 0.0
  %4711 = vmatpush1.xpose.msra.mxu0 0.0
  %4712 = vmatprep.subr.mxu0 0.0
  %4713 = vmatpush1.xpose.msra.mxu0 0.0
  %4714 = vmatprep.subr.mxu0 0.0
  %4715 = vmatpush1.xpose.msra.mxu0 0.0
  %4716 = vmatprep.subr.mxu0 0.0
  %4717 = vmatpush1.xpose.msra.mxu0 0.0
  %4718 = vmatprep.subr.mxu0 0.0
  %4719 = vmatpush1.xpose.msra.mxu0 0.0
  %4720 = vmatprep.subr.mxu0 0.0
  %4721 = vmatpush1.xpose.msra.mxu0 0.0
  %4722 = vmatprep.subr.mxu0 0.0
  %4723 = vmatpush1.xpose.msra.mxu0 0.0
  %4724 = vmatprep.mubr.f32.mxu0 0.0
  %4725 = vmatmul.mubr.f32.gmra.mrb[0].mxu0 %v4624
  %v4726 = vpop.f32.mrb[0].mxu0
  %v4727 = vadd.f32 %v243, %v4726
  %v4728 = vpop.f32.mrb[0].mxu0
  %4729 = vmatprep.mubr.f32.mxu0 0.0
  %4730 = vmatmul.mubr.f32.gmra.mrb[0].mxu0 %v4626
  %v4731 = vpop.f32.mrb[0].mxu0
  %v4732 = vadd.f32 %v244, %v4731
  %v4733 = vpop.f32.mrb[0].mxu0
  %4734 = vmatprep.mubr.f32.mxu0 0.0
  %4735 = vmatmul.mubr.f32.gmra.mrb[0].mxu0 %v4628
  %v4736 = vpop.f32.mrb[0].mxu0
  %v4737 = vadd.f32 %v245, %v4736
  %v4738 = vpop.f32.mrb[0].mxu0
  %4739 = vmatprep.mubr.f32.mxu0 0.0
  %4740 = vmatmul.mubr.f32.gmra.mrb[0].mxu0 %v4630
  %v4741 = vpop.f32.mrb[0].mxu0
  %v4742 = vadd.f32 %v246, %v4741
  %v4743 = vpop.f32.mrb[0].mxu0
  %4744 = vmatprep.mubr.f32.mxu0 0.0
  %4745 = vmatmul.mubr.f32.gmra.mrb[0].mxu0 %v4632
  %v4746 = vpop.f32.mrb[0].mxu0
  %v4747 = vadd.f32 %v247, %v4746
  %v4748 = vpop.f32.mrb[0].mxu0
  %4749 = vmatprep.mubr.f32.mxu0 0.0
  %4750 = vmatmul.mubr.f32.gmra.mrb[0].mxu0 %v4634
  %v4751 = vpop.f32.mrb[0].mxu0
  %v4752 = vadd.f32 %v248, %v4751
  %v4753 = vpop.f32.mrb[0].mxu0
  %4754 = vmatprep.mubr.f32.mxu0 0.0
  %4755 = vmatmul.mubr.f32.gmra.mrb[0].mxu0 %v4636
  %v4756 = vpop.f32.mrb[0].mxu0
  %v4757 = vadd.f32 %v249, %v4756
  %v4758 = vpop.f32.mrb[0].mxu0
  %4759 = vmatprep.mubr.f32.mxu0 0.0
  %4760 = vmatmul.mubr.f32.gmra.mrb[0].mxu0 %v4638
  %v4761 = vpop.f32.mrb[0].mxu0
  %v4762 = vadd.f32 %v250, %v4761
  %v4763 = vpop.f32.mrb[0].mxu0
  %4764 = vmatprep.mubr.f32.mxu0 0.0
  %4765 = vmatmul.mubr.f32.gmra.mrb[0].mxu0 %v4640
  %v4766 = vpop.f32.mrb[0].mxu0
  %v4767 = vadd.f32 %v251, %v4766
  %v4768 = vpop.f32.mrb[0].mxu0
  %4769 = vdwg.mxu0
  %v4770 = vsel %vm439, %v4727, -inf
  %4771 = vmax.xlane.f32.xlu0 %v4770
  %v4772 = vpop.xlane.xlu0 %4771
  %v4773 = vsel %vm439, %v4732, -inf
  %4774 = vmax.xlane.f32.xlu0 %v4773
  %v4775 = vpop.xlane.xlu0 %4774
  %v4776 = vsel %vm439, %v4737, -inf
  %4777 = vmax.xlane.f32.xlu0 %v4776
  %v4778 = vpop.xlane.xlu0 %4777
  %v4779 = vsel %vm439, %v4742, -inf
  %4780 = vmax.xlane.f32.xlu0 %v4779
  %v4781 = vpop.xlane.xlu0 %4780
  %v4782 = vsel %vm439, %v4747, -inf
  %4783 = vmax.xlane.f32.xlu0 %v4782
  %v4784 = vpop.xlane.xlu0 %4783
  %v4785 = vsel %vm439, %v4752, -inf
  %4786 = vmax.xlane.f32.xlu0 %v4785
  %v4787 = vpop.xlane.xlu0 %4786
  %v4788 = vsel %vm439, %v4757, -inf
  %4789 = vmax.xlane.f32.xlu0 %v4788
  %v4790 = vpop.xlane.xlu0 %4789
  %v4791 = vsel %vm439, %v4762, -inf
  %4792 = vmax.xlane.f32.xlu0 %v4791
  %v4793 = vpop.xlane.xlu0 %4792
  %v4794 = vsel %vm439, %v4767, -inf
  %4795 = vmax.xlane.f32.xlu0 %v4794
  %v4796 = vpop.xlane.xlu0 %4795
  %v4797 = vsub.f32 %v4727, %v4772
  %v4798 = vsub.f32 %v4732, %v4775
  %v4799 = vsub.f32 %v4737, %v4778
  %v4800 = vsub.f32 %v4742, %v4781
  %v4801 = vsub.f32 %v4747, %v4784
  %v4802 = vsub.f32 %v4752, %v4787
  %v4803 = vsub.f32 %v4757, %v4790
  %v4804 = vsub.f32 %v4762, %v4793
  %v4805 = vsub.f32 %v4767, %v4796
  %v4806 = vmul.f32 %v4797, 1.442695
  %v4807 = vpow.pop %v4806
  %v4808 = vmul.f32 %v4798, 1.442695
  %v4809 = vpow.pop %v4808
  %v4810 = vmul.f32 %v4799, 1.442695
  %v4811 = vpow.pop %v4810
  %v4812 = vmul.f32 %v4800, 1.442695
  %v4813 = vpow.pop %v4812
  %v4814 = vmul.f32 %v4801, 1.442695
  %v4815 = vpow.pop %v4814
  %v4816 = vmul.f32 %v4802, 1.442695
  %v4817 = vpow.pop %v4816
  %v4818 = vmul.f32 %v4803, 1.442695
  %v4819 = vpow.pop %v4818
  %v4820 = vmul.f32 %v4804, 1.442695
  %v4821 = vpow.pop %v4820
  %v4822 = vmul.f32 %v4805, 1.442695
  %v4823 = vpow.pop %v4822
  %v4824 = vsel %vm439, %v4807, 0.0
  %4825 = vadd.xlane.f32.xlu0 %v4824
  %v4826 = vpop.xlane.xlu0 %4825
  %v4827 = vsel %vm439, %v4809, 0.0
  %4828 = vadd.xlane.f32.xlu0 %v4827
  %v4829 = vpop.xlane.xlu0 %4828
  %v4830 = vsel %vm439, %v4811, 0.0
  %4831 = vadd.xlane.f32.xlu0 %v4830
  %v4832 = vpop.xlane.xlu0 %4831
  %v4833 = vsel %vm439, %v4813, 0.0
  %4834 = vadd.xlane.f32.xlu0 %v4833
  %v4835 = vpop.xlane.xlu0 %4834
  %v4836 = vsel %vm439, %v4815, 0.0
  %4837 = vadd.xlane.f32.xlu0 %v4836
  %v4838 = vpop.xlane.xlu0 %4837
  %v4839 = vsel %vm439, %v4817, 0.0
  %4840 = vadd.xlane.f32.xlu0 %v4839
  %v4841 = vpop.xlane.xlu0 %4840
  %v4842 = vsel %vm439, %v4819, 0.0
  %4843 = vadd.xlane.f32.xlu0 %v4842
  %v4844 = vpop.xlane.xlu0 %4843
  %v4845 = vsel %vm439, %v4821, 0.0
  %4846 = vadd.xlane.f32.xlu0 %v4845
  %v4847 = vpop.xlane.xlu0 %4846
  %v4848 = vsel %vm439, %v4823, 0.0
  %4849 = vadd.xlane.f32.xlu0 %v4848
  %v4850 = vpop.xlane.xlu0 %4849
  %v4851 = vrcp.pop %v4826
  %v4852 = vrcp.pop %v4829
  %v4853 = vrcp.pop %v4832
  %v4854 = vrcp.pop %v4835
  %v4855 = vrcp.pop %v4838
  %v4856 = vrcp.pop %v4841
  %v4857 = vrcp.pop %v4844
  %v4858 = vrcp.pop %v4847
  %v4859 = vrcp.pop %v4850
  %v4860 = vmul.f32 %v4826, %v4851
  %v4861 = vmul.f32 %v4829, %v4852
  %v4862 = vmul.f32 %v4832, %v4853
  %v4863 = vmul.f32 %v4835, %v4854
  %v4864 = vmul.f32 %v4838, %v4855
  %v4865 = vmul.f32 %v4841, %v4856
  %v4866 = vmul.f32 %v4844, %v4857
  %v4867 = vmul.f32 %v4847, %v4858
  %v4868 = vmul.f32 %v4850, %v4859
  %v4869 = vsub.f32 2.0, %v4860
  %v4870 = vsub.f32 2.0, %v4861
  %v4871 = vsub.f32 2.0, %v4862
  %v4872 = vsub.f32 2.0, %v4863
  %v4873 = vsub.f32 2.0, %v4864
  %v4874 = vsub.f32 2.0, %v4865
  %v4875 = vsub.f32 2.0, %v4866
  %v4876 = vsub.f32 2.0, %v4867
  %v4877 = vsub.f32 2.0, %v4868
  %v4878 = vmul.f32 %v4851, %v4869
  %v4879 = vmul.f32 %v4852, %v4870
  %v4880 = vmul.f32 %v4853, %v4871
  %v4881 = vmul.f32 %v4854, %v4872
  %v4882 = vmul.f32 %v4855, %v4873
  %v4883 = vmul.f32 %v4856, %v4874
  %v4884 = vmul.f32 %v4857, %v4875
  %v4885 = vmul.f32 %v4858, %v4876
  %v4886 = vmul.f32 %v4859, %v4877
  %4887 = vrot.lane.b32.xlu0 %v141, 36
  %v4888 = vpop.permute.xlu0 %4887
  %4889 = vrot.lane.b32.xlu0 %v146, 36
  %v4890 = vpop.permute.xlu0 %4889
  %4891 = vrot.lane.b32.xlu0 %v151, 36
  %v4892 = vpop.permute.xlu0 %4891
  %4893 = vrot.lane.b32.xlu0 %v156, 36
  %v4894 = vpop.permute.xlu0 %4893
  %4895 = vrot.lane.b32.xlu0 %v161, 36
  %v4896 = vpop.permute.xlu0 %4895
  %4897 = vrot.lane.b32.xlu0 %v166, 36
  %v4898 = vpop.permute.xlu0 %4897
  %4899 = vrot.lane.b32.xlu0 %v171, 36
  %v4900 = vpop.permute.xlu0 %4899
  %4901 = vrot.lane.b32.xlu0 %v176, 36
  %v4902 = vpop.permute.xlu0 %4901
  %4903 = vrot.lane.b32.xlu0 %v181, 36
  %v4904 = vpop.permute.xlu0 %4903
  %v4915 = vsel %vm439, %v4807, 0
  %v4918 = vsel %vm439, %v4809, 0
  %v4921 = vsel %vm439, %v4811, 0
  %v4924 = vsel %vm439, %v4813, 0
  %v4927 = vsel %vm439, %v4815, 0
  %v4930 = vsel %vm439, %v4817, 0
  %v4933 = vsel %vm439, %v4819, 0
  %v4936 = vsel %vm439, %v4821, 0
  %v4939 = vsel %vm439, %v4823, 0
  %4941 = vmatprep.subr.mxu0 0.0
  %4942 = vmatpush1.msra.mxu0 %v4888
  %4943 = vmatprep.subr.mxu0 0.0
  %4944 = vmatpush1.msra.mxu0 %v4890
  %4945 = vmatprep.subr.mxu0 0.0
  %4946 = vmatpush1.msra.mxu0 %v4892
  %4947 = vmatprep.subr.mxu0 0.0
  %4948 = vmatpush1.msra.mxu0 %v4894
  %4949 = vmatprep.subr.mxu0 0.0
  %4950 = vmatpush1.msra.mxu0 %v4896
  %4951 = vmatprep.subr.mxu0 0.0
  %4952 = vmatpush1.msra.mxu0 %v4898
  %4953 = vmatprep.subr.mxu0 0.0
  %4954 = vmatpush1.msra.mxu0 %v4900
  %4955 = vmatprep.subr.mxu0 0.0
  %4956 = vmatpush1.msra.mxu0 %v4902
  %4957 = vmatprep.subr.mxu0 0.0
  %4958 = vmatpush1.msra.mxu0 %v4904
  %4959 = vmatprep.subr.mxu0 0.0
  %4960 = vmatpush1.msra.mxu0 0.0
  %4961 = vmatprep.subr.mxu0 0.0
  %4962 = vmatpush1.msra.mxu0 0.0
  %4963 = vmatprep.subr.mxu0 0.0
  %4964 = vmatpush1.msra.mxu0 0.0
  %4965 = vmatprep.subr.mxu0 0.0
  %4966 = vmatpush1.msra.mxu0 0.0
  %4967 = vmatprep.subr.mxu0 0.0
  %4968 = vmatpush1.msra.mxu0 0.0
  %4969 = vmatprep.subr.mxu0 0.0
  %4970 = vmatpush1.msra.mxu0 0.0
  %4971 = vmatprep.subr.mxu0 0.0
  %4972 = vmatpush1.msra.mxu0 0.0
  %4973 = vmatprep.subr.mxu0 0.0
  %4974 = vmatpush1.msra.mxu0 0.0
  %4975 = vmatprep.subr.mxu0 0.0
  %4976 = vmatpush1.msra.mxu0 0.0
  %4977 = vmatprep.subr.mxu0 0.0
  %4978 = vmatpush1.msra.mxu0 0.0
  %4979 = vmatprep.subr.mxu0 0.0
  %4980 = vmatpush1.msra.mxu0 0.0
  %4981 = vmatprep.subr.mxu0 0.0
  %4982 = vmatpush1.msra.mxu0 0.0
  %4983 = vmatprep.subr.mxu0 0.0
  %4984 = vmatpush1.msra.mxu0 0.0
  %4985 = vmatprep.subr.mxu0 0.0
  %4986 = vmatpush1.msra.mxu0 0.0
  %4987 = vmatprep.subr.mxu0 0.0
  %4988 = vmatpush1.msra.mxu0 0.0
  %4989 = vmatprep.subr.mxu0 0.0
  %4990 = vmatpush1.msra.mxu0 0.0
  %4991 = vmatprep.subr.mxu0 0.0
  %4992 = vmatpush1.msra.mxu0 0.0
  %4993 = vmatprep.subr.mxu0 0.0
  %4994 = vmatpush1.msra.mxu0 0.0
  %4995 = vmatprep.subr.mxu0 0.0
  %4996 = vmatpush1.msra.mxu0 0.0
  %4997 = vmatprep.subr.mxu0 0.0
  %4998 = vmatpush1.msra.mxu0 0.0
  %4999 = vmatprep.subr.mxu0 0.0
  %5000 = vmatpush1.msra.mxu0 0.0
  %5001 = vmatprep.subr.mxu0 0.0
  %5002 = vmatpush1.msra.mxu0 0.0
  %5003 = vmatprep.subr.mxu0 0.0
  %5004 = vmatpush1.msra.mxu0 0.0
  %5005 = vmatprep.mubr.f32.mxu0 0.0
  %5006 = vmatmul.mubr.f32.gmra.mrb[0].mxu0 %v4915
  %v5007 = vpop.f32.mrb[0].mxu0
  %v5008 = vadd.f32 0.0, %v5007
  %v5009 = vpop.f32.mrb[0].mxu0
  %5010 = vmatprep.mubr.f32.mxu0 0.0
  %5011 = vmatmul.mubr.f32.gmra.mrb[0].mxu0 %v4918
  %v5012 = vpop.f32.mrb[0].mxu0
  %v5013 = vadd.f32 0.0, %v5012
  %v5014 = vpop.f32.mrb[0].mxu0
  %5015 = vmatprep.mubr.f32.mxu0 0.0
  %5016 = vmatmul.mubr.f32.gmra.mrb[0].mxu0 %v4921
  %v5017 = vpop.f32.mrb[0].mxu0
  %v5018 = vadd.f32 0.0, %v5017
  %v5019 = vpop.f32.mrb[0].mxu0
  %5020 = vmatprep.mubr.f32.mxu0 0.0
  %5021 = vmatmul.mubr.f32.gmra.mrb[0].mxu0 %v4924
  %v5022 = vpop.f32.mrb[0].mxu0
  %v5023 = vadd.f32 0.0, %v5022
  %v5024 = vpop.f32.mrb[0].mxu0
  %5025 = vmatprep.mubr.f32.mxu0 0.0
  %5026 = vmatmul.mubr.f32.gmra.mrb[0].mxu0 %v4927
  %v5027 = vpop.f32.mrb[0].mxu0
  %v5028 = vadd.f32 0.0, %v5027
  %v5029 = vpop.f32.mrb[0].mxu0
  %5030 = vmatprep.mubr.f32.mxu0 0.0
  %5031 = vmatmul.mubr.f32.gmra.mrb[0].mxu0 %v4930
  %v5032 = vpop.f32.mrb[0].mxu0
  %v5033 = vadd.f32 0.0, %v5032
  %v5034 = vpop.f32.mrb[0].mxu0
  %5035 = vmatprep.mubr.f32.mxu0 0.0
  %5036 = vmatmul.mubr.f32.gmra.mrb[0].mxu0 %v4933
  %v5037 = vpop.f32.mrb[0].mxu0
  %v5038 = vadd.f32 0.0, %v5037
  %v5039 = vpop.f32.mrb[0].mxu0
  %5040 = vmatprep.mubr.f32.mxu0 0.0
  %5041 = vmatmul.mubr.f32.gmra.mrb[0].mxu0 %v4936
  %v5042 = vpop.f32.mrb[0].mxu0
  %v5043 = vadd.f32 0.0, %v5042
  %v5044 = vpop.f32.mrb[0].mxu0
  %5045 = vmatprep.mubr.f32.mxu0 0.0
  %5046 = vmatmul.mubr.f32.gmra.mrb[0].mxu0 %v4939
  %v5047 = vpop.f32.mrb[0].mxu0
  %v5048 = vadd.f32 0.0, %v5047
  %v5049 = vpop.f32.mrb[0].mxu0
  %5050 = vdwg.mxu0
  %v5051 = vmul.f32 %v5008, %v4878
  %v5052 = vmul.f32 %v5013, %v4879
  %v5053 = vmul.f32 %v5018, %v4880
  %v5054 = vmul.f32 %v5023, %v4881
  %v5055 = vmul.f32 %v5028, %v4882
  %v5056 = vmul.f32 %v5033, %v4883
  %v5057 = vmul.f32 %v5038, %v4884
  %v5058 = vmul.f32 %v5043, %v4885
  %v5059 = vmul.f32 %v5048, %v4886
  %v5060 = vrot.slane %v255, 4
  %v5062 = vsel %vm283, %v5051, 0
  %v5065 = vsel %vm283, %v5052, 0
  %v5068 = vsel %vm283, %v5053, 0
  %v5071 = vsel %vm283, %v5054, 0
  %v5074 = vsel %vm283, %v5055, 0
  %v5077 = vsel %vm283, %v5056, 0
  %v5080 = vsel %vm283, %v5057, 0
  %v5083 = vsel %vm283, %v5058, 0
  %v5086 = vsel %vm283, %v5059, 0
  %v5088 = vsel %vm1231, %v5060, 0
  %5090 = vmatprep.subr.mxu0 0.0
  %5091 = vmatpush1.msra.mxu0 %v5088
  %5092 = vmatprep.subr.mxu0 0.0
  %5093 = vmatpush1.msra.mxu0 0.0
  %5094 = vmatprep.subr.mxu0 0.0
  %5095 = vmatpush1.msra.mxu0 0.0
  %5096 = vmatprep.subr.mxu0 0.0
  %5097 = vmatpush1.msra.mxu0 0.0
  %5098 = vmatprep.subr.mxu0 0.0
  %5099 = vmatpush1.msra.mxu0 0.0
  %5100 = vmatprep.subr.mxu0 0.0
  %5101 = vmatpush1.msra.mxu0 0.0
  %5102 = vmatprep.subr.mxu0 0.0
  %5103 = vmatpush1.msra.mxu0 0.0
  %5104 = vmatprep.subr.mxu0 0.0
  %5105 = vmatpush1.msra.mxu0 0.0
  %5106 = vmatprep.subr.mxu0 0.0
  %5107 = vmatpush1.msra.mxu0 0.0
  %5108 = vmatprep.subr.mxu0 0.0
  %5109 = vmatpush1.msra.mxu0 0.0
  %5110 = vmatprep.subr.mxu0 0.0
  %5111 = vmatpush1.msra.mxu0 0.0
  %5112 = vmatprep.subr.mxu0 0.0
  %5113 = vmatpush1.msra.mxu0 0.0
  %5114 = vmatprep.subr.mxu0 0.0
  %5115 = vmatpush1.msra.mxu0 0.0
  %5116 = vmatprep.subr.mxu0 0.0
  %5117 = vmatpush1.msra.mxu0 0.0
  %5118 = vmatprep.subr.mxu0 0.0
  %5119 = vmatpush1.msra.mxu0 0.0
  %5120 = vmatprep.subr.mxu0 0.0
  %5121 = vmatpush1.msra.mxu0 0.0
  %5122 = vmatprep.subr.mxu0 0.0
  %5123 = vmatpush1.msra.mxu0 0.0
  %5124 = vmatprep.subr.mxu0 0.0
  %5125 = vmatpush1.msra.mxu0 0.0
  %5126 = vmatprep.subr.mxu0 0.0
  %5127 = vmatpush1.msra.mxu0 0.0
  %5128 = vmatprep.subr.mxu0 0.0
  %5129 = vmatpush1.msra.mxu0 0.0
  %5130 = vmatprep.subr.mxu0 0.0
  %5131 = vmatpush1.msra.mxu0 0.0
  %5132 = vmatprep.subr.mxu0 0.0
  %5133 = vmatpush1.msra.mxu0 0.0
  %5134 = vmatprep.subr.mxu0 0.0
  %5135 = vmatpush1.msra.mxu0 0.0
  %5136 = vmatprep.subr.mxu0 0.0
  %5137 = vmatpush1.msra.mxu0 0.0
  %5138 = vmatprep.subr.mxu0 0.0
  %5139 = vmatpush1.msra.mxu0 0.0
  %5140 = vmatprep.subr.mxu0 0.0
  %5141 = vmatpush1.msra.mxu0 0.0
  %5142 = vmatprep.subr.mxu0 0.0
  %5143 = vmatpush1.msra.mxu0 0.0
  %5144 = vmatprep.subr.mxu0 0.0
  %5145 = vmatpush1.msra.mxu0 0.0
  %5146 = vmatprep.subr.mxu0 0.0
  %5147 = vmatpush1.msra.mxu0 0.0
  %5148 = vmatprep.subr.mxu0 0.0
  %5149 = vmatpush1.msra.mxu0 0.0
  %5150 = vmatprep.subr.mxu0 0.0
  %5151 = vmatpush1.msra.mxu0 0.0
  %5152 = vmatprep.subr.mxu0 0.0
  %5153 = vmatpush1.msra.mxu0 0.0
  %5154 = vmatprep.mubr.f32.mxu0 0.0
  %5155 = vmatmul.mubr.f32.gmra.mrb[0].mxu0 %v5062
  %v5156 = vpop.f32.mrb[0].mxu0
  %v5157 = vadd.f32 0.0, %v5156
  %v5158 = vpop.f32.mrb[0].mxu0
  %5159 = vmatprep.mubr.f32.mxu0 0.0
  %5160 = vmatmul.mubr.f32.gmra.mrb[0].mxu0 %v5065
  %v5161 = vpop.f32.mrb[0].mxu0
  %v5162 = vadd.f32 0.0, %v5161
  %v5163 = vpop.f32.mrb[0].mxu0
  %5164 = vmatprep.mubr.f32.mxu0 0.0
  %5165 = vmatmul.mubr.f32.gmra.mrb[0].mxu0 %v5068
  %v5166 = vpop.f32.mrb[0].mxu0
  %v5167 = vadd.f32 0.0, %v5166
  %v5168 = vpop.f32.mrb[0].mxu0
  %5169 = vmatprep.mubr.f32.mxu0 0.0
  %5170 = vmatmul.mubr.f32.gmra.mrb[0].mxu0 %v5071
  %v5171 = vpop.f32.mrb[0].mxu0
  %v5172 = vadd.f32 0.0, %v5171
  %v5173 = vpop.f32.mrb[0].mxu0
  %5174 = vmatprep.mubr.f32.mxu0 0.0
  %5175 = vmatmul.mubr.f32.gmra.mrb[0].mxu0 %v5074
  %v5176 = vpop.f32.mrb[0].mxu0
  %v5177 = vadd.f32 0.0, %v5176
  %v5178 = vpop.f32.mrb[0].mxu0
  %5179 = vmatprep.mubr.f32.mxu0 0.0
  %5180 = vmatmul.mubr.f32.gmra.mrb[0].mxu0 %v5077
  %v5181 = vpop.f32.mrb[0].mxu0
  %v5182 = vadd.f32 0.0, %v5181
  %v5183 = vpop.f32.mrb[0].mxu0
  %5184 = vmatprep.mubr.f32.mxu0 0.0
  %5185 = vmatmul.mubr.f32.gmra.mrb[0].mxu0 %v5080
  %v5186 = vpop.f32.mrb[0].mxu0
  %v5187 = vadd.f32 0.0, %v5186
  %v5188 = vpop.f32.mrb[0].mxu0
  %5189 = vmatprep.mubr.f32.mxu0 0.0
  %5190 = vmatmul.mubr.f32.gmra.mrb[0].mxu0 %v5083
  %v5191 = vpop.f32.mrb[0].mxu0
  %v5192 = vadd.f32 0.0, %v5191
  %v5193 = vpop.f32.mrb[0].mxu0
  %5194 = vmatprep.mubr.f32.mxu0 0.0
  %5195 = vmatmul.mubr.f32.gmra.mrb[0].mxu0 %v5086
  %v5196 = vpop.f32.mrb[0].mxu0
  %v5197 = vadd.f32 0.0, %v5196
  %v5198 = vpop.f32.mrb[0].mxu0
  %5199 = vdwg.mxu0
  %v5200 = vadd.f32 %v4579, %v5157
  %v5201 = vadd.f32 %v4580, %v5162
  %v5202 = vadd.f32 %v4581, %v5167
  %v5203 = vadd.f32 %v4582, %v5172
  %v5204 = vadd.f32 %v4583, %v5177
  %v5205 = vadd.f32 %v4584, %v5182
  %v5206 = vadd.f32 %v4585, %v5187
  %v5207 = vadd.f32 %v4586, %v5192
  %v5208 = vadd.f32 %v4587, %v5197
  %v5209 = vld [vmem:[%s6] sm:$0x1]
  %v5211 = vlaneseq
  %v5212 = vshrl.u32 %v5211, 7
  %v5213 = vsub.s32 0, %v5212
  %v5214 = vrot.slane %v5209, %v5213
  %v5216 = vadd.f32 %v5200, %v5214
  %v5217 = vadd.f32 %v5201, %v5214
  %v5218 = vadd.f32 %v5202, %v5214
  %v5219 = vadd.f32 %v5203, %v5214
  %v5220 = vadd.f32 %v5204, %v5214
  %v5221 = vadd.f32 %v5205, %v5214
  %v5222 = vadd.f32 %v5206, %v5214
  %v5223 = vadd.f32 %v5207, %v5214
  %v5224 = vadd.f32 %v5208, %v5214
  %5225 = vst.msk [vmem:[%s7] sm:$0xff] %vm46, %v5216
  %5226 = vst.msk [vmem:[%s7 + $0x8] sm:$0xff] %vm46, %v5217
  %5227 = vst.msk [vmem:[%s7 + $0x10] sm:$0xff] %vm46, %v5218
  %5228 = vst.msk [vmem:[%s7 + $0x18] sm:$0xff] %vm46, %v5219
  %5229 = vst.msk [vmem:[%s7 + $0x20] sm:$0xff] %vm46, %v5220
  %5230 = vst.msk [vmem:[%s7 + $0x28] sm:$0xff] %vm46, %v5221
  %5231 = vst.msk [vmem:[%s7 + $0x30] sm:$0xff] %vm46, %v5222
  %5232 = vst.msk [vmem:[%s7 + $0x38] sm:$0xff] %vm46, %v5223
  %5233 = vst.msk [vmem:[%s7 + $0x40] sm:$0xff] %vm46, %v5224
  // Predicated region
  $region30: #{tpu_custom_call.1} parent=0 // pred_check
    _
  $region31: #{tpu_custom_call.1} parent=0 // pred_check_branch
    %5235 = sbr.rel (0) target = $region33
  $region32: #{tpu_custom_call.1} parent=0 // pred_region
    _
  $region33: #{tpu_custom_call.1} parent=0 // pred_fallthru
    _
  // Predicated region
  $region34: #{tpu_custom_call.1} parent=0 // pred_check
    _
  $region35: #{tpu_custom_call.1} parent=0 // pred_check_branch
    %5237 = sbr.rel (0) target = $region37
  $region36: #{tpu_custom_call.1} parent=0 // pred_region
    _
  $region37: #{tpu_custom_call.1} parent=0 // pred_fallthru
    _

</llo_original>
